<compile_context>
chip_gen: v5e
topology: v5e:2x2
jax: 0.10.0
libtpu: 0.0.40
codegen_flags: <defaults>
</compile_context>

<pallas_src>
import math
import functools

import jax
import jax.numpy as jnp
from jax import lax
from jax.experimental import pallas as pl
from jax.experimental.pallas import tpu as pltpu

LN_EPS = 1e-12
OUT_PAD = 128  # classifier logits padded to a full lane group


# ------------------------- fused encoder + head kernel -------------------------


def make_fused_forward(B, S, H, heads, n_layers, n_classes):
    """Build a callable(emb, bias, packed) -> (B, n_classes) logits."""
    N = B * S
    D = H // heads
    scale = 1.0 / math.sqrt(D)

    def kernel(emb_ref, bias_ref, eg_ref, eb_ref,
               wqkv_ref, bqkv_ref, wo_ref, bo_ref,
               l1g_ref, l1b_ref, w1_ref, b1_ref, w2_ref, b2_ref,
               l2g_ref, l2b_ref,
               pw_ref, pb_ref, cw_ref, cb_ref,
               out_ref):

        def ln(x, g, b):  # f32 LayerNorm over the hidden (lane) dim
            mean = jnp.mean(x, axis=-1, keepdims=True)
            var = jnp.mean((x - mean) ** 2, axis=-1, keepdims=True)
            return (x - mean) * lax.rsqrt(var + LN_EPS) * g + b

        def mm(x, w, b):  # bf16 operands, f32 accumulate, f32 bias
            return jnp.dot(x.astype(jnp.bfloat16), w,
                           preferred_element_type=jnp.float32) + b

        def gelu(x):
            # TODO(synk): HF BERT uses exact erf-based GELU; tanh approx differs ~1e-3.
            return 0.5 * x * (1.0 + jnp.tanh(
                0.7978845608028654 * (x + 0.044715 * x * x * x)))

        # ---- embedding LayerNorm ----
        x = ln(emb_ref[...].astype(jnp.float32), eg_ref[...], eb_ref[...])  # (N, H)

        # ---- encoder layers (statically unrolled; weights resident in VMEM) ----
        for l in range(n_layers):
            wqkv = wqkv_ref[l]            # (H, 3H) bf16
            bqkv = bqkv_ref[l]            # (1, 3H) f32
            wo = wo_ref[l]                # (H, H)  bf16
            bo = bo_ref[l]                # (1, H)  f32
            w1 = w1_ref[l]                # (H, I)  bf16
            b1 = b1_ref[l]                # (1, I)  f32
            w2 = w2_ref[l]                # (I, H)  bf16
            b2 = b2_ref[l]                # (1, H)  f32

            # fused QKV projection (single lane-dense matmul)
            qkv = mm(x, wqkv, bqkv)       # (N, 3H)
            q = qkv[:, 0:H]
            k = qkv[:, H:2 * H]
            v = qkv[:, 2 * H:3 * H]

            # attention + output projection, per (batch, head), summed over heads
            attn_rows = []
            for b in range(B):
                r0 = b * S
                bias_b = bias_ref[b:b + 1, :]                      # (1, S) additive mask
                acc = None
                for h in range(heads):
                    c0 = h * D
                    qh = q[r0:r0 + S, c0:c0 + D].astype(jnp.bfloat16)   # (S, D)
                    kh = k[r0:r0 + S, c0:c0 + D].astype(jnp.bfloat16)
                    vh = v[r0:r0 + S, c0:c0 + D].astype(jnp.bfloat16)
                    s = lax.dot_general(qh, kh, (((1,), (1,)), ((), ())),
                                        preferred_element_type=jnp.float32) * scale
                    s = s + bias_b
                    s = s - jnp.max(s, axis=-1, keepdims=True)
                    p = jnp.exp(s)
                    p = p * pl.reciprocal(jnp.sum(p, axis=-1, keepdims=True),
                                          approx=True)
                    ctx_h = jnp.dot(p.astype(jnp.bfloat16), vh,
                                    preferred_element_type=jnp.float32)  # (S, D)
                    # fold output projection per head: ctx @ wo == sum_h ctx_h @ wo_h
                    proj_h = jnp.dot(ctx_h.astype(jnp.bfloat16), wo[c0:c0 + D, :],
                                     preferred_element_type=jnp.float32)  # (S, H)
                    acc = proj_h if acc is None else acc + proj_h
                attn_rows.append(acc)
            attn_out = jnp.concatenate(attn_rows, axis=0) + bo      # (N, H)

            # residual + LN1 fused
            x = ln(x + attn_out, l1g_ref[l], l1b_ref[l])

            # FFN with GELU, residual + LN2 fused
            hmid = gelu(mm(x, w1, b1))                              # (N, I)
            x = ln(x + mm(hmid, w2, b2), l2g_ref[l], l2b_ref[l])    # (N, H)

        # ---- pooler (dense+tanh on [CLS]) and classifier, in the same kernel ----
        cls = jnp.concatenate([x[b * S:b * S + 1, :] for b in range(B)], axis=0)  # (B, H)
        pooled = jnp.tanh(mm(cls, pw_ref[...], pb_ref[...]))        # (B, H)
        logits = mm(pooled, cw_ref[...], cb_ref[...])               # (B, OUT_PAD)
        out_ref[...] = logits.astype(out_ref.dtype)

    def full_spec(shape):
        return pl.BlockSpec(shape, lambda i, _nd=len(shape): (0,) * _nd)

    def forward(emb, bias, packed):
        args = (emb, bias,
                packed["emb_ln_g"], packed["emb_ln_b"],
                packed["wqkv"], packed["bqkv"], packed["wo"], packed["bo"],
                packed["ln1_g"], packed["ln1_b"], packed["w1"], packed["b1"],
                packed["w2"], packed["b2"], packed["ln2_g"], packed["ln2_b"],
                packed["pool_w"], packed["pool_b"], packed["cls_w"], packed["cls_b"])
        out = pl.pallas_call(
            kernel,
            out_shape=jax.ShapeDtypeStruct((B, OUT_PAD), jnp.float32),
            grid=(1,),
            in_specs=[full_spec(a.shape) for a in args],
            out_specs=full_spec((B, OUT_PAD)),
        )(*args)
        return out[:, :n_classes]

    return forward


# ------------------------- parameter initialization ------------------------


def init_params(key, vocab, max_pos, H, heads, inter, n_layers, n_classes):
    ks = iter(jax.random.split(key, 16 + 12 * n_layers))

    def dense(k, din, dout):
        return (0.02 * jax.random.normal(k, (din, dout), jnp.float32),
                jnp.zeros((1, dout), jnp.float32))

    p = {
        "word_emb": 0.02 * jax.random.normal(next(ks), (vocab, H), jnp.float32),
        "pos_emb": 0.02 * jax.random.normal(next(ks), (max_pos, H), jnp.float32),
        "type_emb": 0.02 * jax.random.normal(next(ks), (2, H), jnp.float32),
        "emb_ln_g": jnp.ones((1, H), jnp.float32),
        "emb_ln_b": jnp.zeros((1, H), jnp.float32),
        "layers": [],
    }
    for _ in range(n_layers):
        wq, bq = dense(next(ks), H, H)
        wk, bk = dense(next(ks), H, H)
        wv, bv = dense(next(ks), H, H)
        wo, bo = dense(next(ks), H, H)
        w1, b1 = dense(next(ks), H, inter)
        w2, b2 = dense(next(ks), inter, H)
        p["layers"].append(dict(
            wq=wq, bq=bq, wk=wk, bk=bk, wv=wv, bv=bv, wo=wo, bo=bo,
            w1=w1, b1=b1, w2=w2, b2=b2,
            ln1_g=jnp.ones((1, H), jnp.float32), ln1_b=jnp.zeros((1, H), jnp.float32),
            ln2_g=jnp.ones((1, H), jnp.float32), ln2_b=jnp.zeros((1, H), jnp.float32),
        ))
    p["pool_w"], p["pool_b"] = dense(next(ks), H, H)
    p["cls_w"], p["cls_b"] = dense(next(ks), H, n_classes)   # == self.linear
    return p


def pack_params(p):
    """Stack per-layer weights, fuse QKV, pad the classifier, cast matmul weights to bf16."""
    layers = p["layers"]

    def stack(k):
        return jnp.stack([l[k] for l in layers], axis=0)

    packed = {
        "word_emb": p["word_emb"], "pos_emb": p["pos_emb"], "type_emb": p["type_emb"],
        "emb_ln_g": p["emb_ln_g"], "emb_ln_b": p["emb_ln_b"],
        "wqkv": jnp.stack([jnp.concatenate([l["wq"], l["wk"], l["wv"]], axis=1)
                           for l in layers], axis=0).astype(jnp.bfloat16),
        "bqkv": jnp.stack([jnp.concatenate([l["bq"], l["bk"], l["bv"]], axis=1)
                           for l in layers], axis=0),
        "wo": stack("wo").astype(jnp.bfloat16), "bo": stack("bo"),
        "ln1_g": stack("ln1_g"), "ln1_b": stack("ln1_b"),
        "w1": stack("w1").astype(jnp.bfloat16), "b1": stack("b1"),
        "w2": stack("w2").astype(jnp.bfloat16), "b2": stack("b2"),
        "ln2_g": stack("ln2_g"), "ln2_b": stack("ln2_b"),
        "pool_w": p["pool_w"].astype(jnp.bfloat16), "pool_b": p["pool_b"],
    }
    H = p["pool_w"].shape[0]
    n_cls = p["cls_w"].shape[1]
    cls_w_pad = jnp.zeros((H, OUT_PAD), jnp.float32).at[:, :n_cls].set(p["cls_w"])
    cls_b_pad = jnp.zeros((1, OUT_PAD), jnp.float32).at[:, :n_cls].set(p["cls_b"])
    packed["cls_w"] = cls_w_pad.astype(jnp.bfloat16)
    packed["cls_b"] = cls_b_pad
    return packed


# ------------------------------ model forward ------------------------------


def my_model_forward(packed, input_ids, attention_mask, *, heads, n_layers, n_classes):
    """Equivalent of MyModel.forward((input_ids, attention_mask))."""
    B, S = input_ids.shape
    H = packed["word_emb"].shape[1]

    # --- BERT embeddings (gather = glue; LayerNorm happens inside the fused kernel) ---
    emb = (packed["word_emb"][input_ids]
           + packed["pos_emb"][:S][None, :, :]
           + packed["type_emb"][0][None, None, :]).reshape(B * S, H)

    # additive attention-mask bias: 0 where attend, -1e9 where masked
    bias = (1.0 - attention_mask.astype(jnp.float32)) * -1e9          # (B, S)

    fwd = make_fused_forward(B, S, H, heads, n_layers, n_classes)
    return fwd(emb, bias, packed)                                     # (B, n_classes)


# ----------------------------------- main -----------------------------------

if __name__ == "__main__":
    # small synthetic BERT config consistent with args['num_filters']=hidden=128
    VOCAB, MAX_POS = 64, 16
    B, S, H, HEADS, INTER, LAYERS = 2, 8, 128, 2, 256, 2
    N_SENTIMENTS = 3   # len(args['sentiments'])

    key = jax.random.PRNGKey(0)
    k_param, k_ids = jax.random.split(key)

    params = init_params(k_param, VOCAB, MAX_POS, H, HEADS, INTER, LAYERS,
                         N_SENTIMENTS)
    packed = pack_params(params)

    input_ids = jax.random.randint(k_ids, (B, S), 0, VOCAB, dtype=jnp.int32)
    attention_mask = jnp.ones((B, S), jnp.int32).at[1, 6:].set(0)  # pad tail of ex.1

    fwd = jax.jit(functools.partial(my_model_forward, heads=HEADS,
                                    n_layers=LAYERS, n_classes=N_SENTIMENTS))
    pred = fwd(packed, input_ids, attention_mask)
    pred = jax.block_until_ready(pred)

    assert pred.shape == (B, N_SENTIMENTS) and pred.dtype == jnp.float32
    print("KERNEL_OK")
</pallas_src>

<mosaic_0001>
module attributes {stable_mosaic.version = 11 : i64} {
  func.func @kernel(%arg0: i32, %arg1: memref<16x128xf32, #tpu.memory_space<vmem>>, %arg2: memref<2x8xf32, #tpu.memory_space<vmem>>, %arg3: memref<1x128xf32, #tpu.memory_space<vmem>>, %arg4: memref<1x128xf32, #tpu.memory_space<vmem>>, %arg5: memref<2x128x384xbf16, #tpu.memory_space<vmem>>, %arg6: memref<2x1x384xf32, #tpu.memory_space<vmem>>, %arg7: memref<2x128x128xbf16, #tpu.memory_space<vmem>>, %arg8: memref<2x1x128xf32, #tpu.memory_space<vmem>>, %arg9: memref<2x1x128xf32, #tpu.memory_space<vmem>>, %arg10: memref<2x1x128xf32, #tpu.memory_space<vmem>>, %arg11: memref<2x128x256xbf16, #tpu.memory_space<vmem>>, %arg12: memref<2x1x256xf32, #tpu.memory_space<vmem>>, %arg13: memref<2x256x128xbf16, #tpu.memory_space<vmem>>, %arg14: memref<2x1x128xf32, #tpu.memory_space<vmem>>, %arg15: memref<2x1x128xf32, #tpu.memory_space<vmem>>, %arg16: memref<2x1x128xf32, #tpu.memory_space<vmem>>, %arg17: memref<128x128xbf16, #tpu.memory_space<vmem>>, %arg18: memref<1x128xf32, #tpu.memory_space<vmem>>, %arg19: memref<128x128xbf16, #tpu.memory_space<vmem>>, %arg20: memref<1x128xf32, #tpu.memory_space<vmem>>, %arg21: memref<2x128xf32, #tpu.memory_space<vmem>>) attributes {dimension_semantics = [#tpu.dimension_semantics<arbitrary>], iteration_bounds = array<i64: 1>, scalar_prefetch = 0 : i64, scratch_operands = 0 : i64, tpu.core_type = #tpu.core_type<tc>, window_params = [{pipeline_mode = #tpu.pipeline_mode<synchronous>, transform_indices = @transform_0, window_bounds = array<i64: 16, 128>}, {pipeline_mode = #tpu.pipeline_mode<synchronous>, transform_indices = @transform_1, window_bounds = array<i64: 2, 8>}, {pipeline_mode = #tpu.pipeline_mode<synchronous>, transform_indices = @transform_2, window_bounds = array<i64: 1, 128>}, {pipeline_mode = #tpu.pipeline_mode<synchronous>, transform_indices = @transform_3, window_bounds = array<i64: 1, 128>}, {pipeline_mode = #tpu.pipeline_mode<synchronous>, transform_indices = @transform_4, window_bounds = array<i64: 2, 128, 384>}, {pipeline_mode = #tpu.pipeline_mode<synchronous>, transform_indices = @transform_5, window_bounds = array<i64: 2, 1, 384>}, {pipeline_mode = #tpu.pipeline_mode<synchronous>, transform_indices = @transform_6, window_bounds = array<i64: 2, 128, 128>}, {pipeline_mode = #tpu.pipeline_mode<synchronous>, transform_indices = @transform_7, window_bounds = array<i64: 2, 1, 128>}, {pipeline_mode = #tpu.pipeline_mode<synchronous>, transform_indices = @transform_8, window_bounds = array<i64: 2, 1, 128>}, {pipeline_mode = #tpu.pipeline_mode<synchronous>, transform_indices = @transform_9, window_bounds = array<i64: 2, 1, 128>}, {pipeline_mode = #tpu.pipeline_mode<synchronous>, transform_indices = @transform_10, window_bounds = array<i64: 2, 128, 256>}, {pipeline_mode = #tpu.pipeline_mode<synchronous>, transform_indices = @transform_11, window_bounds = array<i64: 2, 1, 256>}, {pipeline_mode = #tpu.pipeline_mode<synchronous>, transform_indices = @transform_12, window_bounds = array<i64: 2, 256, 128>}, {pipeline_mode = #tpu.pipeline_mode<synchronous>, transform_indices = @transform_13, window_bounds = array<i64: 2, 1, 128>}, {pipeline_mode = #tpu.pipeline_mode<synchronous>, transform_indices = @transform_14, window_bounds = array<i64: 2, 1, 128>}, {pipeline_mode = #tpu.pipeline_mode<synchronous>, transform_indices = @transform_15, window_bounds = array<i64: 2, 1, 128>}, {pipeline_mode = #tpu.pipeline_mode<synchronous>, transform_indices = @transform_16, window_bounds = array<i64: 128, 128>}, {pipeline_mode = #tpu.pipeline_mode<synchronous>, transform_indices = @transform_17, window_bounds = array<i64: 1, 128>}, {pipeline_mode = #tpu.pipeline_mode<synchronous>, transform_indices = @transform_18, window_bounds = array<i64: 128, 128>}, {pipeline_mode = #tpu.pipeline_mode<synchronous>, transform_indices = @transform_19, window_bounds = array<i64: 1, 128>}, {pipeline_mode = #tpu.pipeline_mode<synchronous>, transform_indices = @transform_20, window_bounds = array<i64: 2, 128>}]} {
    %c0 = arith.constant 0 : index
    %c0_0 = arith.constant 0 : index
    %0 = vector.load %arg1[%c0, %c0_0] : memref<16x128xf32, #tpu.memory_space<vmem>>, vector<16x128xf32>
    %c0_1 = arith.constant 0 : index
    %c0_2 = arith.constant 0 : index
    %1 = vector.load %arg3[%c0_1, %c0_2] : memref<1x128xf32, #tpu.memory_space<vmem>>, vector<1x128xf32>
    %c0_3 = arith.constant 0 : index
    %c0_4 = arith.constant 0 : index
    %2 = vector.load %arg4[%c0_3, %c0_4] : memref<1x128xf32, #tpu.memory_space<vmem>>, vector<1x128xf32>
    %cst = arith.constant dense<0.000000e+00> : vector<16xf32>
    %3 = vector.multi_reduction <add>, %0, %cst [1] : vector<16x128xf32> to vector<16xf32>
    %4 = vector.shape_cast %3 : vector<16xf32> to vector<16x1xf32>
    %cst_5 = arith.constant 1.280000e+02 : f32
    %5 = vector.broadcast %cst_5 : f32 to vector<16x1xf32>
    %6 = arith.divf %4, %5 : vector<16x1xf32>
    %7 = vector.broadcast %6 : vector<16x1xf32> to vector<16x128xf32>
    %8 = arith.subf %0, %7 : vector<16x128xf32>
    %9 = arith.mulf %8, %8 : vector<16x128xf32>
    %cst_6 = arith.constant dense<0.000000e+00> : vector<16xf32>
    %10 = vector.multi_reduction <add>, %9, %cst_6 [1] : vector<16x128xf32> to vector<16xf32>
    %11 = vector.shape_cast %10 : vector<16xf32> to vector<16x1xf32>
    %cst_7 = arith.constant 1.280000e+02 : f32
    %12 = vector.broadcast %cst_7 : f32 to vector<16x1xf32>
    %13 = arith.divf %11, %12 : vector<16x1xf32>
    %14 = vector.broadcast %6 : vector<16x1xf32> to vector<16x128xf32>
    %15 = arith.subf %0, %14 : vector<16x128xf32>
    %cst_8 = arith.constant 9.99999996E-13 : f32
    %16 = vector.broadcast %cst_8 : f32 to vector<16x1xf32>
    %17 = arith.addf %13, %16 : vector<16x1xf32>
    %18 = math.rsqrt %17 : vector<16x1xf32>
    %19 = vector.broadcast %18 : vector<16x1xf32> to vector<16x128xf32>
    %20 = arith.mulf %15, %19 : vector<16x128xf32>
    %21 = vector.broadcast %1 : vector<1x128xf32> to vector<16x128xf32>
    %22 = arith.mulf %20, %21 : vector<16x128xf32>
    %23 = vector.broadcast %2 : vector<1x128xf32> to vector<16x128xf32>
    %24 = arith.addf %22, %23 : vector<16x128xf32>
    %c0_9 = arith.constant 0 : index
    %c0_10 = arith.constant 0 : index
    %c0_11 = arith.constant 0 : index
    %25 = vector.load %arg5[%c0_9, %c0_10, %c0_11] : memref<2x128x384xbf16, #tpu.memory_space<vmem>>, vector<1x128x384xbf16>
    %26 = vector.shape_cast %25 : vector<1x128x384xbf16> to vector<128x384xbf16>
    %c0_12 = arith.constant 0 : index
    %c0_13 = arith.constant 0 : index
    %c0_14 = arith.constant 0 : index
    %27 = vector.load %arg6[%c0_12, %c0_13, %c0_14] : memref<2x1x384xf32, #tpu.memory_space<vmem>>, vector<1x1x384xf32>
    %28 = vector.shape_cast %27 : vector<1x1x384xf32> to vector<1x384xf32>
    %c0_15 = arith.constant 0 : index
    %c0_16 = arith.constant 0 : index
    %c0_17 = arith.constant 0 : index
    %29 = vector.load %arg7[%c0_15, %c0_16, %c0_17] : memref<2x128x128xbf16, #tpu.memory_space<vmem>>, vector<1x128x128xbf16>
    %30 = vector.shape_cast %29 : vector<1x128x128xbf16> to vector<128x128xbf16>
    %c0_18 = arith.constant 0 : index
    %c0_19 = arith.constant 0 : index
    %c0_20 = arith.constant 0 : index
    %31 = vector.load %arg8[%c0_18, %c0_19, %c0_20] : memref<2x1x128xf32, #tpu.memory_space<vmem>>, vector<1x1x128xf32>
    %32 = vector.shape_cast %31 : vector<1x1x128xf32> to vector<1x128xf32>
    %c0_21 = arith.constant 0 : index
    %c0_22 = arith.constant 0 : index
    %c0_23 = arith.constant 0 : index
    %33 = vector.load %arg11[%c0_21, %c0_22, %c0_23] : memref<2x128x256xbf16, #tpu.memory_space<vmem>>, vector<1x128x256xbf16>
    %34 = vector.shape_cast %33 : vector<1x128x256xbf16> to vector<128x256xbf16>
    %c0_24 = arith.constant 0 : index
    %c0_25 = arith.constant 0 : index
    %c0_26 = arith.constant 0 : index
    %35 = vector.load %arg12[%c0_24, %c0_25, %c0_26] : memref<2x1x256xf32, #tpu.memory_space<vmem>>, vector<1x1x256xf32>
    %36 = vector.shape_cast %35 : vector<1x1x256xf32> to vector<1x256xf32>
    %c0_27 = arith.constant 0 : index
    %c0_28 = arith.constant 0 : index
    %c0_29 = arith.constant 0 : index
    %37 = vector.load %arg13[%c0_27, %c0_28, %c0_29] : memref<2x256x128xbf16, #tpu.memory_space<vmem>>, vector<1x256x128xbf16>
    %38 = vector.shape_cast %37 : vector<1x256x128xbf16> to vector<256x128xbf16>
    %c0_30 = arith.constant 0 : index
    %c0_31 = arith.constant 0 : index
    %c0_32 = arith.constant 0 : index
    %39 = vector.load %arg14[%c0_30, %c0_31, %c0_32] : memref<2x1x128xf32, #tpu.memory_space<vmem>>, vector<1x1x128xf32>
    %40 = vector.shape_cast %39 : vector<1x1x128xf32> to vector<1x128xf32>
    %41 = arith.truncf %24 : vector<16x128xf32> to vector<16x128xbf16>
    %cst_33 = arith.constant dense<0.000000e+00> : vector<16x384xf32>
    %42 = tpu.matmul %41, %26, %cst_33 {dimension_numbers = #tpu.dot_dimension_numbers<[1], [0], [0], [1], [0, 0, 1, 1], [], []>} : vector<16x128xbf16>, vector<128x384xbf16>, vector<16x384xf32> -> vector<16x384xf32>
    %43 = vector.broadcast %28 : vector<1x384xf32> to vector<16x384xf32>
    %44 = arith.addf %42, %43 : vector<16x384xf32>
    %45 = vector.extract_strided_slice %44 {offsets = [0, 0], sizes = [16, 128], strides = [1, 1]} : vector<16x384xf32> to vector<16x128xf32>
    %46 = vector.extract_strided_slice %44 {offsets = [0, 128], sizes = [16, 128], strides = [1, 1]} : vector<16x384xf32> to vector<16x128xf32>
    %47 = vector.extract_strided_slice %44 {offsets = [0, 256], sizes = [16, 128], strides = [1, 1]} : vector<16x384xf32> to vector<16x128xf32>
    %c0_34 = arith.constant 0 : index
    %c0_35 = arith.constant 0 : index
    %48 = vector.load %arg2[%c0_34, %c0_35] : memref<2x8xf32, #tpu.memory_space<vmem>>, vector<1x8xf32>
    %49 = vector.extract_strided_slice %45 {offsets = [0, 0], sizes = [8, 64], strides = [1, 1]} : vector<16x128xf32> to vector<8x64xf32>
    %50 = arith.truncf %49 : vector<8x64xf32> to vector<8x64xbf16>
    %51 = vector.extract_strided_slice %46 {offsets = [0, 0], sizes = [8, 64], strides = [1, 1]} : vector<16x128xf32> to vector<8x64xf32>
    %52 = arith.truncf %51 : vector<8x64xf32> to vector<8x64xbf16>
    %53 = vector.extract_strided_slice %47 {offsets = [0, 0], sizes = [8, 64], strides = [1, 1]} : vector<16x128xf32> to vector<8x64xf32>
    %54 = arith.truncf %53 : vector<8x64xf32> to vector<8x64xbf16>
    %cst_36 = arith.constant dense<0.000000e+00> : vector<8x8xf32>
    %55 = tpu.matmul %50, %52, %cst_36 {dimension_numbers = #tpu.dot_dimension_numbers<[1], [1], [0], [0], [0, 0, 1, 0], [], []>} : vector<8x64xbf16>, vector<8x64xbf16>, vector<8x8xf32> -> vector<8x8xf32>
    %cst_37 = arith.constant 1.250000e-01 : f32
    %56 = vector.broadcast %cst_37 : f32 to vector<8x8xf32>
    %57 = arith.mulf %55, %56 : vector<8x8xf32>
    %58 = vector.broadcast %48 : vector<1x8xf32> to vector<8x8xf32>
    %59 = arith.addf %57, %58 : vector<8x8xf32>
    %cst_38 = arith.constant dense<0xFF800000> : vector<8xf32>
    %60 = vector.multi_reduction <maximumf>, %59, %cst_38 [1] : vector<8x8xf32> to vector<8xf32>
    %61 = vector.shape_cast %60 : vector<8xf32> to vector<8x1xf32>
    %62 = vector.broadcast %61 : vector<8x1xf32> to vector<8x8xf32>
    %63 = arith.subf %59, %62 : vector<8x8xf32>
    %64 = math.exp %63 : vector<8x8xf32>
    %cst_39 = arith.constant dense<0.000000e+00> : vector<8xf32>
    %65 = vector.multi_reduction <add>, %64, %cst_39 [1] : vector<8x8xf32> to vector<8xf32>
    %66 = vector.shape_cast %65 : vector<8xf32> to vector<8x1xf32>
    %67 = tpu.reciprocal %66 {approx = true} : vector<8x1xf32> -> vector<8x1xf32>
    %68 = vector.broadcast %67 : vector<8x1xf32> to vector<8x8xf32>
    %69 = arith.mulf %64, %68 : vector<8x8xf32>
    %70 = arith.truncf %69 : vector<8x8xf32> to vector<8x8xbf16>
    %cst_40 = arith.constant dense<0.000000e+00> : vector<8x64xf32>
    %71 = tpu.matmul %70, %54, %cst_40 {dimension_numbers = #tpu.dot_dimension_numbers<[1], [0], [0], [1], [0, 0, 1, 1], [], []>} : vector<8x8xbf16>, vector<8x64xbf16>, vector<8x64xf32> -> vector<8x64xf32>
    %72 = arith.truncf %71 : vector<8x64xf32> to vector<8x64xbf16>
    %73 = vector.extract_strided_slice %30 {offsets = [0, 0], sizes = [64, 128], strides = [1, 1]} : vector<128x128xbf16> to vector<64x128xbf16>
    %cst_41 = arith.constant dense<0.000000e+00> : vector<8x128xf32>
    %74 = tpu.matmul %72, %73, %cst_41 {dimension_numbers = #tpu.dot_dimension_numbers<[1], [0], [0], [1], [0, 0, 1, 1], [], []>} : vector<8x64xbf16>, vector<64x128xbf16>, vector<8x128xf32> -> vector<8x128xf32>
    %75 = vector.extract_strided_slice %45 {offsets = [0, 64], sizes = [8, 64], strides = [1, 1]} : vector<16x128xf32> to vector<8x64xf32>
    %76 = arith.truncf %75 : vector<8x64xf32> to vector<8x64xbf16>
    %77 = vector.extract_strided_slice %46 {offsets = [0, 64], sizes = [8, 64], strides = [1, 1]} : vector<16x128xf32> to vector<8x64xf32>
    %78 = arith.truncf %77 : vector<8x64xf32> to vector<8x64xbf16>
    %79 = vector.extract_strided_slice %47 {offsets = [0, 64], sizes = [8, 64], strides = [1, 1]} : vector<16x128xf32> to vector<8x64xf32>
    %80 = arith.truncf %79 : vector<8x64xf32> to vector<8x64xbf16>
    %cst_42 = arith.constant dense<0.000000e+00> : vector<8x8xf32>
    %81 = tpu.matmul %76, %78, %cst_42 {dimension_numbers = #tpu.dot_dimension_numbers<[1], [1], [0], [0], [0, 0, 1, 0], [], []>} : vector<8x64xbf16>, vector<8x64xbf16>, vector<8x8xf32> -> vector<8x8xf32>
    %cst_43 = arith.constant 1.250000e-01 : f32
    %82 = vector.broadcast %cst_43 : f32 to vector<8x8xf32>
    %83 = arith.mulf %81, %82 : vector<8x8xf32>
    %84 = vector.broadcast %48 : vector<1x8xf32> to vector<8x8xf32>
    %85 = arith.addf %83, %84 : vector<8x8xf32>
    %cst_44 = arith.constant dense<0xFF800000> : vector<8xf32>
    %86 = vector.multi_reduction <maximumf>, %85, %cst_44 [1] : vector<8x8xf32> to vector<8xf32>
    %87 = vector.shape_cast %86 : vector<8xf32> to vector<8x1xf32>
    %88 = vector.broadcast %87 : vector<8x1xf32> to vector<8x8xf32>
    %89 = arith.subf %85, %88 : vector<8x8xf32>
    %90 = math.exp %89 : vector<8x8xf32>
    %cst_45 = arith.constant dense<0.000000e+00> : vector<8xf32>
    %91 = vector.multi_reduction <add>, %90, %cst_45 [1] : vector<8x8xf32> to vector<8xf32>
    %92 = vector.shape_cast %91 : vector<8xf32> to vector<8x1xf32>
    %93 = tpu.reciprocal %92 {approx = true} : vector<8x1xf32> -> vector<8x1xf32>
    %94 = vector.broadcast %93 : vector<8x1xf32> to vector<8x8xf32>
    %95 = arith.mulf %90, %94 : vector<8x8xf32>
    %96 = arith.truncf %95 : vector<8x8xf32> to vector<8x8xbf16>
    %cst_46 = arith.constant dense<0.000000e+00> : vector<8x64xf32>
    %97 = tpu.matmul %96, %80, %cst_46 {dimension_numbers = #tpu.dot_dimension_numbers<[1], [0], [0], [1], [0, 0, 1, 1], [], []>} : vector<8x8xbf16>, vector<8x64xbf16>, vector<8x64xf32> -> vector<8x64xf32>
    %98 = arith.truncf %97 : vector<8x64xf32> to vector<8x64xbf16>
    %99 = vector.extract_strided_slice %30 {offsets = [64, 0], sizes = [64, 128], strides = [1, 1]} : vector<128x128xbf16> to vector<64x128xbf16>
    %cst_47 = arith.constant dense<0.000000e+00> : vector<8x128xf32>
    %100 = tpu.matmul %98, %99, %cst_47 {dimension_numbers = #tpu.dot_dimension_numbers<[1], [0], [0], [1], [0, 0, 1, 1], [], []>} : vector<8x64xbf16>, vector<64x128xbf16>, vector<8x128xf32> -> vector<8x128xf32>
    %101 = arith.addf %74, %100 : vector<8x128xf32>
    %c1 = arith.constant 1 : index
    %c0_48 = arith.constant 0 : index
    %102 = vector.load %arg2[%c1, %c0_48] : memref<2x8xf32, #tpu.memory_space<vmem>>, vector<1x8xf32>
    %103 = vector.extract_strided_slice %45 {offsets = [8, 0], sizes = [8, 64], strides = [1, 1]} : vector<16x128xf32> to vector<8x64xf32>
    %104 = arith.truncf %103 : vector<8x64xf32> to vector<8x64xbf16>
    %105 = vector.extract_strided_slice %46 {offsets = [8, 0], sizes = [8, 64], strides = [1, 1]} : vector<16x128xf32> to vector<8x64xf32>
    %106 = arith.truncf %105 : vector<8x64xf32> to vector<8x64xbf16>
    %107 = vector.extract_strided_slice %47 {offsets = [8, 0], sizes = [8, 64], strides = [1, 1]} : vector<16x128xf32> to vector<8x64xf32>
    %108 = arith.truncf %107 : vector<8x64xf32> to vector<8x64xbf16>
    %cst_49 = arith.constant dense<0.000000e+00> : vector<8x8xf32>
    %109 = tpu.matmul %104, %106, %cst_49 {dimension_numbers = #tpu.dot_dimension_numbers<[1], [1], [0], [0], [0, 0, 1, 0], [], []>} : vector<8x64xbf16>, vector<8x64xbf16>, vector<8x8xf32> -> vector<8x8xf32>
    %cst_50 = arith.constant 1.250000e-01 : f32
    %110 = vector.broadcast %cst_50 : f32 to vector<8x8xf32>
    %111 = arith.mulf %109, %110 : vector<8x8xf32>
    %112 = vector.broadcast %102 : vector<1x8xf32> to vector<8x8xf32>
    %113 = arith.addf %111, %112 : vector<8x8xf32>
    %cst_51 = arith.constant dense<0xFF800000> : vector<8xf32>
    %114 = vector.multi_reduction <maximumf>, %113, %cst_51 [1] : vector<8x8xf32> to vector<8xf32>
    %115 = vector.shape_cast %114 : vector<8xf32> to vector<8x1xf32>
    %116 = vector.broadcast %115 : vector<8x1xf32> to vector<8x8xf32>
    %117 = arith.subf %113, %116 : vector<8x8xf32>
    %118 = math.exp %117 : vector<8x8xf32>
    %cst_52 = arith.constant dense<0.000000e+00> : vector<8xf32>
    %119 = vector.multi_reduction <add>, %118, %cst_52 [1] : vector<8x8xf32> to vector<8xf32>
    %120 = vector.shape_cast %119 : vector<8xf32> to vector<8x1xf32>
    %121 = tpu.reciprocal %120 {approx = true} : vector<8x1xf32> -> vector<8x1xf32>
    %122 = vector.broadcast %121 : vector<8x1xf32> to vector<8x8xf32>
    %123 = arith.mulf %118, %122 : vector<8x8xf32>
    %124 = arith.truncf %123 : vector<8x8xf32> to vector<8x8xbf16>
    %cst_53 = arith.constant dense<0.000000e+00> : vector<8x64xf32>
    %125 = tpu.matmul %124, %108, %cst_53 {dimension_numbers = #tpu.dot_dimension_numbers<[1], [0], [0], [1], [0, 0, 1, 1], [], []>} : vector<8x8xbf16>, vector<8x64xbf16>, vector<8x64xf32> -> vector<8x64xf32>
    %126 = arith.truncf %125 : vector<8x64xf32> to vector<8x64xbf16>
    %127 = vector.extract_strided_slice %30 {offsets = [0, 0], sizes = [64, 128], strides = [1, 1]} : vector<128x128xbf16> to vector<64x128xbf16>
    %cst_54 = arith.constant dense<0.000000e+00> : vector<8x128xf32>
    %128 = tpu.matmul %126, %127, %cst_54 {dimension_numbers = #tpu.dot_dimension_numbers<[1], [0], [0], [1], [0, 0, 1, 1], [], []>} : vector<8x64xbf16>, vector<64x128xbf16>, vector<8x128xf32> -> vector<8x128xf32>
    %129 = vector.extract_strided_slice %45 {offsets = [8, 64], sizes = [8, 64], strides = [1, 1]} : vector<16x128xf32> to vector<8x64xf32>
    %130 = arith.truncf %129 : vector<8x64xf32> to vector<8x64xbf16>
    %131 = vector.extract_strided_slice %46 {offsets = [8, 64], sizes = [8, 64], strides = [1, 1]} : vector<16x128xf32> to vector<8x64xf32>
    %132 = arith.truncf %131 : vector<8x64xf32> to vector<8x64xbf16>
    %133 = vector.extract_strided_slice %47 {offsets = [8, 64], sizes = [8, 64], strides = [1, 1]} : vector<16x128xf32> to vector<8x64xf32>
    %134 = arith.truncf %133 : vector<8x64xf32> to vector<8x64xbf16>
    %cst_55 = arith.constant dense<0.000000e+00> : vector<8x8xf32>
    %135 = tpu.matmul %130, %132, %cst_55 {dimension_numbers = #tpu.dot_dimension_numbers<[1], [1], [0], [0], [0, 0, 1, 0], [], []>} : vector<8x64xbf16>, vector<8x64xbf16>, vector<8x8xf32> -> vector<8x8xf32>
    %cst_56 = arith.constant 1.250000e-01 : f32
    %136 = vector.broadcast %cst_56 : f32 to vector<8x8xf32>
    %137 = arith.mulf %135, %136 : vector<8x8xf32>
    %138 = vector.broadcast %102 : vector<1x8xf32> to vector<8x8xf32>
    %139 = arith.addf %137, %138 : vector<8x8xf32>
    %cst_57 = arith.constant dense<0xFF800000> : vector<8xf32>
    %140 = vector.multi_reduction <maximumf>, %139, %cst_57 [1] : vector<8x8xf32> to vector<8xf32>
    %141 = vector.shape_cast %140 : vector<8xf32> to vector<8x1xf32>
    %142 = vector.broadcast %141 : vector<8x1xf32> to vector<8x8xf32>
    %143 = arith.subf %139, %142 : vector<8x8xf32>
    %144 = math.exp %143 : vector<8x8xf32>
    %cst_58 = arith.constant dense<0.000000e+00> : vector<8xf32>
    %145 = vector.multi_reduction <add>, %144, %cst_58 [1] : vector<8x8xf32> to vector<8xf32>
    %146 = vector.shape_cast %145 : vector<8xf32> to vector<8x1xf32>
    %147 = tpu.reciprocal %146 {approx = true} : vector<8x1xf32> -> vector<8x1xf32>
    %148 = vector.broadcast %147 : vector<8x1xf32> to vector<8x8xf32>
    %149 = arith.mulf %144, %148 : vector<8x8xf32>
    %150 = arith.truncf %149 : vector<8x8xf32> to vector<8x8xbf16>
    %cst_59 = arith.constant dense<0.000000e+00> : vector<8x64xf32>
    %151 = tpu.matmul %150, %134, %cst_59 {dimension_numbers = #tpu.dot_dimension_numbers<[1], [0], [0], [1], [0, 0, 1, 1], [], []>} : vector<8x8xbf16>, vector<8x64xbf16>, vector<8x64xf32> -> vector<8x64xf32>
    %152 = arith.truncf %151 : vector<8x64xf32> to vector<8x64xbf16>
    %153 = vector.extract_strided_slice %30 {offsets = [64, 0], sizes = [64, 128], strides = [1, 1]} : vector<128x128xbf16> to vector<64x128xbf16>
    %cst_60 = arith.constant dense<0.000000e+00> : vector<8x128xf32>
    %154 = tpu.matmul %152, %153, %cst_60 {dimension_numbers = #tpu.dot_dimension_numbers<[1], [0], [0], [1], [0, 0, 1, 1], [], []>} : vector<8x64xbf16>, vector<64x128xbf16>, vector<8x128xf32> -> vector<8x128xf32>
    %155 = arith.addf %128, %154 : vector<8x128xf32>
    %156 = tpu.concatenate %101, %155 in 0 : vector<8x128xf32>, vector<8x128xf32> -> vector<16x128xf32>
    %157 = vector.broadcast %32 : vector<1x128xf32> to vector<16x128xf32>
    %158 = arith.addf %156, %157 : vector<16x128xf32>
    %159 = arith.addf %24, %158 : vector<16x128xf32>
    %c0_61 = arith.constant 0 : index
    %c0_62 = arith.constant 0 : index
    %c0_63 = arith.constant 0 : index
    %160 = vector.load %arg9[%c0_61, %c0_62, %c0_63] : memref<2x1x128xf32, #tpu.memory_space<vmem>>, vector<1x1x128xf32>
    %161 = vector.shape_cast %160 : vector<1x1x128xf32> to vector<1x128xf32>
    %c0_64 = arith.constant 0 : index
    %c0_65 = arith.constant 0 : index
    %c0_66 = arith.constant 0 : index
    %162 = vector.load %arg10[%c0_64, %c0_65, %c0_66] : memref<2x1x128xf32, #tpu.memory_space<vmem>>, vector<1x1x128xf32>
    %163 = vector.shape_cast %162 : vector<1x1x128xf32> to vector<1x128xf32>
    %cst_67 = arith.constant dense<0.000000e+00> : vector<16xf32>
    %164 = vector.multi_reduction <add>, %159, %cst_67 [1] : vector<16x128xf32> to vector<16xf32>
    %165 = vector.shape_cast %164 : vector<16xf32> to vector<16x1xf32>
    %cst_68 = arith.constant 1.280000e+02 : f32
    %166 = vector.broadcast %cst_68 : f32 to vector<16x1xf32>
    %167 = arith.divf %165, %166 : vector<16x1xf32>
    %168 = vector.broadcast %167 : vector<16x1xf32> to vector<16x128xf32>
    %169 = arith.subf %159, %168 : vector<16x128xf32>
    %170 = arith.mulf %169, %169 : vector<16x128xf32>
    %cst_69 = arith.constant dense<0.000000e+00> : vector<16xf32>
    %171 = vector.multi_reduction <add>, %170, %cst_69 [1] : vector<16x128xf32> to vector<16xf32>
    %172 = vector.shape_cast %171 : vector<16xf32> to vector<16x1xf32>
    %cst_70 = arith.constant 1.280000e+02 : f32
    %173 = vector.broadcast %cst_70 : f32 to vector<16x1xf32>
    %174 = arith.divf %172, %173 : vector<16x1xf32>
    %175 = vector.broadcast %167 : vector<16x1xf32> to vector<16x128xf32>
    %176 = arith.subf %159, %175 : vector<16x128xf32>
    %cst_71 = arith.constant 9.99999996E-13 : f32
    %177 = vector.broadcast %cst_71 : f32 to vector<16x1xf32>
    %178 = arith.addf %174, %177 : vector<16x1xf32>
    %179 = math.rsqrt %178 : vector<16x1xf32>
    %180 = vector.broadcast %179 : vector<16x1xf32> to vector<16x128xf32>
    %181 = arith.mulf %176, %180 : vector<16x128xf32>
    %182 = vector.broadcast %161 : vector<1x128xf32> to vector<16x128xf32>
    %183 = arith.mulf %181, %182 : vector<16x128xf32>
    %184 = vector.broadcast %163 : vector<1x128xf32> to vector<16x128xf32>
    %185 = arith.addf %183, %184 : vector<16x128xf32>
    %186 = arith.truncf %185 : vector<16x128xf32> to vector<16x128xbf16>
    %cst_72 = arith.constant dense<0.000000e+00> : vector<16x256xf32>
    %187 = tpu.matmul %186, %34, %cst_72 {dimension_numbers = #tpu.dot_dimension_numbers<[1], [0], [0], [1], [0, 0, 1, 1], [], []>} : vector<16x128xbf16>, vector<128x256xbf16>, vector<16x256xf32> -> vector<16x256xf32>
    %188 = vector.broadcast %36 : vector<1x256xf32> to vector<16x256xf32>
    %189 = arith.addf %187, %188 : vector<16x256xf32>
    %cst_73 = arith.constant 5.000000e-01 : f32
    %190 = vector.broadcast %cst_73 : f32 to vector<16x256xf32>
    %191 = arith.mulf %190, %189 : vector<16x256xf32>
    %cst_74 = arith.constant 4.471500e-02 : f32
    %192 = vector.broadcast %cst_74 : f32 to vector<16x256xf32>
    %193 = arith.mulf %192, %189 : vector<16x256xf32>
    %194 = arith.mulf %193, %189 : vector<16x256xf32>
    %195 = arith.mulf %194, %189 : vector<16x256xf32>
    %196 = arith.addf %189, %195 : vector<16x256xf32>
    %cst_75 = arith.constant 0.797884583 : f32
    %197 = vector.broadcast %cst_75 : f32 to vector<16x256xf32>
    %198 = arith.mulf %197, %196 : vector<16x256xf32>
    %199 = math.tanh %198 : vector<16x256xf32>
    %cst_76 = arith.constant 1.000000e+00 : f32
    %200 = vector.broadcast %cst_76 : f32 to vector<16x256xf32>
    %201 = arith.addf %200, %199 : vector<16x256xf32>
    %202 = arith.mulf %191, %201 : vector<16x256xf32>
    %203 = arith.truncf %202 : vector<16x256xf32> to vector<16x256xbf16>
    %cst_77 = arith.constant dense<0.000000e+00> : vector<16x128xf32>
    %204 = tpu.matmul %203, %38, %cst_77 {dimension_numbers = #tpu.dot_dimension_numbers<[1], [0], [0], [1], [0, 0, 1, 1], [], []>} : vector<16x256xbf16>, vector<256x128xbf16>, vector<16x128xf32> -> vector<16x128xf32>
    %205 = vector.broadcast %40 : vector<1x128xf32> to vector<16x128xf32>
    %206 = arith.addf %204, %205 : vector<16x128xf32>
    %207 = arith.addf %185, %206 : vector<16x128xf32>
    %c0_78 = arith.constant 0 : index
    %c0_79 = arith.constant 0 : index
    %c0_80 = arith.constant 0 : index
    %208 = vector.load %arg15[%c0_78, %c0_79, %c0_80] : memref<2x1x128xf32, #tpu.memory_space<vmem>>, vector<1x1x128xf32>
    %209 = vector.shape_cast %208 : vector<1x1x128xf32> to vector<1x128xf32>
    %c0_81 = arith.constant 0 : index
    %c0_82 = arith.constant 0 : index
    %c0_83 = arith.constant 0 : index
    %210 = vector.load %arg16[%c0_81, %c0_82, %c0_83] : memref<2x1x128xf32, #tpu.memory_space<vmem>>, vector<1x1x128xf32>
    %211 = vector.shape_cast %210 : vector<1x1x128xf32> to vector<1x128xf32>
    %cst_84 = arith.constant dense<0.000000e+00> : vector<16xf32>
    %212 = vector.multi_reduction <add>, %207, %cst_84 [1] : vector<16x128xf32> to vector<16xf32>
    %213 = vector.shape_cast %212 : vector<16xf32> to vector<16x1xf32>
    %cst_85 = arith.constant 1.280000e+02 : f32
    %214 = vector.broadcast %cst_85 : f32 to vector<16x1xf32>
    %215 = arith.divf %213, %214 : vector<16x1xf32>
    %216 = vector.broadcast %215 : vector<16x1xf32> to vector<16x128xf32>
    %217 = arith.subf %207, %216 : vector<16x128xf32>
    %218 = arith.mulf %217, %217 : vector<16x128xf32>
    %cst_86 = arith.constant dense<0.000000e+00> : vector<16xf32>
    %219 = vector.multi_reduction <add>, %218, %cst_86 [1] : vector<16x128xf32> to vector<16xf32>
    %220 = vector.shape_cast %219 : vector<16xf32> to vector<16x1xf32>
    %cst_87 = arith.constant 1.280000e+02 : f32
    %221 = vector.broadcast %cst_87 : f32 to vector<16x1xf32>
    %222 = arith.divf %220, %221 : vector<16x1xf32>
    %223 = vector.broadcast %215 : vector<16x1xf32> to vector<16x128xf32>
    %224 = arith.subf %207, %223 : vector<16x128xf32>
    %cst_88 = arith.constant 9.99999996E-13 : f32
    %225 = vector.broadcast %cst_88 : f32 to vector<16x1xf32>
    %226 = arith.addf %222, %225 : vector<16x1xf32>
    %227 = math.rsqrt %226 : vector<16x1xf32>
    %228 = vector.broadcast %227 : vector<16x1xf32> to vector<16x128xf32>
    %229 = arith.mulf %224, %228 : vector<16x128xf32>
    %230 = vector.broadcast %209 : vector<1x128xf32> to vector<16x128xf32>
    %231 = arith.mulf %229, %230 : vector<16x128xf32>
    %232 = vector.broadcast %211 : vector<1x128xf32> to vector<16x128xf32>
    %233 = arith.addf %231, %232 : vector<16x128xf32>
    %c1_89 = arith.constant 1 : index
    %c0_90 = arith.constant 0 : index
    %c0_91 = arith.constant 0 : index
    %234 = vector.load %arg5[%c1_89, %c0_90, %c0_91] : memref<2x128x384xbf16, #tpu.memory_space<vmem>>, vector<1x128x384xbf16>
    %235 = vector.shape_cast %234 : vector<1x128x384xbf16> to vector<128x384xbf16>
    %c1_92 = arith.constant 1 : index
    %c0_93 = arith.constant 0 : index
    %c0_94 = arith.constant 0 : index
    %236 = vector.load %arg6[%c1_92, %c0_93, %c0_94] : memref<2x1x384xf32, #tpu.memory_space<vmem>>, vector<1x1x384xf32>
    %237 = vector.shape_cast %236 : vector<1x1x384xf32> to vector<1x384xf32>
    %c1_95 = arith.constant 1 : index
    %c0_96 = arith.constant 0 : index
    %c0_97 = arith.constant 0 : index
    %238 = vector.load %arg7[%c1_95, %c0_96, %c0_97] : memref<2x128x128xbf16, #tpu.memory_space<vmem>>, vector<1x128x128xbf16>
    %239 = vector.shape_cast %238 : vector<1x128x128xbf16> to vector<128x128xbf16>
    %c1_98 = arith.constant 1 : index
    %c0_99 = arith.constant 0 : index
    %c0_100 = arith.constant 0 : index
    %240 = vector.load %arg8[%c1_98, %c0_99, %c0_100] : memref<2x1x128xf32, #tpu.memory_space<vmem>>, vector<1x1x128xf32>
    %241 = vector.shape_cast %240 : vector<1x1x128xf32> to vector<1x128xf32>
    %c1_101 = arith.constant 1 : index
    %c0_102 = arith.constant 0 : index
    %c0_103 = arith.constant 0 : index
    %242 = vector.load %arg11[%c1_101, %c0_102, %c0_103] : memref<2x128x256xbf16, #tpu.memory_space<vmem>>, vector<1x128x256xbf16>
    %243 = vector.shape_cast %242 : vector<1x128x256xbf16> to vector<128x256xbf16>
    %c1_104 = arith.constant 1 : index
    %c0_105 = arith.constant 0 : index
    %c0_106 = arith.constant 0 : index
    %244 = vector.load %arg12[%c1_104, %c0_105, %c0_106] : memref<2x1x256xf32, #tpu.memory_space<vmem>>, vector<1x1x256xf32>
    %245 = vector.shape_cast %244 : vector<1x1x256xf32> to vector<1x256xf32>
    %c1_107 = arith.constant 1 : index
    %c0_108 = arith.constant 0 : index
    %c0_109 = arith.constant 0 : index
    %246 = vector.load %arg13[%c1_107, %c0_108, %c0_109] : memref<2x256x128xbf16, #tpu.memory_space<vmem>>, vector<1x256x128xbf16>
    %247 = vector.shape_cast %246 : vector<1x256x128xbf16> to vector<256x128xbf16>
    %c1_110 = arith.constant 1 : index
    %c0_111 = arith.constant 0 : index
    %c0_112 = arith.constant 0 : index
    %248 = vector.load %arg14[%c1_110, %c0_111, %c0_112] : memref<2x1x128xf32, #tpu.memory_space<vmem>>, vector<1x1x128xf32>
    %249 = vector.shape_cast %248 : vector<1x1x128xf32> to vector<1x128xf32>
    %250 = arith.truncf %233 : vector<16x128xf32> to vector<16x128xbf16>
    %cst_113 = arith.constant dense<0.000000e+00> : vector<16x384xf32>
    %251 = tpu.matmul %250, %235, %cst_113 {dimension_numbers = #tpu.dot_dimension_numbers<[1], [0], [0], [1], [0, 0, 1, 1], [], []>} : vector<16x128xbf16>, vector<128x384xbf16>, vector<16x384xf32> -> vector<16x384xf32>
    %252 = vector.broadcast %237 : vector<1x384xf32> to vector<16x384xf32>
    %253 = arith.addf %251, %252 : vector<16x384xf32>
    %254 = vector.extract_strided_slice %253 {offsets = [0, 0], sizes = [16, 128], strides = [1, 1]} : vector<16x384xf32> to vector<16x128xf32>
    %255 = vector.extract_strided_slice %253 {offsets = [0, 128], sizes = [16, 128], strides = [1, 1]} : vector<16x384xf32> to vector<16x128xf32>
    %256 = vector.extract_strided_slice %253 {offsets = [0, 256], sizes = [16, 128], strides = [1, 1]} : vector<16x384xf32> to vector<16x128xf32>
    %c0_114 = arith.constant 0 : index
    %c0_115 = arith.constant 0 : index
    %257 = vector.load %arg2[%c0_114, %c0_115] : memref<2x8xf32, #tpu.memory_space<vmem>>, vector<1x8xf32>
    %258 = vector.extract_strided_slice %254 {offsets = [0, 0], sizes = [8, 64], strides = [1, 1]} : vector<16x128xf32> to vector<8x64xf32>
    %259 = arith.truncf %258 : vector<8x64xf32> to vector<8x64xbf16>
    %260 = vector.extract_strided_slice %255 {offsets = [0, 0], sizes = [8, 64], strides = [1, 1]} : vector<16x128xf32> to vector<8x64xf32>
    %261 = arith.truncf %260 : vector<8x64xf32> to vector<8x64xbf16>
    %262 = vector.extract_strided_slice %256 {offsets = [0, 0], sizes = [8, 64], strides = [1, 1]} : vector<16x128xf32> to vector<8x64xf32>
    %263 = arith.truncf %262 : vector<8x64xf32> to vector<8x64xbf16>
    %cst_116 = arith.constant dense<0.000000e+00> : vector<8x8xf32>
    %264 = tpu.matmul %259, %261, %cst_116 {dimension_numbers = #tpu.dot_dimension_numbers<[1], [1], [0], [0], [0, 0, 1, 0], [], []>} : vector<8x64xbf16>, vector<8x64xbf16>, vector<8x8xf32> -> vector<8x8xf32>
    %cst_117 = arith.constant 1.250000e-01 : f32
    %265 = vector.broadcast %cst_117 : f32 to vector<8x8xf32>
    %266 = arith.mulf %264, %265 : vector<8x8xf32>
    %267 = vector.broadcast %257 : vector<1x8xf32> to vector<8x8xf32>
    %268 = arith.addf %266, %267 : vector<8x8xf32>
    %cst_118 = arith.constant dense<0xFF800000> : vector<8xf32>
    %269 = vector.multi_reduction <maximumf>, %268, %cst_118 [1] : vector<8x8xf32> to vector<8xf32>
    %270 = vector.shape_cast %269 : vector<8xf32> to vector<8x1xf32>
    %271 = vector.broadcast %270 : vector<8x1xf32> to vector<8x8xf32>
    %272 = arith.subf %268, %271 : vector<8x8xf32>
    %273 = math.exp %272 : vector<8x8xf32>
    %cst_119 = arith.constant dense<0.000000e+00> : vector<8xf32>
    %274 = vector.multi_reduction <add>, %273, %cst_119 [1] : vector<8x8xf32> to vector<8xf32>
    %275 = vector.shape_cast %274 : vector<8xf32> to vector<8x1xf32>
    %276 = tpu.reciprocal %275 {approx = true} : vector<8x1xf32> -> vector<8x1xf32>
    %277 = vector.broadcast %276 : vector<8x1xf32> to vector<8x8xf32>
    %278 = arith.mulf %273, %277 : vector<8x8xf32>
    %279 = arith.truncf %278 : vector<8x8xf32> to vector<8x8xbf16>
    %cst_120 = arith.constant dense<0.000000e+00> : vector<8x64xf32>
    %280 = tpu.matmul %279, %263, %cst_120 {dimension_numbers = #tpu.dot_dimension_numbers<[1], [0], [0], [1], [0, 0, 1, 1], [], []>} : vector<8x8xbf16>, vector<8x64xbf16>, vector<8x64xf32> -> vector<8x64xf32>
    %281 = arith.truncf %280 : vector<8x64xf32> to vector<8x64xbf16>
    %282 = vector.extract_strided_slice %239 {offsets = [0, 0], sizes = [64, 128], strides = [1, 1]} : vector<128x128xbf16> to vector<64x128xbf16>
    %cst_121 = arith.constant dense<0.000000e+00> : vector<8x128xf32>
    %283 = tpu.matmul %281, %282, %cst_121 {dimension_numbers = #tpu.dot_dimension_numbers<[1], [0], [0], [1], [0, 0, 1, 1], [], []>} : vector<8x64xbf16>, vector<64x128xbf16>, vector<8x128xf32> -> vector<8x128xf32>
    %284 = vector.extract_strided_slice %254 {offsets = [0, 64], sizes = [8, 64], strides = [1, 1]} : vector<16x128xf32> to vector<8x64xf32>
    %285 = arith.truncf %284 : vector<8x64xf32> to vector<8x64xbf16>
    %286 = vector.extract_strided_slice %255 {offsets = [0, 64], sizes = [8, 64], strides = [1, 1]} : vector<16x128xf32> to vector<8x64xf32>
    %287 = arith.truncf %286 : vector<8x64xf32> to vector<8x64xbf16>
    %288 = vector.extract_strided_slice %256 {offsets = [0, 64], sizes = [8, 64], strides = [1, 1]} : vector<16x128xf32> to vector<8x64xf32>
    %289 = arith.truncf %288 : vector<8x64xf32> to vector<8x64xbf16>
    %cst_122 = arith.constant dense<0.000000e+00> : vector<8x8xf32>
    %290 = tpu.matmul %285, %287, %cst_122 {dimension_numbers = #tpu.dot_dimension_numbers<[1], [1], [0], [0], [0, 0, 1, 0], [], []>} : vector<8x64xbf16>, vector<8x64xbf16>, vector<8x8xf32> -> vector<8x8xf32>
    %cst_123 = arith.constant 1.250000e-01 : f32
    %291 = vector.broadcast %cst_123 : f32 to vector<8x8xf32>
    %292 = arith.mulf %290, %291 : vector<8x8xf32>
    %293 = vector.broadcast %257 : vector<1x8xf32> to vector<8x8xf32>
    %294 = arith.addf %292, %293 : vector<8x8xf32>
    %cst_124 = arith.constant dense<0xFF800000> : vector<8xf32>
    %295 = vector.multi_reduction <maximumf>, %294, %cst_124 [1] : vector<8x8xf32> to vector<8xf32>
    %296 = vector.shape_cast %295 : vector<8xf32> to vector<8x1xf32>
    %297 = vector.broadcast %296 : vector<8x1xf32> to vector<8x8xf32>
    %298 = arith.subf %294, %297 : vector<8x8xf32>
    %299 = math.exp %298 : vector<8x8xf32>
    %cst_125 = arith.constant dense<0.000000e+00> : vector<8xf32>
    %300 = vector.multi_reduction <add>, %299, %cst_125 [1] : vector<8x8xf32> to vector<8xf32>
    %301 = vector.shape_cast %300 : vector<8xf32> to vector<8x1xf32>
    %302 = tpu.reciprocal %301 {approx = true} : vector<8x1xf32> -> vector<8x1xf32>
    %303 = vector.broadcast %302 : vector<8x1xf32> to vector<8x8xf32>
    %304 = arith.mulf %299, %303 : vector<8x8xf32>
    %305 = arith.truncf %304 : vector<8x8xf32> to vector<8x8xbf16>
    %cst_126 = arith.constant dense<0.000000e+00> : vector<8x64xf32>
    %306 = tpu.matmul %305, %289, %cst_126 {dimension_numbers = #tpu.dot_dimension_numbers<[1], [0], [0], [1], [0, 0, 1, 1], [], []>} : vector<8x8xbf16>, vector<8x64xbf16>, vector<8x64xf32> -> vector<8x64xf32>
    %307 = arith.truncf %306 : vector<8x64xf32> to vector<8x64xbf16>
    %308 = vector.extract_strided_slice %239 {offsets = [64, 0], sizes = [64, 128], strides = [1, 1]} : vector<128x128xbf16> to vector<64x128xbf16>
    %cst_127 = arith.constant dense<0.000000e+00> : vector<8x128xf32>
    %309 = tpu.matmul %307, %308, %cst_127 {dimension_numbers = #tpu.dot_dimension_numbers<[1], [0], [0], [1], [0, 0, 1, 1], [], []>} : vector<8x64xbf16>, vector<64x128xbf16>, vector<8x128xf32> -> vector<8x128xf32>
    %310 = arith.addf %283, %309 : vector<8x128xf32>
    %c1_128 = arith.constant 1 : index
    %c0_129 = arith.constant 0 : index
    %311 = vector.load %arg2[%c1_128, %c0_129] : memref<2x8xf32, #tpu.memory_space<vmem>>, vector<1x8xf32>
    %312 = vector.extract_strided_slice %254 {offsets = [8, 0], sizes = [8, 64], strides = [1, 1]} : vector<16x128xf32> to vector<8x64xf32>
    %313 = arith.truncf %312 : vector<8x64xf32> to vector<8x64xbf16>
    %314 = vector.extract_strided_slice %255 {offsets = [8, 0], sizes = [8, 64], strides = [1, 1]} : vector<16x128xf32> to vector<8x64xf32>
    %315 = arith.truncf %314 : vector<8x64xf32> to vector<8x64xbf16>
    %316 = vector.extract_strided_slice %256 {offsets = [8, 0], sizes = [8, 64], strides = [1, 1]} : vector<16x128xf32> to vector<8x64xf32>
    %317 = arith.truncf %316 : vector<8x64xf32> to vector<8x64xbf16>
    %cst_130 = arith.constant dense<0.000000e+00> : vector<8x8xf32>
    %318 = tpu.matmul %313, %315, %cst_130 {dimension_numbers = #tpu.dot_dimension_numbers<[1], [1], [0], [0], [0, 0, 1, 0], [], []>} : vector<8x64xbf16>, vector<8x64xbf16>, vector<8x8xf32> -> vector<8x8xf32>
    %cst_131 = arith.constant 1.250000e-01 : f32
    %319 = vector.broadcast %cst_131 : f32 to vector<8x8xf32>
    %320 = arith.mulf %318, %319 : vector<8x8xf32>
    %321 = vector.broadcast %311 : vector<1x8xf32> to vector<8x8xf32>
    %322 = arith.addf %320, %321 : vector<8x8xf32>
    %cst_132 = arith.constant dense<0xFF800000> : vector<8xf32>
    %323 = vector.multi_reduction <maximumf>, %322, %cst_132 [1] : vector<8x8xf32> to vector<8xf32>
    %324 = vector.shape_cast %323 : vector<8xf32> to vector<8x1xf32>
    %325 = vector.broadcast %324 : vector<8x1xf32> to vector<8x8xf32>
    %326 = arith.subf %322, %325 : vector<8x8xf32>
    %327 = math.exp %326 : vector<8x8xf32>
    %cst_133 = arith.constant dense<0.000000e+00> : vector<8xf32>
    %328 = vector.multi_reduction <add>, %327, %cst_133 [1] : vector<8x8xf32> to vector<8xf32>
    %329 = vector.shape_cast %328 : vector<8xf32> to vector<8x1xf32>
    %330 = tpu.reciprocal %329 {approx = true} : vector<8x1xf32> -> vector<8x1xf32>
    %331 = vector.broadcast %330 : vector<8x1xf32> to vector<8x8xf32>
    %332 = arith.mulf %327, %331 : vector<8x8xf32>
    %333 = arith.truncf %332 : vector<8x8xf32> to vector<8x8xbf16>
    %cst_134 = arith.constant dense<0.000000e+00> : vector<8x64xf32>
    %334 = tpu.matmul %333, %317, %cst_134 {dimension_numbers = #tpu.dot_dimension_numbers<[1], [0], [0], [1], [0, 0, 1, 1], [], []>} : vector<8x8xbf16>, vector<8x64xbf16>, vector<8x64xf32> -> vector<8x64xf32>
    %335 = arith.truncf %334 : vector<8x64xf32> to vector<8x64xbf16>
    %336 = vector.extract_strided_slice %239 {offsets = [0, 0], sizes = [64, 128], strides = [1, 1]} : vector<128x128xbf16> to vector<64x128xbf16>
    %cst_135 = arith.constant dense<0.000000e+00> : vector<8x128xf32>
    %337 = tpu.matmul %335, %336, %cst_135 {dimension_numbers = #tpu.dot_dimension_numbers<[1], [0], [0], [1], [0, 0, 1, 1], [], []>} : vector<8x64xbf16>, vector<64x128xbf16>, vector<8x128xf32> -> vector<8x128xf32>
    %338 = vector.extract_strided_slice %254 {offsets = [8, 64], sizes = [8, 64], strides = [1, 1]} : vector<16x128xf32> to vector<8x64xf32>
    %339 = arith.truncf %338 : vector<8x64xf32> to vector<8x64xbf16>
    %340 = vector.extract_strided_slice %255 {offsets = [8, 64], sizes = [8, 64], strides = [1, 1]} : vector<16x128xf32> to vector<8x64xf32>
    %341 = arith.truncf %340 : vector<8x64xf32> to vector<8x64xbf16>
    %342 = vector.extract_strided_slice %256 {offsets = [8, 64], sizes = [8, 64], strides = [1, 1]} : vector<16x128xf32> to vector<8x64xf32>
    %343 = arith.truncf %342 : vector<8x64xf32> to vector<8x64xbf16>
    %cst_136 = arith.constant dense<0.000000e+00> : vector<8x8xf32>
    %344 = tpu.matmul %339, %341, %cst_136 {dimension_numbers = #tpu.dot_dimension_numbers<[1], [1], [0], [0], [0, 0, 1, 0], [], []>} : vector<8x64xbf16>, vector<8x64xbf16>, vector<8x8xf32> -> vector<8x8xf32>
    %cst_137 = arith.constant 1.250000e-01 : f32
    %345 = vector.broadcast %cst_137 : f32 to vector<8x8xf32>
    %346 = arith.mulf %344, %345 : vector<8x8xf32>
    %347 = vector.broadcast %311 : vector<1x8xf32> to vector<8x8xf32>
    %348 = arith.addf %346, %347 : vector<8x8xf32>
    %cst_138 = arith.constant dense<0xFF800000> : vector<8xf32>
    %349 = vector.multi_reduction <maximumf>, %348, %cst_138 [1] : vector<8x8xf32> to vector<8xf32>
    %350 = vector.shape_cast %349 : vector<8xf32> to vector<8x1xf32>
    %351 = vector.broadcast %350 : vector<8x1xf32> to vector<8x8xf32>
    %352 = arith.subf %348, %351 : vector<8x8xf32>
    %353 = math.exp %352 : vector<8x8xf32>
    %cst_139 = arith.constant dense<0.000000e+00> : vector<8xf32>
    %354 = vector.multi_reduction <add>, %353, %cst_139 [1] : vector<8x8xf32> to vector<8xf32>
    %355 = vector.shape_cast %354 : vector<8xf32> to vector<8x1xf32>
    %356 = tpu.reciprocal %355 {approx = true} : vector<8x1xf32> -> vector<8x1xf32>
    %357 = vector.broadcast %356 : vector<8x1xf32> to vector<8x8xf32>
    %358 = arith.mulf %353, %357 : vector<8x8xf32>
    %359 = arith.truncf %358 : vector<8x8xf32> to vector<8x8xbf16>
    %cst_140 = arith.constant dense<0.000000e+00> : vector<8x64xf32>
    %360 = tpu.matmul %359, %343, %cst_140 {dimension_numbers = #tpu.dot_dimension_numbers<[1], [0], [0], [1], [0, 0, 1, 1], [], []>} : vector<8x8xbf16>, vector<8x64xbf16>, vector<8x64xf32> -> vector<8x64xf32>
    %361 = arith.truncf %360 : vector<8x64xf32> to vector<8x64xbf16>
    %362 = vector.extract_strided_slice %239 {offsets = [64, 0], sizes = [64, 128], strides = [1, 1]} : vector<128x128xbf16> to vector<64x128xbf16>
    %cst_141 = arith.constant dense<0.000000e+00> : vector<8x128xf32>
    %363 = tpu.matmul %361, %362, %cst_141 {dimension_numbers = #tpu.dot_dimension_numbers<[1], [0], [0], [1], [0, 0, 1, 1], [], []>} : vector<8x64xbf16>, vector<64x128xbf16>, vector<8x128xf32> -> vector<8x128xf32>
    %364 = arith.addf %337, %363 : vector<8x128xf32>
    %365 = tpu.concatenate %310, %364 in 0 : vector<8x128xf32>, vector<8x128xf32> -> vector<16x128xf32>
    %366 = vector.broadcast %241 : vector<1x128xf32> to vector<16x128xf32>
    %367 = arith.addf %365, %366 : vector<16x128xf32>
    %368 = arith.addf %233, %367 : vector<16x128xf32>
    %c1_142 = arith.constant 1 : index
    %c0_143 = arith.constant 0 : index
    %c0_144 = arith.constant 0 : index
    %369 = vector.load %arg9[%c1_142, %c0_143, %c0_144] : memref<2x1x128xf32, #tpu.memory_space<vmem>>, vector<1x1x128xf32>
    %370 = vector.shape_cast %369 : vector<1x1x128xf32> to vector<1x128xf32>
    %c1_145 = arith.constant 1 : index
    %c0_146 = arith.constant 0 : index
    %c0_147 = arith.constant 0 : index
    %371 = vector.load %arg10[%c1_145, %c0_146, %c0_147] : memref<2x1x128xf32, #tpu.memory_space<vmem>>, vector<1x1x128xf32>
    %372 = vector.shape_cast %371 : vector<1x1x128xf32> to vector<1x128xf32>
    %cst_148 = arith.constant dense<0.000000e+00> : vector<16xf32>
    %373 = vector.multi_reduction <add>, %368, %cst_148 [1] : vector<16x128xf32> to vector<16xf32>
    %374 = vector.shape_cast %373 : vector<16xf32> to vector<16x1xf32>
    %cst_149 = arith.constant 1.280000e+02 : f32
    %375 = vector.broadcast %cst_149 : f32 to vector<16x1xf32>
    %376 = arith.divf %374, %375 : vector<16x1xf32>
    %377 = vector.broadcast %376 : vector<16x1xf32> to vector<16x128xf32>
    %378 = arith.subf %368, %377 : vector<16x128xf32>
    %379 = arith.mulf %378, %378 : vector<16x128xf32>
    %cst_150 = arith.constant dense<0.000000e+00> : vector<16xf32>
    %380 = vector.multi_reduction <add>, %379, %cst_150 [1] : vector<16x128xf32> to vector<16xf32>
    %381 = vector.shape_cast %380 : vector<16xf32> to vector<16x1xf32>
    %cst_151 = arith.constant 1.280000e+02 : f32
    %382 = vector.broadcast %cst_151 : f32 to vector<16x1xf32>
    %383 = arith.divf %381, %382 : vector<16x1xf32>
    %384 = vector.broadcast %376 : vector<16x1xf32> to vector<16x128xf32>
    %385 = arith.subf %368, %384 : vector<16x128xf32>
    %cst_152 = arith.constant 9.99999996E-13 : f32
    %386 = vector.broadcast %cst_152 : f32 to vector<16x1xf32>
    %387 = arith.addf %383, %386 : vector<16x1xf32>
    %388 = math.rsqrt %387 : vector<16x1xf32>
    %389 = vector.broadcast %388 : vector<16x1xf32> to vector<16x128xf32>
    %390 = arith.mulf %385, %389 : vector<16x128xf32>
    %391 = vector.broadcast %370 : vector<1x128xf32> to vector<16x128xf32>
    %392 = arith.mulf %390, %391 : vector<16x128xf32>
    %393 = vector.broadcast %372 : vector<1x128xf32> to vector<16x128xf32>
    %394 = arith.addf %392, %393 : vector<16x128xf32>
    %395 = arith.truncf %394 : vector<16x128xf32> to vector<16x128xbf16>
    %cst_153 = arith.constant dense<0.000000e+00> : vector<16x256xf32>
    %396 = tpu.matmul %395, %243, %cst_153 {dimension_numbers = #tpu.dot_dimension_numbers<[1], [0], [0], [1], [0, 0, 1, 1], [], []>} : vector<16x128xbf16>, vector<128x256xbf16>, vector<16x256xf32> -> vector<16x256xf32>
    %397 = vector.broadcast %245 : vector<1x256xf32> to vector<16x256xf32>
    %398 = arith.addf %396, %397 : vector<16x256xf32>
    %cst_154 = arith.constant 5.000000e-01 : f32
    %399 = vector.broadcast %cst_154 : f32 to vector<16x256xf32>
    %400 = arith.mulf %399, %398 : vector<16x256xf32>
    %cst_155 = arith.constant 4.471500e-02 : f32
    %401 = vector.broadcast %cst_155 : f32 to vector<16x256xf32>
    %402 = arith.mulf %401, %398 : vector<16x256xf32>
    %403 = arith.mulf %402, %398 : vector<16x256xf32>
    %404 = arith.mulf %403, %398 : vector<16x256xf32>
    %405 = arith.addf %398, %404 : vector<16x256xf32>
    %cst_156 = arith.constant 0.797884583 : f32
    %406 = vector.broadcast %cst_156 : f32 to vector<16x256xf32>
    %407 = arith.mulf %406, %405 : vector<16x256xf32>
    %408 = math.tanh %407 : vector<16x256xf32>
    %cst_157 = arith.constant 1.000000e+00 : f32
    %409 = vector.broadcast %cst_157 : f32 to vector<16x256xf32>
    %410 = arith.addf %409, %408 : vector<16x256xf32>
    %411 = arith.mulf %400, %410 : vector<16x256xf32>
    %412 = arith.truncf %411 : vector<16x256xf32> to vector<16x256xbf16>
    %cst_158 = arith.constant dense<0.000000e+00> : vector<16x128xf32>
    %413 = tpu.matmul %412, %247, %cst_158 {dimension_numbers = #tpu.dot_dimension_numbers<[1], [0], [0], [1], [0, 0, 1, 1], [], []>} : vector<16x256xbf16>, vector<256x128xbf16>, vector<16x128xf32> -> vector<16x128xf32>
    %414 = vector.broadcast %249 : vector<1x128xf32> to vector<16x128xf32>
    %415 = arith.addf %413, %414 : vector<16x128xf32>
    %416 = arith.addf %394, %415 : vector<16x128xf32>
    %c1_159 = arith.constant 1 : index
    %c0_160 = arith.constant 0 : index
    %c0_161 = arith.constant 0 : index
    %417 = vector.load %arg15[%c1_159, %c0_160, %c0_161] : memref<2x1x128xf32, #tpu.memory_space<vmem>>, vector<1x1x128xf32>
    %418 = vector.shape_cast %417 : vector<1x1x128xf32> to vector<1x128xf32>
    %c1_162 = arith.constant 1 : index
    %c0_163 = arith.constant 0 : index
    %c0_164 = arith.constant 0 : index
    %419 = vector.load %arg16[%c1_162, %c0_163, %c0_164] : memref<2x1x128xf32, #tpu.memory_space<vmem>>, vector<1x1x128xf32>
    %420 = vector.shape_cast %419 : vector<1x1x128xf32> to vector<1x128xf32>
    %cst_165 = arith.constant dense<0.000000e+00> : vector<16xf32>
    %421 = vector.multi_reduction <add>, %416, %cst_165 [1] : vector<16x128xf32> to vector<16xf32>
    %422 = vector.shape_cast %421 : vector<16xf32> to vector<16x1xf32>
    %cst_166 = arith.constant 1.280000e+02 : f32
    %423 = vector.broadcast %cst_166 : f32 to vector<16x1xf32>
    %424 = arith.divf %422, %423 : vector<16x1xf32>
    %425 = vector.broadcast %424 : vector<16x1xf32> to vector<16x128xf32>
    %426 = arith.subf %416, %425 : vector<16x128xf32>
    %427 = arith.mulf %426, %426 : vector<16x128xf32>
    %cst_167 = arith.constant dense<0.000000e+00> : vector<16xf32>
    %428 = vector.multi_reduction <add>, %427, %cst_167 [1] : vector<16x128xf32> to vector<16xf32>
    %429 = vector.shape_cast %428 : vector<16xf32> to vector<16x1xf32>
    %cst_168 = arith.constant 1.280000e+02 : f32
    %430 = vector.broadcast %cst_168 : f32 to vector<16x1xf32>
    %431 = arith.divf %429, %430 : vector<16x1xf32>
    %432 = vector.broadcast %424 : vector<16x1xf32> to vector<16x128xf32>
    %433 = arith.subf %416, %432 : vector<16x128xf32>
    %cst_169 = arith.constant 9.99999996E-13 : f32
    %434 = vector.broadcast %cst_169 : f32 to vector<16x1xf32>
    %435 = arith.addf %431, %434 : vector<16x1xf32>
    %436 = math.rsqrt %435 : vector<16x1xf32>
    %437 = vector.broadcast %436 : vector<16x1xf32> to vector<16x128xf32>
    %438 = arith.mulf %433, %437 : vector<16x128xf32>
    %439 = vector.broadcast %418 : vector<1x128xf32> to vector<16x128xf32>
    %440 = arith.mulf %438, %439 : vector<16x128xf32>
    %441 = vector.broadcast %420 : vector<1x128xf32> to vector<16x128xf32>
    %442 = arith.addf %440, %441 : vector<16x128xf32>
    %443 = vector.extract_strided_slice %442 {offsets = [0, 0], sizes = [1, 128], strides = [1, 1]} : vector<16x128xf32> to vector<1x128xf32>
    %444 = vector.extract_strided_slice %442 {offsets = [8, 0], sizes = [1, 128], strides = [1, 1]} : vector<16x128xf32> to vector<1x128xf32>
    %445 = tpu.concatenate %443, %444 in 0 : vector<1x128xf32>, vector<1x128xf32> -> vector<2x128xf32>
    %c0_170 = arith.constant 0 : index
    %c0_171 = arith.constant 0 : index
    %446 = vector.load %arg17[%c0_170, %c0_171] : memref<128x128xbf16, #tpu.memory_space<vmem>>, vector<128x128xbf16>
    %c0_172 = arith.constant 0 : index
    %c0_173 = arith.constant 0 : index
    %447 = vector.load %arg18[%c0_172, %c0_173] : memref<1x128xf32, #tpu.memory_space<vmem>>, vector<1x128xf32>
    %448 = arith.truncf %445 : vector<2x128xf32> to vector<2x128xbf16>
    %cst_174 = arith.constant dense<0.000000e+00> : vector<2x128xf32>
    %449 = tpu.matmul %448, %446, %cst_174 {dimension_numbers = #tpu.dot_dimension_numbers<[1], [0], [0], [1], [0, 0, 1, 1], [], []>} : vector<2x128xbf16>, vector<128x128xbf16>, vector<2x128xf32> -> vector<2x128xf32>
    %450 = vector.broadcast %447 : vector<1x128xf32> to vector<2x128xf32>
    %451 = arith.addf %449, %450 : vector<2x128xf32>
    %452 = math.tanh %451 : vector<2x128xf32>
    %c0_175 = arith.constant 0 : index
    %c0_176 = arith.constant 0 : index
    %453 = vector.load %arg19[%c0_175, %c0_176] : memref<128x128xbf16, #tpu.memory_space<vmem>>, vector<128x128xbf16>
    %c0_177 = arith.constant 0 : index
    %c0_178 = arith.constant 0 : index
    %454 = vector.load %arg20[%c0_177, %c0_178] : memref<1x128xf32, #tpu.memory_space<vmem>>, vector<1x128xf32>
    %455 = arith.truncf %452 : vector<2x128xf32> to vector<2x128xbf16>
    %cst_179 = arith.constant dense<0.000000e+00> : vector<2x128xf32>
    %456 = tpu.matmul %455, %453, %cst_179 {dimension_numbers = #tpu.dot_dimension_numbers<[1], [0], [0], [1], [0, 0, 1, 1], [], []>} : vector<2x128xbf16>, vector<128x128xbf16>, vector<2x128xf32> -> vector<2x128xf32>
    %457 = vector.broadcast %454 : vector<1x128xf32> to vector<2x128xf32>
    %458 = arith.addf %456, %457 : vector<2x128xf32>
    %c0_180 = arith.constant 0 : index
    %c0_181 = arith.constant 0 : index
    %459 = vector.load %arg21[%c0_180, %c0_181] : memref<2x128xf32, #tpu.memory_space<vmem>>, vector<2x128xf32>
    tpu.vector_store %arg21[%c0_180, %c0_181], %458 {strides = array<i32>} : memref<2x128xf32, #tpu.memory_space<vmem>>, vector<2x128xf32>,
    return
  }
  func.func @transform_0(%arg0: i32) -> (i32, i32) {
    %c0_i32 = arith.constant 0 : i32
    %c0_i32_0 = arith.constant 0 : i32
    %c0_i32_1 = arith.constant 0 : i32
    return %c0_i32, %c0_i32_0 : i32, i32
  }
  func.func @transform_1(%arg0: i32) -> (i32, i32) {
    %c0_i32 = arith.constant 0 : i32
    %c0_i32_0 = arith.constant 0 : i32
    %c0_i32_1 = arith.constant 0 : i32
    return %c0_i32, %c0_i32_0 : i32, i32
  }
  func.func @transform_2(%arg0: i32) -> (i32, i32) {
    %c0_i32 = arith.constant 0 : i32
    %c0_i32_0 = arith.constant 0 : i32
    %c0_i32_1 = arith.constant 0 : i32
    return %c0_i32, %c0_i32_0 : i32, i32
  }
  func.func @transform_3(%arg0: i32) -> (i32, i32) {
    %c0_i32 = arith.constant 0 : i32
    %c0_i32_0 = arith.constant 0 : i32
    %c0_i32_1 = arith.constant 0 : i32
    return %c0_i32, %c0_i32_0 : i32, i32
  }
  func.func @transform_4(%arg0: i32) -> (i32, i32, i32) {
    %c0_i32 = arith.constant 0 : i32
    %c0_i32_0 = arith.constant 0 : i32
    %c0_i32_1 = arith.constant 0 : i32
    %c0_i32_2 = arith.constant 0 : i32
    return %c0_i32, %c0_i32_0, %c0_i32_1 : i32, i32, i32
  }
  func.func @transform_5(%arg0: i32) -> (i32, i32, i32) {
    %c0_i32 = arith.constant 0 : i32
    %c0_i32_0 = arith.constant 0 : i32
    %c0_i32_1 = arith.constant 0 : i32
    %c0_i32_2 = arith.constant 0 : i32
    return %c0_i32, %c0_i32_0, %c0_i32_1 : i32, i32, i32
  }
  func.func @transform_6(%arg0: i32) -> (i32, i32, i32) {
    %c0_i32 = arith.constant 0 : i32
    %c0_i32_0 = arith.constant 0 : i32
    %c0_i32_1 = arith.constant 0 : i32
    %c0_i32_2 = arith.constant 0 : i32
    return %c0_i32, %c0_i32_0, %c0_i32_1 : i32, i32, i32
  }
  func.func @transform_7(%arg0: i32) -> (i32, i32, i32) {
    %c0_i32 = arith.constant 0 : i32
    %c0_i32_0 = arith.constant 0 : i32
    %c0_i32_1 = arith.constant 0 : i32
    %c0_i32_2 = arith.constant 0 : i32
    return %c0_i32, %c0_i32_0, %c0_i32_1 : i32, i32, i32
  }
  func.func @transform_8(%arg0: i32) -> (i32, i32, i32) {
    %c0_i32 = arith.constant 0 : i32
    %c0_i32_0 = arith.constant 0 : i32
    %c0_i32_1 = arith.constant 0 : i32
    %c0_i32_2 = arith.constant 0 : i32
    return %c0_i32, %c0_i32_0, %c0_i32_1 : i32, i32, i32
  }
  func.func @transform_9(%arg0: i32) -> (i32, i32, i32) {
    %c0_i32 = arith.constant 0 : i32
    %c0_i32_0 = arith.constant 0 : i32
    %c0_i32_1 = arith.constant 0 : i32
    %c0_i32_2 = arith.constant 0 : i32
    return %c0_i32, %c0_i32_0, %c0_i32_1 : i32, i32, i32
  }
  func.func @transform_10(%arg0: i32) -> (i32, i32, i32) {
    %c0_i32 = arith.constant 0 : i32
    %c0_i32_0 = arith.constant 0 : i32
    %c0_i32_1 = arith.constant 0 : i32
    %c0_i32_2 = arith.constant 0 : i32
    return %c0_i32, %c0_i32_0, %c0_i32_1 : i32, i32, i32
  }
  func.func @transform_11(%arg0: i32) -> (i32, i32, i32) {
    %c0_i32 = arith.constant 0 : i32
    %c0_i32_0 = arith.constant 0 : i32
    %c0_i32_1 = arith.constant 0 : i32
    %c0_i32_2 = arith.constant 0 : i32
    return %c0_i32, %c0_i32_0, %c0_i32_1 : i32, i32, i32
  }
  func.func @transform_12(%arg0: i32) -> (i32, i32, i32) {
    %c0_i32 = arith.constant 0 : i32
    %c0_i32_0 = arith.constant 0 : i32
    %c0_i32_1 = arith.constant 0 : i32
    %c0_i32_2 = arith.constant 0 : i32
    return %c0_i32, %c0_i32_0, %c0_i32_1 : i32, i32, i32
  }
  func.func @transform_13(%arg0: i32) -> (i32, i32, i32) {
    %c0_i32 = arith.constant 0 : i32
    %c0_i32_0 = arith.constant 0 : i32
    %c0_i32_1 = arith.constant 0 : i32
    %c0_i32_2 = arith.constant 0 : i32
    return %c0_i32, %c0_i32_0, %c0_i32_1 : i32, i32, i32
  }
  func.func @transform_14(%arg0: i32) -> (i32, i32, i32) {
    %c0_i32 = arith.constant 0 : i32
    %c0_i32_0 = arith.constant 0 : i32
    %c0_i32_1 = arith.constant 0 : i32
    %c0_i32_2 = arith.constant 0 : i32
    return %c0_i32, %c0_i32_0, %c0_i32_1 : i32, i32, i32
  }
  func.func @transform_15(%arg0: i32) -> (i32, i32, i32) {
    %c0_i32 = arith.constant 0 : i32
    %c0_i32_0 = arith.constant 0 : i32
    %c0_i32_1 = arith.constant 0 : i32
    %c0_i32_2 = arith.constant 0 : i32
    return %c0_i32, %c0_i32_0, %c0_i32_1 : i32, i32, i32
  }
  func.func @transform_16(%arg0: i32) -> (i32, i32) {
    %c0_i32 = arith.constant 0 : i32
    %c0_i32_0 = arith.constant 0 : i32
    %c0_i32_1 = arith.constant 0 : i32
    return %c0_i32, %c0_i32_0 : i32, i32
  }
  func.func @transform_17(%arg0: i32) -> (i32, i32) {
    %c0_i32 = arith.constant 0 : i32
    %c0_i32_0 = arith.constant 0 : i32
    %c0_i32_1 = arith.constant 0 : i32
    return %c0_i32, %c0_i32_0 : i32, i32
  }
  func.func @transform_18(%arg0: i32) -> (i32, i32) {
    %c0_i32 = arith.constant 0 : i32
    %c0_i32_0 = arith.constant 0 : i32
    %c0_i32_1 = arith.constant 0 : i32
    return %c0_i32, %c0_i32_0 : i32, i32
  }
  func.func @transform_19(%arg0: i32) -> (i32, i32) {
    %c0_i32 = arith.constant 0 : i32
    %c0_i32_0 = arith.constant 0 : i32
    %c0_i32_1 = arith.constant 0 : i32
    return %c0_i32, %c0_i32_0 : i32, i32
  }
  func.func @transform_20(%arg0: i32) -> (i32, i32) {
    %c0_i32 = arith.constant 0 : i32
    %c0_i32_0 = arith.constant 0 : i32
    %c0_i32_1 = arith.constant 0 : i32
    return %c0_i32, %c0_i32_0 : i32, i32
  }
}

</mosaic_0001>

<llo_original>
// kernel: my_model_forward.1
$region0: #{my_model_forward.1}
  #allocation0 [shape = 'u32[]', space=smem, size = 0x4, offset = 0x4, fixed_abs, tag = 'smem constant byte address 0x4 - core index']
  #allocation1 [shape = 'u32[72,128]{1,0:T(1,128)}', space=vmem, size = 0x9000, scoped, tag = 'internal scratch']
  %s0 = inlined_call_operand.vmem [shape: f32[16,128], index: 0, kind: input, shape index: {}]
  %s1 = inlined_call_operand.vmem [shape: f32[2,8], index: 1, kind: input, shape index: {}]
  %s2 = inlined_call_operand.vmem [shape: f32[1,128], index: 2, kind: input, shape index: {}]
  %s3 = inlined_call_operand.vmem [shape: f32[1,128], index: 3, kind: input, shape index: {}]
  %s4 = inlined_call_operand.hbm [shape: bf16[2,128,384], index: 4, kind: input, shape index: {}]
  %s5 = inlined_call_operand.vmem [shape: f32[2,1,384], index: 5, kind: input, shape index: {}]
  %s6 = inlined_call_operand.vmem [shape: bf16[2,128,128], index: 6, kind: input, shape index: {}]
  %s7 = inlined_call_operand.vmem [shape: f32[2,1,128], index: 7, kind: input, shape index: {}]
  %s8 = inlined_call_operand.vmem [shape: f32[2,1,128], index: 8, kind: input, shape index: {}]
  %s9 = inlined_call_operand.vmem [shape: f32[2,1,128], index: 9, kind: input, shape index: {}]
  %s10 = inlined_call_operand.hbm [shape: bf16[2,128,256], index: 10, kind: input, shape index: {}]
  %s11 = inlined_call_operand.vmem [shape: f32[2,1,256], index: 11, kind: input, shape index: {}]
  %s12 = inlined_call_operand.hbm [shape: bf16[2,256,128], index: 12, kind: input, shape index: {}]
  %s13 = inlined_call_operand.vmem [shape: f32[2,1,128], index: 13, kind: input, shape index: {}]
  %s14 = inlined_call_operand.vmem [shape: f32[2,1,128], index: 14, kind: input, shape index: {}]
  %s15 = inlined_call_operand.vmem [shape: f32[2,1,128], index: 15, kind: input, shape index: {}]
  %s16 = inlined_call_operand.hbm [shape: bf16[128,128], index: 16, kind: input, shape index: {}]
  %s17 = inlined_call_operand.vmem [shape: f32[1,128], index: 17, kind: input, shape index: {}]
  %s18 = inlined_call_operand.hbm [shape: bf16[128,128], index: 18, kind: input, shape index: {}]
  %s19 = inlined_call_operand.vmem [shape: f32[1,128], index: 19, kind: input, shape index: {}]
  %s20 = inlined_call_operand.hbm [shape: f32[2,128], index: 20, kind: output, shape index: {}]
  %s21 = sld [smem:[#allocation0]]
  $region110: #{my_model_forward.1} parent=0
    _
  %s23 = ssub.s32 1, %s21
  %s24 = scalar_select 0, %s23, %s21
  $region1: #{my_model_forward.1} parent=0
    #allocation2 [shape = 'u8[196608]{0}', space=vmem, size = 0x30000, scoped, tag = 'input window, operand 4, single buffered']
    #allocation3 [shape = 's32[1]{0}', space=sflag, size = 0x4, scoped, tag = 'scoped memory for my_model_forward.1']
    #allocation4 [shape = 's32[1]{0}', space=sflag, size = 0x4, scoped, tag = 'scoped memory for my_model_forward.1']
    #allocation5 [shape = 'u8[131072]{0}', space=vmem, size = 0x20000, scoped, tag = 'input window, operand 10, single buffered']
    #allocation6 [shape = 's32[1]{0}', space=sflag, size = 0x4, scoped, tag = 'scoped memory for my_model_forward.1']
    #allocation7 [shape = 'u8[131072]{0}', space=vmem, size = 0x20000, scoped, tag = 'input window, operand 12, single buffered']
    #allocation8 [shape = 'u8[32768]{0}', space=vmem, size = 0x8000, scoped, tag = 'input window, operand 16, single buffered']
    #allocation9 [shape = 's32[1]{0}', space=sflag, size = 0x4, scoped, tag = 'scoped memory for my_model_forward.1']
    #allocation10 [shape = 'u8[32768]{0}', space=vmem, size = 0x8000, scoped, tag = 'input window, operand 18, single buffered']
    #allocation11 [shape = 'u8[1024]{0}', space=vmem, size = 0x400, scoped, tag = 'output window, operand 0, single buffered']
    %25 = vsyncpa [#allocation3], 0
    %26 = vsyncpa [#allocation6], 0
    %27 = vsyncpa [#allocation9], 0
    %28 = vsyncpa [#allocation4], 0
    // Predicated region
    $region2: #{my_model_forward.1} parent=1 // pred_check
      _
    $region3: #{my_model_forward.1} parent=1 // pred_check_branch
      %30 = sbr.rel (0) target = $region5
    $region4: #{my_model_forward.1} parent=1 // pred_region
      _
    $region5: #{my_model_forward.1} parent=1 // pred_fallthru
      _
    // Predicated region
    $region6: #{my_model_forward.1} parent=1 // pred_check
      _
    $region7: #{my_model_forward.1} parent=1 // pred_check_branch
      %32 = sbr.rel (0) target = $region9
    $region8: #{my_model_forward.1} parent=1 // pred_region
      _
    $region9: #{my_model_forward.1} parent=1 // pred_fallthru
      _
    // Predicated region
    $region10: #{my_model_forward.1} parent=1 // pred_check
      _
    $region11: #{my_model_forward.1} parent=1 // pred_check_branch
      %34 = sbr.rel (0) target = $region13
    $region12: #{my_model_forward.1} parent=1 // pred_region
      _
    $region13: #{my_model_forward.1} parent=1 // pred_fallthru
      _
    // Predicated region
    $region14: #{my_model_forward.1} parent=1 // pred_check
      _
    $region15: #{my_model_forward.1} parent=1 // pred_check_branch
      %36 = sbr.rel (0) target = $region17
    $region16: #{my_model_forward.1} parent=1 // pred_region
      _
    $region17: #{my_model_forward.1} parent=1 // pred_fallthru
      _
    // Predicated region
    $region18: #{my_model_forward.1} parent=1 // pred_check
      _
    $region19: #{my_model_forward.1} parent=1 // pred_check_branch
      %38 = sbr.rel (0) target = $region21
    $region20: #{my_model_forward.1} parent=1 // pred_region
      %40 = vsyncadd [#allocation3], 0
      %s41 = sshll.u32 %s4, 4
      %s42 = int_to_ptr.hbm [resolvable:$true] %s41
      %s43 = sshll.u32 [#allocation2], 4
      %s44 = int_to_ptr.vmem [resolvable:$true] %s43
      %49 = dma.hbm_to_vmem [thread:$0]  %s42, 6144, %s44, [#allocation3], 192, 192, 12
    $region21: #{my_model_forward.1} parent=1 // pred_fallthru
      _
    // Predicated region
    $region22: #{my_model_forward.1} parent=1 // pred_check
      _
    $region23: #{my_model_forward.1} parent=1 // pred_check_branch
      %51 = sbr.rel (0) target = $region25
    $region24: #{my_model_forward.1} parent=1 // pred_region
      _
    $region25: #{my_model_forward.1} parent=1 // pred_fallthru
      _
    // Predicated region
    $region26: #{my_model_forward.1} parent=1 // pred_check
      _
    $region27: #{my_model_forward.1} parent=1 // pred_check_branch
      %53 = sbr.rel (0) target = $region29
    $region28: #{my_model_forward.1} parent=1 // pred_region
      _
    $region29: #{my_model_forward.1} parent=1 // pred_fallthru
      _
    // Predicated region
    $region30: #{my_model_forward.1} parent=1 // pred_check
      _
    $region31: #{my_model_forward.1} parent=1 // pred_check_branch
      %55 = sbr.rel (0) target = $region33
    $region32: #{my_model_forward.1} parent=1 // pred_region
      _
    $region33: #{my_model_forward.1} parent=1 // pred_fallthru
      _
    // Predicated region
    $region34: #{my_model_forward.1} parent=1 // pred_check
      _
    $region35: #{my_model_forward.1} parent=1 // pred_check_branch
      %57 = sbr.rel (0) target = $region37
    $region36: #{my_model_forward.1} parent=1 // pred_region
      _
    $region37: #{my_model_forward.1} parent=1 // pred_fallthru
      _
    // Predicated region
    $region38: #{my_model_forward.1} parent=1 // pred_check
      _
    $region39: #{my_model_forward.1} parent=1 // pred_check_branch
      %59 = sbr.rel (0) target = $region41
    $region40: #{my_model_forward.1} parent=1 // pred_region
      _
    $region41: #{my_model_forward.1} parent=1 // pred_fallthru
      _
    // Predicated region
    $region42: #{my_model_forward.1} parent=1 // pred_check
      _
    $region43: #{my_model_forward.1} parent=1 // pred_check_branch
      %61 = sbr.rel (0) target = $region45
    $region44: #{my_model_forward.1} parent=1 // pred_region
      %63 = vsyncadd [#allocation6], 0
      %s64 = sshll.u32 %s10, 4
      %s65 = int_to_ptr.hbm [resolvable:$true] %s64
      %s66 = sshll.u32 [#allocation5], 4
      %s67 = int_to_ptr.vmem [resolvable:$true] %s66
      %72 = dma.hbm_to_vmem [thread:$0]  %s65, 4096, %s67, [#allocation6], 128, 128, 8
    $region45: #{my_model_forward.1} parent=1 // pred_fallthru
      _
    // Predicated region
    $region46: #{my_model_forward.1} parent=1 // pred_check
      _
    $region47: #{my_model_forward.1} parent=1 // pred_check_branch
      %74 = sbr.rel (0) target = $region49
    $region48: #{my_model_forward.1} parent=1 // pred_region
      _
    $region49: #{my_model_forward.1} parent=1 // pred_fallthru
      _
    // Predicated region
    $region50: #{my_model_forward.1} parent=1 // pred_check
      _
    $region51: #{my_model_forward.1} parent=1 // pred_check_branch
      %76 = sbr.rel (0) target = $region53
    $region52: #{my_model_forward.1} parent=1 // pred_region
      %78 = vsyncadd [#allocation6], 0
      %s79 = sshll.u32 %s12, 4
      %s80 = int_to_ptr.hbm [resolvable:$true] %s79
      %s81 = sshll.u32 [#allocation7], 4
      %s82 = int_to_ptr.vmem [resolvable:$true] %s81
      %87 = dma.hbm_to_vmem [thread:$0]  %s80, 4096, %s82, [#allocation6], 64, 64, 4
    $region53: #{my_model_forward.1} parent=1 // pred_fallthru
      _
    // Predicated region
    $region54: #{my_model_forward.1} parent=1 // pred_check
      _
    $region55: #{my_model_forward.1} parent=1 // pred_check_branch
      %89 = sbr.rel (0) target = $region57
    $region56: #{my_model_forward.1} parent=1 // pred_region
      _
    $region57: #{my_model_forward.1} parent=1 // pred_fallthru
      _
    // Predicated region
    $region58: #{my_model_forward.1} parent=1 // pred_check
      _
    $region59: #{my_model_forward.1} parent=1 // pred_check_branch
      %91 = sbr.rel (0) target = $region61
    $region60: #{my_model_forward.1} parent=1 // pred_region
      _
    $region61: #{my_model_forward.1} parent=1 // pred_fallthru
      _
    // Predicated region
    $region62: #{my_model_forward.1} parent=1 // pred_check
      _
    $region63: #{my_model_forward.1} parent=1 // pred_check_branch
      %93 = sbr.rel (0) target = $region65
    $region64: #{my_model_forward.1} parent=1 // pred_region
      _
    $region65: #{my_model_forward.1} parent=1 // pred_fallthru
      _
    // Predicated region
    $region66: #{my_model_forward.1} parent=1 // pred_check
      _
    $region67: #{my_model_forward.1} parent=1 // pred_check_branch
      %95 = sbr.rel (0) target = $region69
    $region68: #{my_model_forward.1} parent=1 // pred_region
      %97 = vsyncadd [#allocation9], 0
      %s98 = sshll.u32 %s16, 4
      %s99 = int_to_ptr.hbm [resolvable:$true] %s98
      %s100 = sshll.u32 [#allocation8], 4
      %s101 = int_to_ptr.vmem [resolvable:$true] %s100
      %106 = dma.hbm_to_vmem [thread:$0]  %s99, 1024, %s101, [#allocation9], 64, 64, 4
    $region69: #{my_model_forward.1} parent=1 // pred_fallthru
      _
    // Predicated region
    $region70: #{my_model_forward.1} parent=1 // pred_check
      _
    $region71: #{my_model_forward.1} parent=1 // pred_check_branch
      %108 = sbr.rel (0) target = $region73
    $region72: #{my_model_forward.1} parent=1 // pred_region
      _
    $region73: #{my_model_forward.1} parent=1 // pred_fallthru
      _
    // Predicated region
    $region74: #{my_model_forward.1} parent=1 // pred_check
      _
    $region75: #{my_model_forward.1} parent=1 // pred_check_branch
      %110 = sbr.rel (0) target = $region77
    $region76: #{my_model_forward.1} parent=1 // pred_region
      %112 = vsyncadd [#allocation9], 0
      %s113 = sshll.u32 %s18, 4
      %s114 = int_to_ptr.hbm [resolvable:$true] %s113
      %s115 = sshll.u32 [#allocation10], 4
      %s116 = int_to_ptr.vmem [resolvable:$true] %s115
      %121 = dma.hbm_to_vmem [thread:$0]  %s114, 1024, %s116, [#allocation9], 64, 64, 4
    $region77: #{my_model_forward.1} parent=1 // pred_fallthru
      _
    // Predicated region
    $region78: #{my_model_forward.1} parent=1 // pred_check
      _
    $region79: #{my_model_forward.1} parent=1 // pred_check_branch
      %123 = sbr.rel (0) target = $region81
    $region80: #{my_model_forward.1} parent=1 // pred_region
      _
    $region81: #{my_model_forward.1} parent=1 // pred_fallthru
      _
    // Predicated region
    $region82: #{my_model_forward.1} parent=1 // pred_check
      _
    $region83: #{my_model_forward.1} parent=1 // pred_check_branch
      %125 = sbr.rel (0) target = $region85
    $region84: #{my_model_forward.1} parent=1 // pred_region
      %127 = dma.done [#allocation3], 6144
    $region85: #{my_model_forward.1} parent=1 // pred_fallthru
      _
    // Predicated region
    $region86: #{my_model_forward.1} parent=1 // pred_check
      _
    $region87: #{my_model_forward.1} parent=1 // pred_check_branch
      %129 = sbr.rel (0) target = $region89
    $region88: #{my_model_forward.1} parent=1 // pred_region
      %131 = dma.done [#allocation6], 4096
    $region89: #{my_model_forward.1} parent=1 // pred_fallthru
      _
    // Predicated region
    $region90: #{my_model_forward.1} parent=1 // pred_check
      _
    $region91: #{my_model_forward.1} parent=1 // pred_check_branch
      %133 = sbr.rel (0) target = $region93
    $region92: #{my_model_forward.1} parent=1 // pred_region
      %135 = dma.done [#allocation6], 4096
    $region93: #{my_model_forward.1} parent=1 // pred_fallthru
      _
    // Predicated region
    $region94: #{my_model_forward.1} parent=1 // pred_check
      _
    $region95: #{my_model_forward.1} parent=1 // pred_check_branch
      %137 = sbr.rel (0) target = $region97
    $region96: #{my_model_forward.1} parent=1 // pred_region
      %139 = dma.done [#allocation9], 1024
    $region97: #{my_model_forward.1} parent=1 // pred_fallthru
      _
    // Predicated region
    $region98: #{my_model_forward.1} parent=1 // pred_check
      _
    $region99: #{my_model_forward.1} parent=1 // pred_check_branch
      %141 = sbr.rel (0) target = $region101
    $region100: #{my_model_forward.1} parent=1 // pred_region
      %143 = dma.done [#allocation9], 1024
    $region101: #{my_model_forward.1} parent=1 // pred_fallthru
      _
    %v145 = vld [vmem:[%s0] sm:$0xff]
    %v146 = vld [vmem:[%s0 + $0x8] sm:$0xff]
    %v147 = vld [vmem:[%s2] sm:$0x1]
    %v148 = vld [vmem:[%s3] sm:$0x1]
    %149 = vadd.xlane.f32.xlu0 %v145
    %v150 = vpop.xlane.xlu0 %149
    %151 = vadd.xlane.f32.xlu0 %v146
    %v152 = vpop.xlane.xlu0 %151
    %v153 = vrcp.pop 128.0
    %v154 = vmul.f32 128.0, %v153
    %v155 = vsub.f32 1.0, %v154
    %v156 = vmul.f32 %v153, %v155
    %v157 = vadd.f32 %v153, %v156
    %vm158 = vweird.f32 %v153
    %v159 = vsel %vm158, %v153, %v157
    %v160 = vmul.f32 %v150, %v159
    %v161 = vmul.f32 %v152, %v159
    %v162 = vsub.f32 %v145, %v160
    %v163 = vsub.f32 %v146, %v161
    %v164 = vmul.f32 %v162, %v162
    %v165 = vmul.f32 %v163, %v163
    %166 = vadd.xlane.f32.xlu0 %v164
    %v167 = vpop.xlane.xlu0 %166
    %168 = vadd.xlane.f32.xlu0 %v165
    %v169 = vpop.xlane.xlu0 %168
    %v170 = vmul.f32 %v167, %v159
    %v171 = vmul.f32 %v169, %v159
    %v172 = vadd.f32 %v170, 1e-12
    %v173 = vadd.f32 %v171, 1e-12
    %v174 = vrsqrt.pop %v172
    %v175 = vmul.f32 %v174, %v172
    %v176 = vmul.f32 %v175, %v174
    %v177 = vmul.f32 0.5, %v176
    %v178 = vsub.f32 1.5, %v177
    %v179 = vmul.f32 %v174, %v178
    %vm180 = vweird.f32 %v172
    %vm181 = vweird.f32 %v174
    %vm182 = vmor %vm180, %vm181
    %v183 = vsel %vm182, %v174, %v179
    %v184 = vrsqrt.pop %v173
    %v185 = vmul.f32 %v184, %v173
    %v186 = vmul.f32 %v185, %v184
    %v187 = vmul.f32 0.5, %v186
    %v188 = vsub.f32 1.5, %v187
    %v189 = vmul.f32 %v184, %v188
    %vm190 = vweird.f32 %v173
    %vm191 = vweird.f32 %v184
    %vm192 = vmor %vm190, %vm191
    %v193 = vsel %vm192, %v184, %v189
    %v194 = vmul.f32 %v162, %v183
    %v195 = vmul.f32 %v163, %v193
    %v197 = vperm.slane %v147, 0
    %v199 = vmul.f32 %v194, %v197
    %v200 = vmul.f32 %v195, %v197
    %v202 = vperm.slane %v148, 0
    %v204 = vadd.f32 %v199, %v202
    %v205 = vadd.f32 %v200, %v202
    %v206 = vld [vmem:[#allocation2] sm:$0xff]
    %v207 = vld [vmem:[#allocation2 + $0x8] sm:$0xf]
    %v208 = vld [vmem:[#allocation2 + $0xc] sm:$0xff]
    %v209 = vld [vmem:[#allocation2 + $0x14] sm:$0xf]
    %v210 = vld [vmem:[#allocation2 + $0x18] sm:$0xff]
    %v211 = vld [vmem:[#allocation2 + $0x20] sm:$0xf]
    %v212 = vld [vmem:[#allocation2 + $0x24] sm:$0xff]
    %v213 = vld [vmem:[#allocation2 + $0x2c] sm:$0xf]
    %v214 = vld [vmem:[#allocation2 + $0x30] sm:$0xff]
    %v215 = vld [vmem:[#allocation2 + $0x38] sm:$0xf]
    %v216 = vld [vmem:[#allocation2 + $0x3c] sm:$0xff]
    %v217 = vld [vmem:[#allocation2 + $0x44] sm:$0xf]
    %v218 = vld [vmem:[#allocation2 + $0x48] sm:$0xff]
    %v219 = vld [vmem:[#allocation2 + $0x50] sm:$0xf]
    %v220 = vld [vmem:[#allocation2 + $0x54] sm:$0xff]
    %v221 = vld [vmem:[#allocation2 + $0x5c] sm:$0xf]
    %v222 = vld [vmem:[#allocation2 + $0x60] sm:$0xff]
    %v223 = vld [vmem:[#allocation2 + $0x68] sm:$0xf]
    %v224 = vld [vmem:[#allocation2 + $0x6c] sm:$0xff]
    %v225 = vld [vmem:[#allocation2 + $0x74] sm:$0xf]
    %v226 = vld [vmem:[#allocation2 + $0x78] sm:$0xff]
    %v227 = vld [vmem:[#allocation2 + $0x80] sm:$0xf]
    %v228 = vld [vmem:[#allocation2 + $0x84] sm:$0xff]
    %v229 = vld [vmem:[#allocation2 + $0x8c] sm:$0xf]
    %v230 = vld [vmem:[#allocation2 + $0x90] sm:$0xff]
    %v231 = vld [vmem:[#allocation2 + $0x98] sm:$0xf]
    %v232 = vld [vmem:[#allocation2 + $0x9c] sm:$0xff]
    %v233 = vld [vmem:[#allocation2 + $0xa4] sm:$0xf]
    %v234 = vld [vmem:[#allocation2 + $0xa8] sm:$0xff]
    %v235 = vld [vmem:[#allocation2 + $0xb0] sm:$0xf]
    %v236 = vld [vmem:[#allocation2 + $0xb4] sm:$0xff]
    %v237 = vld [vmem:[#allocation2 + $0xbc] sm:$0xf]
    %v238 = vld [vmem:[%s5] sm:$0x7]
    %v239 = vld [vmem:[%s6] sm:$0xf]
    %v240 = vld [vmem:[%s6 + $0x4] sm:$0xf]
    %v241 = vld [vmem:[%s6 + $0x8] sm:$0xf]
    %v242 = vld [vmem:[%s6 + $0xc] sm:$0xf]
    %v243 = vld [vmem:[%s6 + $0x10] sm:$0xf]
    %v244 = vld [vmem:[%s6 + $0x14] sm:$0xf]
    %v245 = vld [vmem:[%s6 + $0x18] sm:$0xf]
    %v246 = vld [vmem:[%s6 + $0x1c] sm:$0xf]
    %v247 = vld [vmem:[%s6 + $0x20] sm:$0xf]
    %v248 = vld [vmem:[%s6 + $0x24] sm:$0xf]
    %v249 = vld [vmem:[%s6 + $0x28] sm:$0xf]
    %v250 = vld [vmem:[%s6 + $0x2c] sm:$0xf]
    %v251 = vld [vmem:[%s6 + $0x30] sm:$0xf]
    %v252 = vld [vmem:[%s6 + $0x34] sm:$0xf]
    %v253 = vld [vmem:[%s6 + $0x38] sm:$0xf]
    %v254 = vld [vmem:[%s6 + $0x3c] sm:$0xf]
    %v255 = vld [vmem:[%s7] sm:$0x1]
    %v256 = vld [vmem:[#allocation5] sm:$0xff]
    %v257 = vld [vmem:[#allocation5 + $0x8] sm:$0xff]
    %v258 = vld [vmem:[#allocation5 + $0x10] sm:$0xff]
    %v259 = vld [vmem:[#allocation5 + $0x18] sm:$0xff]
    %v260 = vld [vmem:[#allocation5 + $0x20] sm:$0xff]
    %v261 = vld [vmem:[#allocation5 + $0x28] sm:$0xff]
    %v262 = vld [vmem:[#allocation5 + $0x30] sm:$0xff]
    %v263 = vld [vmem:[#allocation5 + $0x38] sm:$0xff]
    %v264 = vld [vmem:[#allocation5 + $0x40] sm:$0xff]
    %v265 = vld [vmem:[#allocation5 + $0x48] sm:$0xff]
    %v266 = vld [vmem:[#allocation5 + $0x50] sm:$0xff]
    %v267 = vld [vmem:[#allocation5 + $0x58] sm:$0xff]
    %v268 = vld [vmem:[#allocation5 + $0x60] sm:$0xff]
    %v269 = vld [vmem:[#allocation5 + $0x68] sm:$0xff]
    %v270 = vld [vmem:[#allocation5 + $0x70] sm:$0xff]
    %v271 = vld [vmem:[#allocation5 + $0x78] sm:$0xff]
    %v272 = vld [vmem:[%s11] sm:$0x3]
    %v273 = vld [vmem:[#allocation7] sm:$0xf]
    %v274 = vld [vmem:[#allocation7 + $0x4] sm:$0xf]
    %v275 = vld [vmem:[#allocation7 + $0x8] sm:$0xf]
    %v276 = vld [vmem:[#allocation7 + $0xc] sm:$0xf]
    %v277 = vld [vmem:[#allocation7 + $0x10] sm:$0xf]
    %v278 = vld [vmem:[#allocation7 + $0x14] sm:$0xf]
    %v279 = vld [vmem:[#allocation7 + $0x18] sm:$0xf]
    %v280 = vld [vmem:[#allocation7 + $0x1c] sm:$0xf]
    %v281 = vld [vmem:[#allocation7 + $0x20] sm:$0xf]
    %v282 = vld [vmem:[#allocation7 + $0x24] sm:$0xf]
    %v283 = vld [vmem:[#allocation7 + $0x28] sm:$0xf]
    %v284 = vld [vmem:[#allocation7 + $0x2c] sm:$0xf]
    %v285 = vld [vmem:[#allocation7 + $0x30] sm:$0xf]
    %v286 = vld [vmem:[#allocation7 + $0x34] sm:$0xf]
    %v287 = vld [vmem:[#allocation7 + $0x38] sm:$0xf]
    %v288 = vld [vmem:[#allocation7 + $0x3c] sm:$0xf]
    %v289 = vld [vmem:[#allocation7 + $0x40] sm:$0xf]
    %v290 = vld [vmem:[#allocation7 + $0x44] sm:$0xf]
    %v291 = vld [vmem:[#allocation7 + $0x48] sm:$0xf]
    %v292 = vld [vmem:[#allocation7 + $0x4c] sm:$0xf]
    %v293 = vld [vmem:[#allocation7 + $0x50] sm:$0xf]
    %v294 = vld [vmem:[#allocation7 + $0x54] sm:$0xf]
    %v295 = vld [vmem:[#allocation7 + $0x58] sm:$0xf]
    %v296 = vld [vmem:[#allocation7 + $0x5c] sm:$0xf]
    %v297 = vld [vmem:[#allocation7 + $0x60] sm:$0xf]
    %v298 = vld [vmem:[#allocation7 + $0x64] sm:$0xf]
    %v299 = vld [vmem:[#allocation7 + $0x68] sm:$0xf]
    %v300 = vld [vmem:[#allocation7 + $0x6c] sm:$0xf]
    %v301 = vld [vmem:[#allocation7 + $0x70] sm:$0xf]
    %v302 = vld [vmem:[#allocation7 + $0x74] sm:$0xf]
    %v303 = vld [vmem:[#allocation7 + $0x78] sm:$0xf]
    %v304 = vld [vmem:[#allocation7 + $0x7c] sm:$0xf]
    %v305 = vld [vmem:[%s13] sm:$0x1]
    %v306 = vpack.c.bf16 %v205, %v204
    %v308 = vperm.slane %v238, 0
    %v309 = vperm.slane %v238, 1
    %v310 = vperm.slane %v238, 2
    %v346 = vunpack.c.l.b16 %v206
    %v347 = vunpack.c.h.b16 %v206
    %v348 = vunpack.c.l.b16 %v207
    %v349 = vunpack.c.l.b16 %v208
    %v350 = vunpack.c.h.b16 %v208
    %v351 = vunpack.c.l.b16 %v209
    %v352 = vunpack.c.l.b16 %v210
    %v353 = vunpack.c.h.b16 %v210
    %v354 = vunpack.c.l.b16 %v211
    %v355 = vunpack.c.l.b16 %v212
    %v356 = vunpack.c.h.b16 %v212
    %v357 = vunpack.c.l.b16 %v213
    %v358 = vunpack.c.l.b16 %v214
    %v359 = vunpack.c.h.b16 %v214
    %v360 = vunpack.c.l.b16 %v215
    %v361 = vunpack.c.l.b16 %v216
    %v362 = vunpack.c.h.b16 %v216
    %v363 = vunpack.c.l.b16 %v217
    %v364 = vunpack.c.l.b16 %v218
    %v365 = vunpack.c.h.b16 %v218
    %v366 = vunpack.c.l.b16 %v219
    %v367 = vunpack.c.l.b16 %v220
    %v368 = vunpack.c.h.b16 %v220
    %v369 = vunpack.c.l.b16 %v221
    %v370 = vunpack.c.l.b16 %v222
    %v371 = vunpack.c.h.b16 %v222
    %v372 = vunpack.c.l.b16 %v223
    %v373 = vunpack.c.l.b16 %v224
    %v374 = vunpack.c.h.b16 %v224
    %v375 = vunpack.c.l.b16 %v225
    %v376 = vunpack.c.l.b16 %v226
    %v377 = vunpack.c.h.b16 %v226
    %v378 = vunpack.c.l.b16 %v227
    %v379 = vunpack.c.l.b16 %v228
    %v380 = vunpack.c.h.b16 %v228
    %v381 = vunpack.c.l.b16 %v229
    %v382 = vunpack.c.l.b16 %v230
    %v383 = vunpack.c.h.b16 %v230
    %v384 = vunpack.c.l.b16 %v231
    %v385 = vunpack.c.l.b16 %v232
    %v386 = vunpack.c.h.b16 %v232
    %v387 = vunpack.c.l.b16 %v233
    %v388 = vunpack.c.l.b16 %v234
    %v389 = vunpack.c.h.b16 %v234
    %v390 = vunpack.c.l.b16 %v235
    %v391 = vunpack.c.l.b16 %v236
    %v392 = vunpack.c.h.b16 %v236
    %v393 = vunpack.c.l.b16 %v237
    %v394 = vpack.c.b16 %v349, %v346
    %v395 = vpack.c.b16 %v350, %v347
    %v396 = vpack.c.b16 %v351, %v348
    %v397 = vpack.c.b16 %v355, %v352
    %v398 = vpack.c.b16 %v356, %v353
    %v399 = vpack.c.b16 %v357, %v354
    %v400 = vpack.c.b16 %v361, %v358
    %v401 = vpack.c.b16 %v362, %v359
    %v402 = vpack.c.b16 %v363, %v360
    %v403 = vpack.c.b16 %v367, %v364
    %v404 = vpack.c.b16 %v368, %v365
    %v405 = vpack.c.b16 %v369, %v366
    %v406 = vpack.c.b16 %v373, %v370
    %v407 = vpack.c.b16 %v374, %v371
    %v408 = vpack.c.b16 %v375, %v372
    %v409 = vpack.c.b16 %v379, %v376
    %v410 = vpack.c.b16 %v380, %v377
    %v411 = vpack.c.b16 %v381, %v378
    %v412 = vpack.c.b16 %v385, %v382
    %v413 = vpack.c.b16 %v386, %v383
    %v414 = vpack.c.b16 %v387, %v384
    %v415 = vpack.c.b16 %v391, %v388
    %v416 = vpack.c.b16 %v392, %v389
    %v417 = vpack.c.b16 %v393, %v390
    %442 = vmatpush.bf16.msra.mxu0 %v415
    %443 = vmatpush.bf16.msra.mxu0 %v412
    %444 = vmatpush.bf16.msra.mxu0 %v409
    %445 = vmatpush.bf16.msra.mxu0 %v406
    %446 = vmatpush.bf16.msra.mxu0 %v403
    %447 = vmatpush.bf16.msra.mxu0 %v400
    %448 = vmatpush.bf16.msra.mxu0 %v397
    %449 = vmatpush.bf16.msra.mxu0 %v394
    %450 = vmatmul.bf16.gmra.mxu0 %v306
    %v451 = vpop.f32.mrf.mxu0
    %v452 = vadd.f32 %v308, %v451
    %v453 = vpop.f32.mrf.mxu0
    %v454 = vadd.f32 %v308, %v453
    %455 = vdwg.mxu0
    %456 = vmatpush.bf16.msra.mxu0 %v416
    %457 = vmatpush.bf16.msra.mxu0 %v413
    %458 = vmatpush.bf16.msra.mxu0 %v410
    %459 = vmatpush.bf16.msra.mxu0 %v407
    %460 = vmatpush.bf16.msra.mxu0 %v404
    %461 = vmatpush.bf16.msra.mxu0 %v401
    %462 = vmatpush.bf16.msra.mxu0 %v398
    %463 = vmatpush.bf16.msra.mxu0 %v395
    %464 = vmatmul.bf16.gmra.mxu0 %v306
    %v465 = vpop.f32.mrf.mxu0
    %v466 = vadd.f32 %v309, %v465
    %v467 = vpop.f32.mrf.mxu0
    %v468 = vadd.f32 %v309, %v467
    %469 = vdwg.mxu0
    %470 = vmatpush.bf16.msra.mxu0 %v417
    %471 = vmatpush.bf16.msra.mxu0 %v414
    %472 = vmatpush.bf16.msra.mxu0 %v411
    %473 = vmatpush.bf16.msra.mxu0 %v408
    %474 = vmatpush.bf16.msra.mxu0 %v405
    %475 = vmatpush.bf16.msra.mxu0 %v402
    %476 = vmatpush.bf16.msra.mxu0 %v399
    %477 = vmatpush.bf16.msra.mxu0 %v396
    %478 = vmatmul.bf16.gmra.mxu0 %v306
    %v479 = vpop.f32.mrf.mxu0
    %v480 = vadd.f32 %v310, %v479
    %v481 = vpop.f32.mrf.mxu0
    %v482 = vadd.f32 %v310, %v481
    %483 = vdwg.mxu0
    %v484 = vld [vmem:[%s1] sm:$0x1]
    %v485 = vpack.c.bf16 %v452, %v452
    %v486 = vpack.c.bf16 %v466, %v466
    %v487 = vpack.c.bf16 %v480, %v480
    %vm488 = vcmask 523264
    %v490 = vsel %vm488, %v485, 0
    %v493 = vsel %vm488, %v486, 0
    %495 = vmatpush.bf16.xpose.msra.mxu0 0
    %496 = vmatpush.bf16.xpose.msra.mxu0 0
    %497 = vmatpush.bf16.xpose.msra.mxu0 0
    %498 = vmatpush.bf16.xpose.msra.mxu0 0
    %499 = vmatpush.bf16.xpose.msra.mxu0 0
    %500 = vmatpush.bf16.xpose.msra.mxu0 0
    %501 = vmatpush.bf16.xpose.msra.mxu0 0
    %502 = vmatpush.bf16.xpose.msra.mxu0 %v493
    %503 = vmatmul.bf16.gmra.mxu0 %v490
    %v504 = vpop.f32.mrf.mxu0
    %v505 = vadd.f32 0.0, %v504
    %v506 = vpop.f32.mrf.mxu0
    %507 = vdwg.mxu0
    %v508 = vmul.f32 %v505, 0.125
    %v509 = vperm.slane %v484, 0
    %v510 = vadd.f32 %v508, %v509
    %vm511 = vcmask 64512
    %v512 = vsel %vm511, %v510, -inf
    %513 = vmax.xlane.f32.xlu0 %v512
    %v514 = vpop.xlane.xlu0 %513
    %v515 = vsub.f32 %v510, %v514
    %v516 = vmul.f32 %v515, 1.442695
    %v517 = vpow.pop %v516
    %v518 = vsel %vm511, %v517, 0.0
    %519 = vadd.xlane.f32.xlu0 %v518
    %v520 = vpop.xlane.xlu0 %519
    %v521 = vrcp.pop %v520
    %v522 = vmul.f32 %v517, %v521
    %v523 = vpack.c.bf16 %v522, %v522
    %v525 = vsel %vm511, %v523, 0
    %vm527 = vcmask 1043456
    %v529 = vsel %vm527, %v487, 0
    %531 = vmatpush.bf16.msra.mxu0 0
    %532 = vmatpush.bf16.msra.mxu0 0
    %533 = vmatpush.bf16.msra.mxu0 0
    %534 = vmatpush.bf16.msra.mxu0 0
    %535 = vmatpush.bf16.msra.mxu0 0
    %536 = vmatpush.bf16.msra.mxu0 0
    %537 = vmatpush.bf16.msra.mxu0 0
    %538 = vmatpush.bf16.msra.mxu0 %v529
    %539 = vmatmul.bf16.gmra.mxu0 %v525
    %v540 = vpop.f32.mrf.mxu0
    %v541 = vadd.f32 0.0, %v540
    %v542 = vpop.f32.mrf.mxu0
    %543 = vdwg.mxu0
    %v544 = vpack.c.bf16 %v541, %v541
    %546 = vrot.lane.b32.xlu0 %v485, 64
    %v547 = vpop.permute.xlu0 %546
    %549 = vrot.lane.b32.xlu0 %v486, 64
    %v550 = vpop.permute.xlu0 %549
    %v552 = vsel %vm488, %v547, 0
    %v555 = vsel %vm488, %v550, 0
    %557 = vmatpush.bf16.xpose.msra.mxu0 0
    %558 = vmatpush.bf16.xpose.msra.mxu0 0
    %559 = vmatpush.bf16.xpose.msra.mxu0 0
    %560 = vmatpush.bf16.xpose.msra.mxu0 0
    %561 = vmatpush.bf16.xpose.msra.mxu0 0
    %562 = vmatpush.bf16.xpose.msra.mxu0 0
    %563 = vmatpush.bf16.xpose.msra.mxu0 0
    %564 = vmatpush.bf16.xpose.msra.mxu0 %v555
    %565 = vmatmul.bf16.gmra.mxu0 %v552
    %v566 = vpop.f32.mrf.mxu0
    %v567 = vadd.f32 0.0, %v566
    %v568 = vpop.f32.mrf.mxu0
    %569 = vdwg.mxu0
    %v570 = vmul.f32 %v567, 0.125
    %v571 = vadd.f32 %v570, %v509
    %v572 = vsel %vm511, %v571, -inf
    %573 = vmax.xlane.f32.xlu0 %v572
    %v574 = vpop.xlane.xlu0 %573
    %v575 = vsub.f32 %v571, %v574
    %v576 = vmul.f32 %v575, 1.442695
    %v577 = vpow.pop %v576
    %v578 = vsel %vm511, %v577, 0.0
    %579 = vadd.xlane.f32.xlu0 %v578
    %v580 = vpop.xlane.xlu0 %579
    %v581 = vrcp.pop %v580
    %v582 = vmul.f32 %v577, %v581
    %v583 = vpack.c.bf16 %v582, %v582
    %585 = vrot.lane.b32.xlu0 %v487, 64
    %v586 = vpop.permute.xlu0 %585
    %v588 = vsel %vm511, %v583, 0
    %v591 = vsel %vm527, %v586, 0
    %593 = vmatpush.bf16.msra.mxu0 0
    %594 = vmatpush.bf16.msra.mxu0 0
    %595 = vmatpush.bf16.msra.mxu0 0
    %596 = vmatpush.bf16.msra.mxu0 0
    %597 = vmatpush.bf16.msra.mxu0 0
    %598 = vmatpush.bf16.msra.mxu0 0
    %599 = vmatpush.bf16.msra.mxu0 0
    %600 = vmatpush.bf16.msra.mxu0 %v591
    %601 = vmatmul.bf16.gmra.mxu0 %v588
    %v602 = vpop.f32.mrf.mxu0
    %v603 = vadd.f32 0.0, %v602
    %v604 = vpop.f32.mrf.mxu0
    %605 = vdwg.mxu0
    %v606 = vpack.c.bf16 %v603, %v603
    %v615 = vunpack.c.l.b16 %v247
    %v616 = vunpack.c.l.b16 %v248
    %v617 = vunpack.c.l.b16 %v249
    %v618 = vunpack.c.l.b16 %v250
    %v619 = vunpack.c.l.b16 %v251
    %v620 = vunpack.c.l.b16 %v252
    %v621 = vunpack.c.l.b16 %v253
    %v622 = vunpack.c.l.b16 %v254
    %v623 = vpack.c.b16 %v616, %v615
    %v624 = vpack.c.b16 %v618, %v617
    %v625 = vpack.c.b16 %v620, %v619
    %v626 = vpack.c.b16 %v622, %v621
    %v632 = vsel %vm488, %v606, 0
    %634 = vmatpush.bf16.msra.mxu0 0
    %635 = vmatpush.bf16.msra.mxu0 0
    %636 = vmatpush.bf16.msra.mxu0 0
    %637 = vmatpush.bf16.msra.mxu0 0
    %638 = vmatpush.bf16.msra.mxu0 %v626
    %639 = vmatpush.bf16.msra.mxu0 %v625
    %640 = vmatpush.bf16.msra.mxu0 %v624
    %641 = vmatpush.bf16.msra.mxu0 %v623
    %642 = vmatmul.bf16.gmra.mxu0 %v632
    %v643 = vpop.f32.mrf.mxu0
    %v644 = vadd.f32 0.0, %v643
    %v645 = vpop.f32.mrf.mxu0
    %646 = vdwg.mxu0
    %v655 = vunpack.c.l.b16 %v239
    %v656 = vunpack.c.l.b16 %v240
    %v657 = vunpack.c.l.b16 %v241
    %v658 = vunpack.c.l.b16 %v242
    %v659 = vunpack.c.l.b16 %v243
    %v660 = vunpack.c.l.b16 %v244
    %v661 = vunpack.c.l.b16 %v245
    %v662 = vunpack.c.l.b16 %v246
    %v663 = vpack.c.b16 %v656, %v655
    %v664 = vpack.c.b16 %v658, %v657
    %v665 = vpack.c.b16 %v660, %v659
    %v666 = vpack.c.b16 %v662, %v661
    %v672 = vsel %vm488, %v544, 0
    %674 = vmatpush.bf16.msra.mxu0 0
    %675 = vmatpush.bf16.msra.mxu0 0
    %676 = vmatpush.bf16.msra.mxu0 0
    %677 = vmatpush.bf16.msra.mxu0 0
    %678 = vmatpush.bf16.msra.mxu0 %v666
    %679 = vmatpush.bf16.msra.mxu0 %v665
    %680 = vmatpush.bf16.msra.mxu0 %v664
    %681 = vmatpush.bf16.msra.mxu0 %v663
    %682 = vmatmul.bf16.gmra.mxu0 %v672
    %v683 = vpop.f32.mrf.mxu0
    %v684 = vadd.f32 %v644, %v683
    %v685 = vpop.f32.mrf.mxu0
    %686 = vdwg.mxu0
    %v687 = vld [vmem:[%s1 + $0x1] sm:$0x1]
    %v688 = vpack.c.bf16 %v454, %v454
    %v689 = vpack.c.bf16 %v468, %v468
    %v690 = vpack.c.bf16 %v482, %v482
    %v692 = vsel %vm488, %v688, 0
    %v695 = vsel %vm488, %v689, 0
    %697 = vmatpush.bf16.xpose.msra.mxu0 0
    %698 = vmatpush.bf16.xpose.msra.mxu0 0
    %699 = vmatpush.bf16.xpose.msra.mxu0 0
    %700 = vmatpush.bf16.xpose.msra.mxu0 0
    %701 = vmatpush.bf16.xpose.msra.mxu0 0
    %702 = vmatpush.bf16.xpose.msra.mxu0 0
    %703 = vmatpush.bf16.xpose.msra.mxu0 0
    %704 = vmatpush.bf16.xpose.msra.mxu0 %v695
    %705 = vmatmul.bf16.gmra.mxu0 %v692
    %v706 = vpop.f32.mrf.mxu0
    %v707 = vadd.f32 0.0, %v706
    %v708 = vpop.f32.mrf.mxu0
    %709 = vdwg.mxu0
    %v710 = vmul.f32 %v707, 0.125
    %v711 = vperm.slane %v687, 0
    %v712 = vadd.f32 %v710, %v711
    %v713 = vsel %vm511, %v712, -inf
    %714 = vmax.xlane.f32.xlu0 %v713
    %v715 = vpop.xlane.xlu0 %714
    %v716 = vsub.f32 %v712, %v715
    %v717 = vmul.f32 %v716, 1.442695
    %v718 = vpow.pop %v717
    %v719 = vsel %vm511, %v718, 0.0
    %720 = vadd.xlane.f32.xlu0 %v719
    %v721 = vpop.xlane.xlu0 %720
    %v722 = vrcp.pop %v721
    %v723 = vmul.f32 %v718, %v722
    %v724 = vpack.c.bf16 %v723, %v723
    %v726 = vsel %vm511, %v724, 0
    %v729 = vsel %vm527, %v690, 0
    %731 = vmatpush.bf16.msra.mxu0 0
    %732 = vmatpush.bf16.msra.mxu0 0
    %733 = vmatpush.bf16.msra.mxu0 0
    %734 = vmatpush.bf16.msra.mxu0 0
    %735 = vmatpush.bf16.msra.mxu0 0
    %736 = vmatpush.bf16.msra.mxu0 0
    %737 = vmatpush.bf16.msra.mxu0 0
    %738 = vmatpush.bf16.msra.mxu0 %v729
    %739 = vmatmul.bf16.gmra.mxu0 %v726
    %v740 = vpop.f32.mrf.mxu0
    %v741 = vadd.f32 0.0, %v740
    %v742 = vpop.f32.mrf.mxu0
    %743 = vdwg.mxu0
    %v744 = vpack.c.bf16 %v741, %v741
    %746 = vrot.lane.b32.xlu0 %v688, 64
    %v747 = vpop.permute.xlu0 %746
    %749 = vrot.lane.b32.xlu0 %v689, 64
    %v750 = vpop.permute.xlu0 %749
    %v752 = vsel %vm488, %v747, 0
    %v755 = vsel %vm488, %v750, 0
    %757 = vmatpush.bf16.xpose.msra.mxu0 0
    %758 = vmatpush.bf16.xpose.msra.mxu0 0
    %759 = vmatpush.bf16.xpose.msra.mxu0 0
    %760 = vmatpush.bf16.xpose.msra.mxu0 0
    %761 = vmatpush.bf16.xpose.msra.mxu0 0
    %762 = vmatpush.bf16.xpose.msra.mxu0 0
    %763 = vmatpush.bf16.xpose.msra.mxu0 0
    %764 = vmatpush.bf16.xpose.msra.mxu0 %v755
    %765 = vmatmul.bf16.gmra.mxu0 %v752
    %v766 = vpop.f32.mrf.mxu0
    %v767 = vadd.f32 0.0, %v766
    %v768 = vpop.f32.mrf.mxu0
    %769 = vdwg.mxu0
    %v770 = vmul.f32 %v767, 0.125
    %v771 = vadd.f32 %v770, %v711
    %v772 = vsel %vm511, %v771, -inf
    %773 = vmax.xlane.f32.xlu0 %v772
    %v774 = vpop.xlane.xlu0 %773
    %v775 = vsub.f32 %v771, %v774
    %v776 = vmul.f32 %v775, 1.442695
    %v777 = vpow.pop %v776
    %v778 = vsel %vm511, %v777, 0.0
    %779 = vadd.xlane.f32.xlu0 %v778
    %v780 = vpop.xlane.xlu0 %779
    %v781 = vrcp.pop %v780
    %v782 = vmul.f32 %v777, %v781
    %v783 = vpack.c.bf16 %v782, %v782
    %785 = vrot.lane.b32.xlu0 %v690, 64
    %v786 = vpop.permute.xlu0 %785
    %v788 = vsel %vm511, %v783, 0
    %v791 = vsel %vm527, %v786, 0
    %793 = vmatpush.bf16.msra.mxu0 0
    %794 = vmatpush.bf16.msra.mxu0 0
    %795 = vmatpush.bf16.msra.mxu0 0
    %796 = vmatpush.bf16.msra.mxu0 0
    %797 = vmatpush.bf16.msra.mxu0 0
    %798 = vmatpush.bf16.msra.mxu0 0
    %799 = vmatpush.bf16.msra.mxu0 0
    %800 = vmatpush.bf16.msra.mxu0 %v791
    %801 = vmatmul.bf16.gmra.mxu0 %v788
    %v802 = vpop.f32.mrf.mxu0
    %v803 = vadd.f32 0.0, %v802
    %v804 = vpop.f32.mrf.mxu0
    %805 = vdwg.mxu0
    %v806 = vpack.c.bf16 %v803, %v803
    %v808 = vsel %vm488, %v806, 0
    %810 = vmatpush.bf16.msra.mxu0 0
    %811 = vmatpush.bf16.msra.mxu0 0
    %812 = vmatpush.bf16.msra.mxu0 0
    %813 = vmatpush.bf16.msra.mxu0 0
    %814 = vmatpush.bf16.msra.mxu0 %v626
    %815 = vmatpush.bf16.msra.mxu0 %v625
    %816 = vmatpush.bf16.msra.mxu0 %v624
    %817 = vmatpush.bf16.msra.mxu0 %v623
    %818 = vmatmul.bf16.gmra.mxu0 %v808
    %v819 = vpop.f32.mrf.mxu0
    %v820 = vadd.f32 0.0, %v819
    %v821 = vpop.f32.mrf.mxu0
    %822 = vdwg.mxu0
    %v824 = vsel %vm488, %v744, 0
    %826 = vmatpush.bf16.msra.mxu0 0
    %827 = vmatpush.bf16.msra.mxu0 0
    %828 = vmatpush.bf16.msra.mxu0 0
    %829 = vmatpush.bf16.msra.mxu0 0
    %830 = vmatpush.bf16.msra.mxu0 %v666
    %831 = vmatpush.bf16.msra.mxu0 %v665
    %832 = vmatpush.bf16.msra.mxu0 %v664
    %833 = vmatpush.bf16.msra.mxu0 %v663
    %834 = vmatmul.bf16.gmra.mxu0 %v824
    %v835 = vpop.f32.mrf.mxu0
    %v836 = vadd.f32 %v820, %v835
    %v837 = vpop.f32.mrf.mxu0
    %838 = vdwg.mxu0
    %v840 = vperm.slane %v255, 0
    %v842 = vadd.f32 %v684, %v840
    %v843 = vadd.f32 %v836, %v840
    %v844 = vadd.f32 %v204, %v842
    %v845 = vadd.f32 %v205, %v843
    %v846 = vld [vmem:[%s8] sm:$0x1]
    %v847 = vld [vmem:[%s9] sm:$0x1]
    %848 = vadd.xlane.f32.xlu0 %v844
    %v849 = vpop.xlane.xlu0 %848
    %850 = vadd.xlane.f32.xlu0 %v845
    %v851 = vpop.xlane.xlu0 %850
    %v852 = vmul.f32 %v849, %v159
    %v853 = vmul.f32 %v851, %v159
    %v854 = vsub.f32 %v844, %v852
    %v855 = vsub.f32 %v845, %v853
    %v856 = vmul.f32 %v854, %v854
    %v857 = vmul.f32 %v855, %v855
    %858 = vadd.xlane.f32.xlu0 %v856
    %v859 = vpop.xlane.xlu0 %858
    %860 = vadd.xlane.f32.xlu0 %v857
    %v861 = vpop.xlane.xlu0 %860
    %v862 = vmul.f32 %v859, %v159
    %v863 = vmul.f32 %v861, %v159
    %v864 = vadd.f32 %v862, 1e-12
    %v865 = vadd.f32 %v863, 1e-12
    %v866 = vrsqrt.pop %v864
    %v867 = vmul.f32 %v866, %v864
    %v868 = vmul.f32 %v867, %v866
    %v869 = vmul.f32 0.5, %v868
    %v870 = vsub.f32 1.5, %v869
    %v871 = vmul.f32 %v866, %v870
    %vm872 = vweird.f32 %v864
    %vm873 = vweird.f32 %v866
    %vm874 = vmor %vm872, %vm873
    %v875 = vsel %vm874, %v866, %v871
    %v876 = vrsqrt.pop %v865
    %v877 = vmul.f32 %v876, %v865
    %v878 = vmul.f32 %v877, %v876
    %v879 = vmul.f32 0.5, %v878
    %v880 = vsub.f32 1.5, %v879
    %v881 = vmul.f32 %v876, %v880
    %vm882 = vweird.f32 %v865
    %vm883 = vweird.f32 %v876
    %vm884 = vmor %vm882, %vm883
    %v885 = vsel %vm884, %v876, %v881
    %v886 = vmul.f32 %v854, %v875
    %v887 = vmul.f32 %v855, %v885
    %v889 = vperm.slane %v846, 0
    %v891 = vmul.f32 %v886, %v889
    %v892 = vmul.f32 %v887, %v889
    %v894 = vperm.slane %v847, 0
    %v896 = vadd.f32 %v891, %v894
    %v897 = vadd.f32 %v892, %v894
    %v898 = vpack.c.bf16 %v897, %v896
    %v900 = vperm.slane %v272, 0
    %v901 = vperm.slane %v272, 1
    %v920 = vunpack.c.l.b16 %v256
    %v921 = vunpack.c.h.b16 %v256
    %v922 = vunpack.c.l.b16 %v257
    %v923 = vunpack.c.h.b16 %v257
    %v924 = vunpack.c.l.b16 %v258
    %v925 = vunpack.c.h.b16 %v258
    %v926 = vunpack.c.l.b16 %v259
    %v927 = vunpack.c.h.b16 %v259
    %v928 = vunpack.c.l.b16 %v260
    %v929 = vunpack.c.h.b16 %v260
    %v930 = vunpack.c.l.b16 %v261
    %v931 = vunpack.c.h.b16 %v261
    %v932 = vunpack.c.l.b16 %v262
    %v933 = vunpack.c.h.b16 %v262
    %v934 = vunpack.c.l.b16 %v263
    %v935 = vunpack.c.h.b16 %v263
    %v936 = vunpack.c.l.b16 %v264
    %v937 = vunpack.c.h.b16 %v264
    %v938 = vunpack.c.l.b16 %v265
    %v939 = vunpack.c.h.b16 %v265
    %v940 = vunpack.c.l.b16 %v266
    %v941 = vunpack.c.h.b16 %v266
    %v942 = vunpack.c.l.b16 %v267
    %v943 = vunpack.c.h.b16 %v267
    %v944 = vunpack.c.l.b16 %v268
    %v945 = vunpack.c.h.b16 %v268
    %v946 = vunpack.c.l.b16 %v269
    %v947 = vunpack.c.h.b16 %v269
    %v948 = vunpack.c.l.b16 %v270
    %v949 = vunpack.c.h.b16 %v270
    %v950 = vunpack.c.l.b16 %v271
    %v951 = vunpack.c.h.b16 %v271
    %v952 = vpack.c.b16 %v922, %v920
    %v953 = vpack.c.b16 %v923, %v921
    %v954 = vpack.c.b16 %v926, %v924
    %v955 = vpack.c.b16 %v927, %v925
    %v956 = vpack.c.b16 %v930, %v928
    %v957 = vpack.c.b16 %v931, %v929
    %v958 = vpack.c.b16 %v934, %v932
    %v959 = vpack.c.b16 %v935, %v933
    %v960 = vpack.c.b16 %v938, %v936
    %v961 = vpack.c.b16 %v939, %v937
    %v962 = vpack.c.b16 %v942, %v940
    %v963 = vpack.c.b16 %v943, %v941
    %v964 = vpack.c.b16 %v946, %v944
    %v965 = vpack.c.b16 %v947, %v945
    %v966 = vpack.c.b16 %v950, %v948
    %v967 = vpack.c.b16 %v951, %v949
    %984 = vmatpush.bf16.msra.mxu0 %v966
    %985 = vmatpush.bf16.msra.mxu0 %v964
    %986 = vmatpush.bf16.msra.mxu0 %v962
    %987 = vmatpush.bf16.msra.mxu0 %v960
    %988 = vmatpush.bf16.msra.mxu0 %v958
    %989 = vmatpush.bf16.msra.mxu0 %v956
    %990 = vmatpush.bf16.msra.mxu0 %v954
    %991 = vmatpush.bf16.msra.mxu0 %v952
    %992 = vmatmul.bf16.gmra.mxu0 %v898
    %v993 = vpop.f32.mrf.mxu0
    %v994 = vadd.f32 %v900, %v993
    %v995 = vpop.f32.mrf.mxu0
    %v996 = vadd.f32 %v900, %v995
    %997 = vdwg.mxu0
    %998 = vmatpush.bf16.msra.mxu0 %v967
    %999 = vmatpush.bf16.msra.mxu0 %v965
    %1000 = vmatpush.bf16.msra.mxu0 %v963
    %1001 = vmatpush.bf16.msra.mxu0 %v961
    %1002 = vmatpush.bf16.msra.mxu0 %v959
    %1003 = vmatpush.bf16.msra.mxu0 %v957
    %1004 = vmatpush.bf16.msra.mxu0 %v955
    %1005 = vmatpush.bf16.msra.mxu0 %v953
    %1006 = vmatmul.bf16.gmra.mxu0 %v898
    %v1007 = vpop.f32.mrf.mxu0
    %v1008 = vadd.f32 %v901, %v1007
    %v1009 = vpop.f32.mrf.mxu0
    %v1010 = vadd.f32 %v901, %v1009
    %1011 = vdwg.mxu0
    %v1012 = vmul.f32 %v994, 0.5
    %v1013 = vmul.f32 %v1008, 0.5
    %v1014 = vmul.f32 %v996, 0.5
    %v1015 = vmul.f32 %v1010, 0.5
    %v1016 = vmul.f32 %v994, 0.044715
    %v1017 = vmul.f32 %v1008, 0.044715
    %v1018 = vmul.f32 %v996, 0.044715
    %v1019 = vmul.f32 %v1010, 0.044715
    %v1020 = vmul.f32 %v1016, %v994
    %v1021 = vmul.f32 %v1017, %v1008
    %v1022 = vmul.f32 %v1018, %v996
    %v1023 = vmul.f32 %v1019, %v1010
    %v1024 = vmul.f32 %v1020, %v994
    %v1025 = vmul.f32 %v1021, %v1008
    %v1026 = vmul.f32 %v1022, %v996
    %v1027 = vmul.f32 %v1023, %v1010
    %v1028 = vadd.f32 %v994, %v1024
    %v1029 = vadd.f32 %v1008, %v1025
    %v1030 = vadd.f32 %v996, %v1026
    %v1031 = vadd.f32 %v1010, %v1027
    %v1032 = vmul.f32 %v1028, 0.7978846
    %v1033 = vmul.f32 %v1029, 0.7978846
    %v1034 = vmul.f32 %v1030, 0.7978846
    %v1035 = vmul.f32 %v1031, 0.7978846
    %v1036 = vtanh.pop %v1032
    %v1037 = vtanh.pop %v1033
    %v1038 = vtanh.pop %v1034
    %v1039 = vtanh.pop %v1035
    %v1040 = vadd.f32 %v1036, 1.0
    %v1041 = vadd.f32 %v1037, 1.0
    %v1042 = vadd.f32 %v1038, 1.0
    %v1043 = vadd.f32 %v1039, 1.0
    %v1044 = vmul.f32 %v1012, %v1040
    %v1045 = vmul.f32 %v1013, %v1041
    %v1046 = vmul.f32 %v1014, %v1042
    %v1047 = vmul.f32 %v1015, %v1043
    %v1048 = vpack.c.bf16 %v1046, %v1044
    %v1049 = vpack.c.bf16 %v1047, %v1045
    %v1051 = vperm.slane %v305, 0
    %v1085 = vunpack.c.l.b16 %v273
    %v1086 = vunpack.c.l.b16 %v274
    %v1087 = vunpack.c.l.b16 %v275
    %v1088 = vunpack.c.l.b16 %v276
    %v1089 = vunpack.c.l.b16 %v277
    %v1090 = vunpack.c.l.b16 %v278
    %v1091 = vunpack.c.l.b16 %v279
    %v1092 = vunpack.c.l.b16 %v280
    %v1093 = vunpack.c.l.b16 %v281
    %v1094 = vunpack.c.l.b16 %v282
    %v1095 = vunpack.c.l.b16 %v283
    %v1096 = vunpack.c.l.b16 %v284
    %v1097 = vunpack.c.l.b16 %v285
    %v1098 = vunpack.c.l.b16 %v286
    %v1099 = vunpack.c.l.b16 %v287
    %v1100 = vunpack.c.l.b16 %v288
    %v1101 = vunpack.c.l.b16 %v289
    %v1102 = vunpack.c.l.b16 %v290
    %v1103 = vunpack.c.l.b16 %v291
    %v1104 = vunpack.c.l.b16 %v292
    %v1105 = vunpack.c.l.b16 %v293
    %v1106 = vunpack.c.l.b16 %v294
    %v1107 = vunpack.c.l.b16 %v295
    %v1108 = vunpack.c.l.b16 %v296
    %v1109 = vunpack.c.l.b16 %v297
    %v1110 = vunpack.c.l.b16 %v298
    %v1111 = vunpack.c.l.b16 %v299
    %v1112 = vunpack.c.l.b16 %v300
    %v1113 = vunpack.c.l.b16 %v301
    %v1114 = vunpack.c.l.b16 %v302
    %v1115 = vunpack.c.l.b16 %v303
    %v1116 = vunpack.c.l.b16 %v304
    %v1117 = vpack.c.b16 %v1086, %v1085
    %v1118 = vpack.c.b16 %v1088, %v1087
    %v1119 = vpack.c.b16 %v1090, %v1089
    %v1120 = vpack.c.b16 %v1092, %v1091
    %v1121 = vpack.c.b16 %v1094, %v1093
    %v1122 = vpack.c.b16 %v1096, %v1095
    %v1123 = vpack.c.b16 %v1098, %v1097
    %v1124 = vpack.c.b16 %v1100, %v1099
    %v1125 = vpack.c.b16 %v1102, %v1101
    %v1126 = vpack.c.b16 %v1104, %v1103
    %v1127 = vpack.c.b16 %v1106, %v1105
    %v1128 = vpack.c.b16 %v1108, %v1107
    %v1129 = vpack.c.b16 %v1110, %v1109
    %v1130 = vpack.c.b16 %v1112, %v1111
    %v1131 = vpack.c.b16 %v1114, %v1113
    %v1132 = vpack.c.b16 %v1116, %v1115
    %1149 = vmatpush.bf16.msra.mxu0 %v1124
    %1150 = vmatpush.bf16.msra.mxu0 %v1123
    %1151 = vmatpush.bf16.msra.mxu0 %v1122
    %1152 = vmatpush.bf16.msra.mxu0 %v1121
    %1153 = vmatpush.bf16.msra.mxu0 %v1120
    %1154 = vmatpush.bf16.msra.mxu0 %v1119
    %1155 = vmatpush.bf16.msra.mxu0 %v1118
    %1156 = vmatpush.bf16.msra.mxu0 %v1117
    %1157 = vmatmul.bf16.gmra.mxu0 %v1048
    %v1158 = vpop.f32.mrf.mxu0
    %v1159 = vadd.f32 %v1051, %v1158
    %v1160 = vpop.f32.mrf.mxu0
    %v1161 = vadd.f32 %v1051, %v1160
    %1162 = vdwg.mxu0
    %1163 = vmatpush.bf16.msra.mxu0 %v1132
    %1164 = vmatpush.bf16.msra.mxu0 %v1131
    %1165 = vmatpush.bf16.msra.mxu0 %v1130
    %1166 = vmatpush.bf16.msra.mxu0 %v1129
    %1167 = vmatpush.bf16.msra.mxu0 %v1128
    %1168 = vmatpush.bf16.msra.mxu0 %v1127
    %1169 = vmatpush.bf16.msra.mxu0 %v1126
    %1170 = vmatpush.bf16.msra.mxu0 %v1125
    %1171 = vmatmul.bf16.gmra.mxu0 %v1049
    %v1172 = vpop.f32.mrf.mxu0
    %v1173 = vadd.f32 %v1159, %v1172
    %v1174 = vpop.f32.mrf.mxu0
    %v1175 = vadd.f32 %v1161, %v1174
    %1176 = vdwg.mxu0
    %v1177 = vadd.f32 %v896, %v1173
    %v1178 = vadd.f32 %v897, %v1175
    %v1179 = vld [vmem:[%s14] sm:$0x1]
    %v1180 = vld [vmem:[%s15] sm:$0x1]
    %1181 = vadd.xlane.f32.xlu0 %v1177
    %v1182 = vpop.xlane.xlu0 %1181
    %1183 = vadd.xlane.f32.xlu0 %v1178
    %v1184 = vpop.xlane.xlu0 %1183
    %v1185 = vmul.f32 %v1182, %v159
    %v1186 = vmul.f32 %v1184, %v159
    %v1187 = vsub.f32 %v1177, %v1185
    %v1188 = vsub.f32 %v1178, %v1186
    %v1189 = vmul.f32 %v1187, %v1187
    %v1190 = vmul.f32 %v1188, %v1188
    %1191 = vadd.xlane.f32.xlu0 %v1189
    %v1192 = vpop.xlane.xlu0 %1191
    %1193 = vadd.xlane.f32.xlu0 %v1190
    %v1194 = vpop.xlane.xlu0 %1193
    %v1195 = vmul.f32 %v1192, %v159
    %v1196 = vmul.f32 %v1194, %v159
    %v1197 = vadd.f32 %v1195, 1e-12
    %v1198 = vadd.f32 %v1196, 1e-12
    %v1199 = vrsqrt.pop %v1197
    %v1200 = vmul.f32 %v1199, %v1197
    %v1201 = vmul.f32 %v1200, %v1199
    %v1202 = vmul.f32 0.5, %v1201
    %v1203 = vsub.f32 1.5, %v1202
    %v1204 = vmul.f32 %v1199, %v1203
    %vm1205 = vweird.f32 %v1197
    %vm1206 = vweird.f32 %v1199
    %vm1207 = vmor %vm1205, %vm1206
    %v1208 = vsel %vm1207, %v1199, %v1204
    %v1209 = vrsqrt.pop %v1198
    %v1210 = vmul.f32 %v1209, %v1198
    %v1211 = vmul.f32 %v1210, %v1209
    %v1212 = vmul.f32 0.5, %v1211
    %v1213 = vsub.f32 1.5, %v1212
    %v1214 = vmul.f32 %v1209, %v1213
    %vm1215 = vweird.f32 %v1198
    %vm1216 = vweird.f32 %v1209
    %vm1217 = vmor %vm1215, %vm1216
    %v1218 = vsel %vm1217, %v1209, %v1214
    %v1219 = vmul.f32 %v1187, %v1208
    %v1220 = vmul.f32 %v1188, %v1218
    %v1222 = vperm.slane %v1179, 0
    %v1224 = vmul.f32 %v1219, %v1222
    %v1225 = vmul.f32 %v1220, %v1222
    %v1227 = vperm.slane %v1180, 0
    %v1229 = vadd.f32 %v1224, %v1227
    %v1230 = vadd.f32 %v1225, %v1227
    %s1231 = scalar_lea.vmem [#allocation2], 192
    %v1232 = vld [vmem:[%s1231] sm:$0xff]
    %v1233 = vld [vmem:[%s1231 + $0x8] sm:$0xf]
    %v1234 = vld [vmem:[%s1231 + $0xc] sm:$0xff]
    %v1235 = vld [vmem:[%s1231 + $0x14] sm:$0xf]
    %v1236 = vld [vmem:[%s1231 + $0x18] sm:$0xff]
    %v1237 = vld [vmem:[%s1231 + $0x20] sm:$0xf]
    %v1238 = vld [vmem:[%s1231 + $0x24] sm:$0xff]
    %v1239 = vld [vmem:[%s1231 + $0x2c] sm:$0xf]
    %v1240 = vld [vmem:[%s1231 + $0x30] sm:$0xff]
    %v1241 = vld [vmem:[%s1231 + $0x38] sm:$0xf]
    %v1242 = vld [vmem:[%s1231 + $0x3c] sm:$0xff]
    %v1243 = vld [vmem:[%s1231 + $0x44] sm:$0xf]
    %v1244 = vld [vmem:[%s1231 + $0x48] sm:$0xff]
    %v1245 = vld [vmem:[%s1231 + $0x50] sm:$0xf]
    %v1246 = vld [vmem:[%s1231 + $0x54] sm:$0xff]
    %v1247 = vld [vmem:[%s1231 + $0x5c] sm:$0xf]
    %v1248 = vld [vmem:[%s1231 + $0x60] sm:$0xff]
    %v1249 = vld [vmem:[%s1231 + $0x68] sm:$0xf]
    %v1250 = vld [vmem:[%s1231 + $0x6c] sm:$0xff]
    %v1251 = vld [vmem:[%s1231 + $0x74] sm:$0xf]
    %v1252 = vld [vmem:[%s1231 + $0x78] sm:$0xff]
    %v1253 = vld [vmem:[%s1231 + $0x80] sm:$0xf]
    %v1254 = vld [vmem:[%s1231 + $0x84] sm:$0xff]
    %v1255 = vld [vmem:[%s1231 + $0x8c] sm:$0xf]
    %v1256 = vld [vmem:[%s1231 + $0x90] sm:$0xff]
    %v1257 = vld [vmem:[%s1231 + $0x98] sm:$0xf]
    %v1258 = vld [vmem:[%s1231 + $0x9c] sm:$0xff]
    %v1259 = vld [vmem:[%s1231 + $0xa4] sm:$0xf]
    %v1260 = vld [vmem:[%s1231 + $0xa8] sm:$0xff]
    %v1261 = vld [vmem:[%s1231 + $0xb0] sm:$0xf]
    %v1262 = vld [vmem:[%s1231 + $0xb4] sm:$0xff]
    %v1263 = vld [vmem:[%s1231 + $0xbc] sm:$0xf]
    %s1264 = scalar_lea.vmem %s5, 3
    %v1265 = vld [vmem:[%s1264] sm:$0x7]
    %s1266 = scalar_lea.vmem %s6, 64
    %v1267 = vld [vmem:[%s1266] sm:$0xf]
    %v1268 = vld [vmem:[%s1266 + $0x4] sm:$0xf]
    %v1269 = vld [vmem:[%s1266 + $0x8] sm:$0xf]
    %v1270 = vld [vmem:[%s1266 + $0xc] sm:$0xf]
    %v1271 = vld [vmem:[%s1266 + $0x10] sm:$0xf]
    %v1272 = vld [vmem:[%s1266 + $0x14] sm:$0xf]
    %v1273 = vld [vmem:[%s1266 + $0x18] sm:$0xf]
    %v1274 = vld [vmem:[%s1266 + $0x1c] sm:$0xf]
    %v1275 = vld [vmem:[%s1266 + $0x20] sm:$0xf]
    %v1276 = vld [vmem:[%s1266 + $0x24] sm:$0xf]
    %v1277 = vld [vmem:[%s1266 + $0x28] sm:$0xf]
    %v1278 = vld [vmem:[%s1266 + $0x2c] sm:$0xf]
    %v1279 = vld [vmem:[%s1266 + $0x30] sm:$0xf]
    %v1280 = vld [vmem:[%s1266 + $0x34] sm:$0xf]
    %v1281 = vld [vmem:[%s1266 + $0x38] sm:$0xf]
    %v1282 = vld [vmem:[%s1266 + $0x3c] sm:$0xf]
    %s1283 = scalar_lea.vmem %s7, 1
    %v1284 = vld [vmem:[%s1283] sm:$0x1]
    %s1285 = scalar_lea.vmem [#allocation5], 128
    %v1286 = vld [vmem:[%s1285] sm:$0xff]
    %v1287 = vld [vmem:[%s1285 + $0x8] sm:$0xff]
    %v1288 = vld [vmem:[%s1285 + $0x10] sm:$0xff]
    %v1289 = vld [vmem:[%s1285 + $0x18] sm:$0xff]
    %v1290 = vld [vmem:[%s1285 + $0x20] sm:$0xff]
    %v1291 = vld [vmem:[%s1285 + $0x28] sm:$0xff]
    %v1292 = vld [vmem:[%s1285 + $0x30] sm:$0xff]
    %v1293 = vld [vmem:[%s1285 + $0x38] sm:$0xff]
    %v1294 = vld [vmem:[%s1285 + $0x40] sm:$0xff]
    %v1295 = vld [vmem:[%s1285 + $0x48] sm:$0xff]
    %v1296 = vld [vmem:[%s1285 + $0x50] sm:$0xff]
    %v1297 = vld [vmem:[%s1285 + $0x58] sm:$0xff]
    %v1298 = vld [vmem:[%s1285 + $0x60] sm:$0xff]
    %v1299 = vld [vmem:[%s1285 + $0x68] sm:$0xff]
    %v1300 = vld [vmem:[%s1285 + $0x70] sm:$0xff]
    %v1301 = vld [vmem:[%s1285 + $0x78] sm:$0xff]
    %s1302 = scalar_lea.vmem %s11, 2
    %v1303 = vld [vmem:[%s1302] sm:$0x3]
    %s1304 = scalar_lea.vmem [#allocation7], 128
    %v1305 = vld [vmem:[%s1304] sm:$0xf]
    %v1306 = vld [vmem:[%s1304 + $0x4] sm:$0xf]
    %v1307 = vld [vmem:[%s1304 + $0x8] sm:$0xf]
    %v1308 = vld [vmem:[%s1304 + $0xc] sm:$0xf]
    %v1309 = vld [vmem:[%s1304 + $0x10] sm:$0xf]
    %v1310 = vld [vmem:[%s1304 + $0x14] sm:$0xf]
    %v1311 = vld [vmem:[%s1304 + $0x18] sm:$0xf]
    %v1312 = vld [vmem:[%s1304 + $0x1c] sm:$0xf]
    %v1313 = vld [vmem:[%s1304 + $0x20] sm:$0xf]
    %v1314 = vld [vmem:[%s1304 + $0x24] sm:$0xf]
    %v1315 = vld [vmem:[%s1304 + $0x28] sm:$0xf]
    %v1316 = vld [vmem:[%s1304 + $0x2c] sm:$0xf]
    %v1317 = vld [vmem:[%s1304 + $0x30] sm:$0xf]
    %v1318 = vld [vmem:[%s1304 + $0x34] sm:$0xf]
    %v1319 = vld [vmem:[%s1304 + $0x38] sm:$0xf]
    %v1320 = vld [vmem:[%s1304 + $0x3c] sm:$0xf]
    %v1321 = vld [vmem:[%s1304 + $0x40] sm:$0xf]
    %v1322 = vld [vmem:[%s1304 + $0x44] sm:$0xf]
    %v1323 = vld [vmem:[%s1304 + $0x48] sm:$0xf]
    %v1324 = vld [vmem:[%s1304 + $0x4c] sm:$0xf]
    %v1325 = vld [vmem:[%s1304 + $0x50] sm:$0xf]
    %v1326 = vld [vmem:[%s1304 + $0x54] sm:$0xf]
    %v1327 = vld [vmem:[%s1304 + $0x58] sm:$0xf]
    %v1328 = vld [vmem:[%s1304 + $0x5c] sm:$0xf]
    %v1329 = vld [vmem:[%s1304 + $0x60] sm:$0xf]
    %v1330 = vld [vmem:[%s1304 + $0x64] sm:$0xf]
    %v1331 = vld [vmem:[%s1304 + $0x68] sm:$0xf]
    %v1332 = vld [vmem:[%s1304 + $0x6c] sm:$0xf]
    %v1333 = vld [vmem:[%s1304 + $0x70] sm:$0xf]
    %v1334 = vld [vmem:[%s1304 + $0x74] sm:$0xf]
    %v1335 = vld [vmem:[%s1304 + $0x78] sm:$0xf]
    %v1336 = vld [vmem:[%s1304 + $0x7c] sm:$0xf]
    %s1337 = scalar_lea.vmem %s13, 1
    %v1338 = vld [vmem:[%s1337] sm:$0x1]
    %v1339 = vpack.c.bf16 %v1230, %v1229
    %v1341 = vperm.slane %v1265, 0
    %v1342 = vperm.slane %v1265, 1
    %v1343 = vperm.slane %v1265, 2
    %v1379 = vunpack.c.l.b16 %v1232
    %v1380 = vunpack.c.h.b16 %v1232
    %v1381 = vunpack.c.l.b16 %v1233
    %v1382 = vunpack.c.l.b16 %v1234
    %v1383 = vunpack.c.h.b16 %v1234
    %v1384 = vunpack.c.l.b16 %v1235
    %v1385 = vunpack.c.l.b16 %v1236
    %v1386 = vunpack.c.h.b16 %v1236
    %v1387 = vunpack.c.l.b16 %v1237
    %v1388 = vunpack.c.l.b16 %v1238
    %v1389 = vunpack.c.h.b16 %v1238
    %v1390 = vunpack.c.l.b16 %v1239
    %v1391 = vunpack.c.l.b16 %v1240
    %v1392 = vunpack.c.h.b16 %v1240
    %v1393 = vunpack.c.l.b16 %v1241
    %v1394 = vunpack.c.l.b16 %v1242
    %v1395 = vunpack.c.h.b16 %v1242
    %v1396 = vunpack.c.l.b16 %v1243
    %v1397 = vunpack.c.l.b16 %v1244
    %v1398 = vunpack.c.h.b16 %v1244
    %v1399 = vunpack.c.l.b16 %v1245
    %v1400 = vunpack.c.l.b16 %v1246
    %v1401 = vunpack.c.h.b16 %v1246
    %v1402 = vunpack.c.l.b16 %v1247
    %v1403 = vunpack.c.l.b16 %v1248
    %v1404 = vunpack.c.h.b16 %v1248
    %v1405 = vunpack.c.l.b16 %v1249
    %v1406 = vunpack.c.l.b16 %v1250
    %v1407 = vunpack.c.h.b16 %v1250
    %v1408 = vunpack.c.l.b16 %v1251
    %v1409 = vunpack.c.l.b16 %v1252
    %v1410 = vunpack.c.h.b16 %v1252
    %v1411 = vunpack.c.l.b16 %v1253
    %v1412 = vunpack.c.l.b16 %v1254
    %v1413 = vunpack.c.h.b16 %v1254
    %v1414 = vunpack.c.l.b16 %v1255
    %v1415 = vunpack.c.l.b16 %v1256
    %v1416 = vunpack.c.h.b16 %v1256
    %v1417 = vunpack.c.l.b16 %v1257
    %v1418 = vunpack.c.l.b16 %v1258
    %v1419 = vunpack.c.h.b16 %v1258
    %v1420 = vunpack.c.l.b16 %v1259
    %v1421 = vunpack.c.l.b16 %v1260
    %v1422 = vunpack.c.h.b16 %v1260
    %v1423 = vunpack.c.l.b16 %v1261
    %v1424 = vunpack.c.l.b16 %v1262
    %v1425 = vunpack.c.h.b16 %v1262
    %v1426 = vunpack.c.l.b16 %v1263
    %v1427 = vpack.c.b16 %v1382, %v1379
    %v1428 = vpack.c.b16 %v1383, %v1380
    %v1429 = vpack.c.b16 %v1384, %v1381
    %v1430 = vpack.c.b16 %v1388, %v1385
    %v1431 = vpack.c.b16 %v1389, %v1386
    %v1432 = vpack.c.b16 %v1390, %v1387
    %v1433 = vpack.c.b16 %v1394, %v1391
    %v1434 = vpack.c.b16 %v1395, %v1392
    %v1435 = vpack.c.b16 %v1396, %v1393
    %v1436 = vpack.c.b16 %v1400, %v1397
    %v1437 = vpack.c.b16 %v1401, %v1398
    %v1438 = vpack.c.b16 %v1402, %v1399
    %v1439 = vpack.c.b16 %v1406, %v1403
    %v1440 = vpack.c.b16 %v1407, %v1404
    %v1441 = vpack.c.b16 %v1408, %v1405
    %v1442 = vpack.c.b16 %v1412, %v1409
    %v1443 = vpack.c.b16 %v1413, %v1410
    %v1444 = vpack.c.b16 %v1414, %v1411
    %v1445 = vpack.c.b16 %v1418, %v1415
    %v1446 = vpack.c.b16 %v1419, %v1416
    %v1447 = vpack.c.b16 %v1420, %v1417
    %v1448 = vpack.c.b16 %v1424, %v1421
    %v1449 = vpack.c.b16 %v1425, %v1422
    %v1450 = vpack.c.b16 %v1426, %v1423
    %1475 = vmatpush.bf16.msra.mxu0 %v1448
    %1476 = vmatpush.bf16.msra.mxu0 %v1445
    %1477 = vmatpush.bf16.msra.mxu0 %v1442
    %1478 = vmatpush.bf16.msra.mxu0 %v1439
    %1479 = vmatpush.bf16.msra.mxu0 %v1436
    %1480 = vmatpush.bf16.msra.mxu0 %v1433
    %1481 = vmatpush.bf16.msra.mxu0 %v1430
    %1482 = vmatpush.bf16.msra.mxu0 %v1427
    %1483 = vmatmul.bf16.gmra.mxu0 %v1339
    %v1484 = vpop.f32.mrf.mxu0
    %v1485 = vadd.f32 %v1341, %v1484
    %v1486 = vpop.f32.mrf.mxu0
    %v1487 = vadd.f32 %v1341, %v1486
    %1488 = vdwg.mxu0
    %1489 = vmatpush.bf16.msra.mxu0 %v1449
    %1490 = vmatpush.bf16.msra.mxu0 %v1446
    %1491 = vmatpush.bf16.msra.mxu0 %v1443
    %1492 = vmatpush.bf16.msra.mxu0 %v1440
    %1493 = vmatpush.bf16.msra.mxu0 %v1437
    %1494 = vmatpush.bf16.msra.mxu0 %v1434
    %1495 = vmatpush.bf16.msra.mxu0 %v1431
    %1496 = vmatpush.bf16.msra.mxu0 %v1428
    %1497 = vmatmul.bf16.gmra.mxu0 %v1339
    %v1498 = vpop.f32.mrf.mxu0
    %v1499 = vadd.f32 %v1342, %v1498
    %v1500 = vpop.f32.mrf.mxu0
    %v1501 = vadd.f32 %v1342, %v1500
    %1502 = vdwg.mxu0
    %1503 = vmatpush.bf16.msra.mxu0 %v1450
    %1504 = vmatpush.bf16.msra.mxu0 %v1447
    %1505 = vmatpush.bf16.msra.mxu0 %v1444
    %1506 = vmatpush.bf16.msra.mxu0 %v1441
    %1507 = vmatpush.bf16.msra.mxu0 %v1438
    %1508 = vmatpush.bf16.msra.mxu0 %v1435
    %1509 = vmatpush.bf16.msra.mxu0 %v1432
    %1510 = vmatpush.bf16.msra.mxu0 %v1429
    %1511 = vmatmul.bf16.gmra.mxu0 %v1339
    %v1512 = vpop.f32.mrf.mxu0
    %v1513 = vadd.f32 %v1343, %v1512
    %v1514 = vpop.f32.mrf.mxu0
    %v1515 = vadd.f32 %v1343, %v1514
    %1516 = vdwg.mxu0
    %v1517 = vpack.c.bf16 %v1485, %v1485
    %v1518 = vpack.c.bf16 %v1499, %v1499
    %v1519 = vpack.c.bf16 %v1513, %v1513
    %v1521 = vsel %vm488, %v1517, 0
    %v1524 = vsel %vm488, %v1518, 0
    %1526 = vmatpush.bf16.xpose.msra.mxu0 0
    %1527 = vmatpush.bf16.xpose.msra.mxu0 0
    %1528 = vmatpush.bf16.xpose.msra.mxu0 0
    %1529 = vmatpush.bf16.xpose.msra.mxu0 0
    %1530 = vmatpush.bf16.xpose.msra.mxu0 0
    %1531 = vmatpush.bf16.xpose.msra.mxu0 0
    %1532 = vmatpush.bf16.xpose.msra.mxu0 0
    %1533 = vmatpush.bf16.xpose.msra.mxu0 %v1524
    %1534 = vmatmul.bf16.gmra.mxu0 %v1521
    %v1535 = vpop.f32.mrf.mxu0
    %v1536 = vadd.f32 0.0, %v1535
    %v1537 = vpop.f32.mrf.mxu0
    %1538 = vdwg.mxu0
    %v1539 = vmul.f32 %v1536, 0.125
    %v1540 = vadd.f32 %v1539, %v509
    %v1541 = vsel %vm511, %v1540, -inf
    %1542 = vmax.xlane.f32.xlu0 %v1541
    %v1543 = vpop.xlane.xlu0 %1542
    %v1544 = vsub.f32 %v1540, %v1543
    %v1545 = vmul.f32 %v1544, 1.442695
    %v1546 = vpow.pop %v1545
    %v1547 = vsel %vm511, %v1546, 0.0
    %1548 = vadd.xlane.f32.xlu0 %v1547
    %v1549 = vpop.xlane.xlu0 %1548
    %v1550 = vrcp.pop %v1549
    %v1551 = vmul.f32 %v1546, %v1550
    %v1552 = vpack.c.bf16 %v1551, %v1551
    %v1554 = vsel %vm511, %v1552, 0
    %v1557 = vsel %vm527, %v1519, 0
    %1559 = vmatpush.bf16.msra.mxu0 0
    %1560 = vmatpush.bf16.msra.mxu0 0
    %1561 = vmatpush.bf16.msra.mxu0 0
    %1562 = vmatpush.bf16.msra.mxu0 0
    %1563 = vmatpush.bf16.msra.mxu0 0
    %1564 = vmatpush.bf16.msra.mxu0 0
    %1565 = vmatpush.bf16.msra.mxu0 0
    %1566 = vmatpush.bf16.msra.mxu0 %v1557
    %1567 = vmatmul.bf16.gmra.mxu0 %v1554
    %v1568 = vpop.f32.mrf.mxu0
    %v1569 = vadd.f32 0.0, %v1568
    %v1570 = vpop.f32.mrf.mxu0
    %1571 = vdwg.mxu0
    %v1572 = vpack.c.bf16 %v1569, %v1569
    %1574 = vrot.lane.b32.xlu0 %v1517, 64
    %v1575 = vpop.permute.xlu0 %1574
    %1577 = vrot.lane.b32.xlu0 %v1518, 64
    %v1578 = vpop.permute.xlu0 %1577
    %v1580 = vsel %vm488, %v1575, 0
    %v1583 = vsel %vm488, %v1578, 0
    %1585 = vmatpush.bf16.xpose.msra.mxu0 0
    %1586 = vmatpush.bf16.xpose.msra.mxu0 0
    %1587 = vmatpush.bf16.xpose.msra.mxu0 0
    %1588 = vmatpush.bf16.xpose.msra.mxu0 0
    %1589 = vmatpush.bf16.xpose.msra.mxu0 0
    %1590 = vmatpush.bf16.xpose.msra.mxu0 0
    %1591 = vmatpush.bf16.xpose.msra.mxu0 0
    %1592 = vmatpush.bf16.xpose.msra.mxu0 %v1583
    %1593 = vmatmul.bf16.gmra.mxu0 %v1580
    %v1594 = vpop.f32.mrf.mxu0
    %v1595 = vadd.f32 0.0, %v1594
    %v1596 = vpop.f32.mrf.mxu0
    %1597 = vdwg.mxu0
    %v1598 = vmul.f32 %v1595, 0.125
    %v1599 = vadd.f32 %v1598, %v509
    %v1600 = vsel %vm511, %v1599, -inf
    %1601 = vmax.xlane.f32.xlu0 %v1600
    %v1602 = vpop.xlane.xlu0 %1601
    %v1603 = vsub.f32 %v1599, %v1602
    %v1604 = vmul.f32 %v1603, 1.442695
    %v1605 = vpow.pop %v1604
    %v1606 = vsel %vm511, %v1605, 0.0
    %1607 = vadd.xlane.f32.xlu0 %v1606
    %v1608 = vpop.xlane.xlu0 %1607
    %v1609 = vrcp.pop %v1608
    %v1610 = vmul.f32 %v1605, %v1609
    %v1611 = vpack.c.bf16 %v1610, %v1610
    %1613 = vrot.lane.b32.xlu0 %v1519, 64
    %v1614 = vpop.permute.xlu0 %1613
    %v1616 = vsel %vm511, %v1611, 0
    %v1619 = vsel %vm527, %v1614, 0
    %1621 = vmatpush.bf16.msra.mxu0 0
    %1622 = vmatpush.bf16.msra.mxu0 0
    %1623 = vmatpush.bf16.msra.mxu0 0
    %1624 = vmatpush.bf16.msra.mxu0 0
    %1625 = vmatpush.bf16.msra.mxu0 0
    %1626 = vmatpush.bf16.msra.mxu0 0
    %1627 = vmatpush.bf16.msra.mxu0 0
    %1628 = vmatpush.bf16.msra.mxu0 %v1619
    %1629 = vmatmul.bf16.gmra.mxu0 %v1616
    %v1630 = vpop.f32.mrf.mxu0
    %v1631 = vadd.f32 0.0, %v1630
    %v1632 = vpop.f32.mrf.mxu0
    %1633 = vdwg.mxu0
    %v1634 = vpack.c.bf16 %v1631, %v1631
    %v1643 = vunpack.c.l.b16 %v1275
    %v1644 = vunpack.c.l.b16 %v1276
    %v1645 = vunpack.c.l.b16 %v1277
    %v1646 = vunpack.c.l.b16 %v1278
    %v1647 = vunpack.c.l.b16 %v1279
    %v1648 = vunpack.c.l.b16 %v1280
    %v1649 = vunpack.c.l.b16 %v1281
    %v1650 = vunpack.c.l.b16 %v1282
    %v1651 = vpack.c.b16 %v1644, %v1643
    %v1652 = vpack.c.b16 %v1646, %v1645
    %v1653 = vpack.c.b16 %v1648, %v1647
    %v1654 = vpack.c.b16 %v1650, %v1649
    %v1660 = vsel %vm488, %v1634, 0
    %1662 = vmatpush.bf16.msra.mxu0 0
    %1663 = vmatpush.bf16.msra.mxu0 0
    %1664 = vmatpush.bf16.msra.mxu0 0
    %1665 = vmatpush.bf16.msra.mxu0 0
    %1666 = vmatpush.bf16.msra.mxu0 %v1654
    %1667 = vmatpush.bf16.msra.mxu0 %v1653
    %1668 = vmatpush.bf16.msra.mxu0 %v1652
    %1669 = vmatpush.bf16.msra.mxu0 %v1651
    %1670 = vmatmul.bf16.gmra.mxu0 %v1660
    %v1671 = vpop.f32.mrf.mxu0
    %v1672 = vadd.f32 0.0, %v1671
    %v1673 = vpop.f32.mrf.mxu0
    %1674 = vdwg.mxu0
    %v1683 = vunpack.c.l.b16 %v1267
    %v1684 = vunpack.c.l.b16 %v1268
    %v1685 = vunpack.c.l.b16 %v1269
    %v1686 = vunpack.c.l.b16 %v1270
    %v1687 = vunpack.c.l.b16 %v1271
    %v1688 = vunpack.c.l.b16 %v1272
    %v1689 = vunpack.c.l.b16 %v1273
    %v1690 = vunpack.c.l.b16 %v1274
    %v1691 = vpack.c.b16 %v1684, %v1683
    %v1692 = vpack.c.b16 %v1686, %v1685
    %v1693 = vpack.c.b16 %v1688, %v1687
    %v1694 = vpack.c.b16 %v1690, %v1689
    %v1700 = vsel %vm488, %v1572, 0
    %1702 = vmatpush.bf16.msra.mxu0 0
    %1703 = vmatpush.bf16.msra.mxu0 0
    %1704 = vmatpush.bf16.msra.mxu0 0
    %1705 = vmatpush.bf16.msra.mxu0 0
    %1706 = vmatpush.bf16.msra.mxu0 %v1694
    %1707 = vmatpush.bf16.msra.mxu0 %v1693
    %1708 = vmatpush.bf16.msra.mxu0 %v1692
    %1709 = vmatpush.bf16.msra.mxu0 %v1691
    %1710 = vmatmul.bf16.gmra.mxu0 %v1700
    %v1711 = vpop.f32.mrf.mxu0
    %v1712 = vadd.f32 %v1672, %v1711
    %v1713 = vpop.f32.mrf.mxu0
    %1714 = vdwg.mxu0
    %v1715 = vpack.c.bf16 %v1487, %v1487
    %v1716 = vpack.c.bf16 %v1501, %v1501
    %v1717 = vpack.c.bf16 %v1515, %v1515
    %v1719 = vsel %vm488, %v1715, 0
    %v1722 = vsel %vm488, %v1716, 0
    %1724 = vmatpush.bf16.xpose.msra.mxu0 0
    %1725 = vmatpush.bf16.xpose.msra.mxu0 0
    %1726 = vmatpush.bf16.xpose.msra.mxu0 0
    %1727 = vmatpush.bf16.xpose.msra.mxu0 0
    %1728 = vmatpush.bf16.xpose.msra.mxu0 0
    %1729 = vmatpush.bf16.xpose.msra.mxu0 0
    %1730 = vmatpush.bf16.xpose.msra.mxu0 0
    %1731 = vmatpush.bf16.xpose.msra.mxu0 %v1722
    %1732 = vmatmul.bf16.gmra.mxu0 %v1719
    %v1733 = vpop.f32.mrf.mxu0
    %v1734 = vadd.f32 0.0, %v1733
    %v1735 = vpop.f32.mrf.mxu0
    %1736 = vdwg.mxu0
    %v1737 = vmul.f32 %v1734, 0.125
    %v1738 = vadd.f32 %v1737, %v711
    %v1739 = vsel %vm511, %v1738, -inf
    %1740 = vmax.xlane.f32.xlu0 %v1739
    %v1741 = vpop.xlane.xlu0 %1740
    %v1742 = vsub.f32 %v1738, %v1741
    %v1743 = vmul.f32 %v1742, 1.442695
    %v1744 = vpow.pop %v1743
    %v1745 = vsel %vm511, %v1744, 0.0
    %1746 = vadd.xlane.f32.xlu0 %v1745
    %v1747 = vpop.xlane.xlu0 %1746
    %v1748 = vrcp.pop %v1747
    %v1749 = vmul.f32 %v1744, %v1748
    %v1750 = vpack.c.bf16 %v1749, %v1749
    %v1752 = vsel %vm511, %v1750, 0
    %v1755 = vsel %vm527, %v1717, 0
    %1757 = vmatpush.bf16.msra.mxu0 0
    %1758 = vmatpush.bf16.msra.mxu0 0
    %1759 = vmatpush.bf16.msra.mxu0 0
    %1760 = vmatpush.bf16.msra.mxu0 0
    %1761 = vmatpush.bf16.msra.mxu0 0
    %1762 = vmatpush.bf16.msra.mxu0 0
    %1763 = vmatpush.bf16.msra.mxu0 0
    %1764 = vmatpush.bf16.msra.mxu0 %v1755
    %1765 = vmatmul.bf16.gmra.mxu0 %v1752
    %v1766 = vpop.f32.mrf.mxu0
    %v1767 = vadd.f32 0.0, %v1766
    %v1768 = vpop.f32.mrf.mxu0
    %1769 = vdwg.mxu0
    %v1770 = vpack.c.bf16 %v1767, %v1767
    %1772 = vrot.lane.b32.xlu0 %v1715, 64
    %v1773 = vpop.permute.xlu0 %1772
    %1775 = vrot.lane.b32.xlu0 %v1716, 64
    %v1776 = vpop.permute.xlu0 %1775
    %v1778 = vsel %vm488, %v1773, 0
    %v1781 = vsel %vm488, %v1776, 0
    %1783 = vmatpush.bf16.xpose.msra.mxu0 0
    %1784 = vmatpush.bf16.xpose.msra.mxu0 0
    %1785 = vmatpush.bf16.xpose.msra.mxu0 0
    %1786 = vmatpush.bf16.xpose.msra.mxu0 0
    %1787 = vmatpush.bf16.xpose.msra.mxu0 0
    %1788 = vmatpush.bf16.xpose.msra.mxu0 0
    %1789 = vmatpush.bf16.xpose.msra.mxu0 0
    %1790 = vmatpush.bf16.xpose.msra.mxu0 %v1781
    %1791 = vmatmul.bf16.gmra.mxu0 %v1778
    %v1792 = vpop.f32.mrf.mxu0
    %v1793 = vadd.f32 0.0, %v1792
    %v1794 = vpop.f32.mrf.mxu0
    %1795 = vdwg.mxu0
    %v1796 = vmul.f32 %v1793, 0.125
    %v1797 = vadd.f32 %v1796, %v711
    %v1798 = vsel %vm511, %v1797, -inf
    %1799 = vmax.xlane.f32.xlu0 %v1798
    %v1800 = vpop.xlane.xlu0 %1799
    %v1801 = vsub.f32 %v1797, %v1800
    %v1802 = vmul.f32 %v1801, 1.442695
    %v1803 = vpow.pop %v1802
    %v1804 = vsel %vm511, %v1803, 0.0
    %1805 = vadd.xlane.f32.xlu0 %v1804
    %v1806 = vpop.xlane.xlu0 %1805
    %v1807 = vrcp.pop %v1806
    %v1808 = vmul.f32 %v1803, %v1807
    %v1809 = vpack.c.bf16 %v1808, %v1808
    %1811 = vrot.lane.b32.xlu0 %v1717, 64
    %v1812 = vpop.permute.xlu0 %1811
    %v1814 = vsel %vm511, %v1809, 0
    %v1817 = vsel %vm527, %v1812, 0
    %1819 = vmatpush.bf16.msra.mxu0 0
    %1820 = vmatpush.bf16.msra.mxu0 0
    %1821 = vmatpush.bf16.msra.mxu0 0
    %1822 = vmatpush.bf16.msra.mxu0 0
    %1823 = vmatpush.bf16.msra.mxu0 0
    %1824 = vmatpush.bf16.msra.mxu0 0
    %1825 = vmatpush.bf16.msra.mxu0 0
    %1826 = vmatpush.bf16.msra.mxu0 %v1817
    %1827 = vmatmul.bf16.gmra.mxu0 %v1814
    %v1828 = vpop.f32.mrf.mxu0
    %v1829 = vadd.f32 0.0, %v1828
    %v1830 = vpop.f32.mrf.mxu0
    %1831 = vdwg.mxu0
    %v1832 = vpack.c.bf16 %v1829, %v1829
    %v1834 = vsel %vm488, %v1832, 0
    %1836 = vmatpush.bf16.msra.mxu0 0
    %1837 = vmatpush.bf16.msra.mxu0 0
    %1838 = vmatpush.bf16.msra.mxu0 0
    %1839 = vmatpush.bf16.msra.mxu0 0
    %1840 = vmatpush.bf16.msra.mxu0 %v1654
    %1841 = vmatpush.bf16.msra.mxu0 %v1653
    %1842 = vmatpush.bf16.msra.mxu0 %v1652
    %1843 = vmatpush.bf16.msra.mxu0 %v1651
    %1844 = vmatmul.bf16.gmra.mxu0 %v1834
    %v1845 = vpop.f32.mrf.mxu0
    %v1846 = vadd.f32 0.0, %v1845
    %v1847 = vpop.f32.mrf.mxu0
    %1848 = vdwg.mxu0
    %v1850 = vsel %vm488, %v1770, 0
    %1852 = vmatpush.bf16.msra.mxu0 0
    %1853 = vmatpush.bf16.msra.mxu0 0
    %1854 = vmatpush.bf16.msra.mxu0 0
    %1855 = vmatpush.bf16.msra.mxu0 0
    %1856 = vmatpush.bf16.msra.mxu0 %v1694
    %1857 = vmatpush.bf16.msra.mxu0 %v1693
    %1858 = vmatpush.bf16.msra.mxu0 %v1692
    %1859 = vmatpush.bf16.msra.mxu0 %v1691
    %1860 = vmatmul.bf16.gmra.mxu0 %v1850
    %v1861 = vpop.f32.mrf.mxu0
    %v1862 = vadd.f32 %v1846, %v1861
    %v1863 = vpop.f32.mrf.mxu0
    %1864 = vdwg.mxu0
    %v1866 = vperm.slane %v1284, 0
    %v1868 = vadd.f32 %v1712, %v1866
    %v1869 = vadd.f32 %v1862, %v1866
    %v1870 = vadd.f32 %v1229, %v1868
    %v1871 = vadd.f32 %v1230, %v1869
    %s1872 = scalar_lea.vmem %s8, 1
    %v1873 = vld [vmem:[%s1872] sm:$0x1]
    %s1874 = scalar_lea.vmem %s9, 1
    %v1875 = vld [vmem:[%s1874] sm:$0x1]
    %1876 = vadd.xlane.f32.xlu0 %v1870
    %v1877 = vpop.xlane.xlu0 %1876
    %1878 = vadd.xlane.f32.xlu0 %v1871
    %v1879 = vpop.xlane.xlu0 %1878
    %v1880 = vmul.f32 %v1877, %v159
    %v1881 = vmul.f32 %v1879, %v159
    %v1882 = vsub.f32 %v1870, %v1880
    %v1883 = vsub.f32 %v1871, %v1881
    %v1884 = vmul.f32 %v1882, %v1882
    %v1885 = vmul.f32 %v1883, %v1883
    %1886 = vadd.xlane.f32.xlu0 %v1884
    %v1887 = vpop.xlane.xlu0 %1886
    %1888 = vadd.xlane.f32.xlu0 %v1885
    %v1889 = vpop.xlane.xlu0 %1888
    %v1890 = vmul.f32 %v1887, %v159
    %v1891 = vmul.f32 %v1889, %v159
    %v1892 = vadd.f32 %v1890, 1e-12
    %v1893 = vadd.f32 %v1891, 1e-12
    %v1894 = vrsqrt.pop %v1892
    %v1895 = vmul.f32 %v1894, %v1892
    %v1896 = vmul.f32 %v1895, %v1894
    %v1897 = vmul.f32 0.5, %v1896
    %v1898 = vsub.f32 1.5, %v1897
    %v1899 = vmul.f32 %v1894, %v1898
    %vm1900 = vweird.f32 %v1892
    %vm1901 = vweird.f32 %v1894
    %vm1902 = vmor %vm1900, %vm1901
    %v1903 = vsel %vm1902, %v1894, %v1899
    %v1904 = vrsqrt.pop %v1893
    %v1905 = vmul.f32 %v1904, %v1893
    %v1906 = vmul.f32 %v1905, %v1904
    %v1907 = vmul.f32 0.5, %v1906
    %v1908 = vsub.f32 1.5, %v1907
    %v1909 = vmul.f32 %v1904, %v1908
    %vm1910 = vweird.f32 %v1893
    %vm1911 = vweird.f32 %v1904
    %vm1912 = vmor %vm1910, %vm1911
    %v1913 = vsel %vm1912, %v1904, %v1909
    %v1914 = vmul.f32 %v1882, %v1903
    %v1915 = vmul.f32 %v1883, %v1913
    %v1917 = vperm.slane %v1873, 0
    %v1919 = vmul.f32 %v1914, %v1917
    %v1920 = vmul.f32 %v1915, %v1917
    %v1922 = vperm.slane %v1875, 0
    %v1924 = vadd.f32 %v1919, %v1922
    %v1925 = vadd.f32 %v1920, %v1922
    %v1926 = vpack.c.bf16 %v1925, %v1924
    %v1928 = vperm.slane %v1303, 0
    %v1929 = vperm.slane %v1303, 1
    %v1948 = vunpack.c.l.b16 %v1286
    %v1949 = vunpack.c.h.b16 %v1286
    %v1950 = vunpack.c.l.b16 %v1287
    %v1951 = vunpack.c.h.b16 %v1287
    %v1952 = vunpack.c.l.b16 %v1288
    %v1953 = vunpack.c.h.b16 %v1288
    %v1954 = vunpack.c.l.b16 %v1289
    %v1955 = vunpack.c.h.b16 %v1289
    %v1956 = vunpack.c.l.b16 %v1290
    %v1957 = vunpack.c.h.b16 %v1290
    %v1958 = vunpack.c.l.b16 %v1291
    %v1959 = vunpack.c.h.b16 %v1291
    %v1960 = vunpack.c.l.b16 %v1292
    %v1961 = vunpack.c.h.b16 %v1292
    %v1962 = vunpack.c.l.b16 %v1293
    %v1963 = vunpack.c.h.b16 %v1293
    %v1964 = vunpack.c.l.b16 %v1294
    %v1965 = vunpack.c.h.b16 %v1294
    %v1966 = vunpack.c.l.b16 %v1295
    %v1967 = vunpack.c.h.b16 %v1295
    %v1968 = vunpack.c.l.b16 %v1296
    %v1969 = vunpack.c.h.b16 %v1296
    %v1970 = vunpack.c.l.b16 %v1297
    %v1971 = vunpack.c.h.b16 %v1297
    %v1972 = vunpack.c.l.b16 %v1298
    %v1973 = vunpack.c.h.b16 %v1298
    %v1974 = vunpack.c.l.b16 %v1299
    %v1975 = vunpack.c.h.b16 %v1299
    %v1976 = vunpack.c.l.b16 %v1300
    %v1977 = vunpack.c.h.b16 %v1300
    %v1978 = vunpack.c.l.b16 %v1301
    %v1979 = vunpack.c.h.b16 %v1301
    %v1980 = vpack.c.b16 %v1950, %v1948
    %v1981 = vpack.c.b16 %v1951, %v1949
    %v1982 = vpack.c.b16 %v1954, %v1952
    %v1983 = vpack.c.b16 %v1955, %v1953
    %v1984 = vpack.c.b16 %v1958, %v1956
    %v1985 = vpack.c.b16 %v1959, %v1957
    %v1986 = vpack.c.b16 %v1962, %v1960
    %v1987 = vpack.c.b16 %v1963, %v1961
    %v1988 = vpack.c.b16 %v1966, %v1964
    %v1989 = vpack.c.b16 %v1967, %v1965
    %v1990 = vpack.c.b16 %v1970, %v1968
    %v1991 = vpack.c.b16 %v1971, %v1969
    %v1992 = vpack.c.b16 %v1974, %v1972
    %v1993 = vpack.c.b16 %v1975, %v1973
    %v1994 = vpack.c.b16 %v1978, %v1976
    %v1995 = vpack.c.b16 %v1979, %v1977
    %2012 = vmatpush.bf16.msra.mxu0 %v1994
    %2013 = vmatpush.bf16.msra.mxu0 %v1992
    %2014 = vmatpush.bf16.msra.mxu0 %v1990
    %2015 = vmatpush.bf16.msra.mxu0 %v1988
    %2016 = vmatpush.bf16.msra.mxu0 %v1986
    %2017 = vmatpush.bf16.msra.mxu0 %v1984
    %2018 = vmatpush.bf16.msra.mxu0 %v1982
    %2019 = vmatpush.bf16.msra.mxu0 %v1980
    %2020 = vmatmul.bf16.gmra.mxu0 %v1926
    %v2021 = vpop.f32.mrf.mxu0
    %v2022 = vadd.f32 %v1928, %v2021
    %v2023 = vpop.f32.mrf.mxu0
    %v2024 = vadd.f32 %v1928, %v2023
    %2025 = vdwg.mxu0
    %2026 = vmatpush.bf16.msra.mxu0 %v1995
    %2027 = vmatpush.bf16.msra.mxu0 %v1993
    %2028 = vmatpush.bf16.msra.mxu0 %v1991
    %2029 = vmatpush.bf16.msra.mxu0 %v1989
    %2030 = vmatpush.bf16.msra.mxu0 %v1987
    %2031 = vmatpush.bf16.msra.mxu0 %v1985
    %2032 = vmatpush.bf16.msra.mxu0 %v1983
    %2033 = vmatpush.bf16.msra.mxu0 %v1981
    %2034 = vmatmul.bf16.gmra.mxu0 %v1926
    %v2035 = vpop.f32.mrf.mxu0
    %v2036 = vadd.f32 %v1929, %v2035
    %v2037 = vpop.f32.mrf.mxu0
    %v2038 = vadd.f32 %v1929, %v2037
    %2039 = vdwg.mxu0
    %v2040 = vmul.f32 %v2022, 0.5
    %v2041 = vmul.f32 %v2036, 0.5
    %v2042 = vmul.f32 %v2024, 0.5
    %v2043 = vmul.f32 %v2038, 0.5
    %v2044 = vmul.f32 %v2022, 0.044715
    %v2045 = vmul.f32 %v2036, 0.044715
    %v2046 = vmul.f32 %v2024, 0.044715
    %v2047 = vmul.f32 %v2038, 0.044715
    %v2048 = vmul.f32 %v2044, %v2022
    %v2049 = vmul.f32 %v2045, %v2036
    %v2050 = vmul.f32 %v2046, %v2024
    %v2051 = vmul.f32 %v2047, %v2038
    %v2052 = vmul.f32 %v2048, %v2022
    %v2053 = vmul.f32 %v2049, %v2036
    %v2054 = vmul.f32 %v2050, %v2024
    %v2055 = vmul.f32 %v2051, %v2038
    %v2056 = vadd.f32 %v2022, %v2052
    %v2057 = vadd.f32 %v2036, %v2053
    %v2058 = vadd.f32 %v2024, %v2054
    %v2059 = vadd.f32 %v2038, %v2055
    %v2060 = vmul.f32 %v2056, 0.7978846
    %v2061 = vmul.f32 %v2057, 0.7978846
    %v2062 = vmul.f32 %v2058, 0.7978846
    %v2063 = vmul.f32 %v2059, 0.7978846
    %v2064 = vtanh.pop %v2060
    %v2065 = vtanh.pop %v2061
    %v2066 = vtanh.pop %v2062
    %v2067 = vtanh.pop %v2063
    %v2068 = vadd.f32 %v2064, 1.0
    %v2069 = vadd.f32 %v2065, 1.0
    %v2070 = vadd.f32 %v2066, 1.0
    %v2071 = vadd.f32 %v2067, 1.0
    %v2072 = vmul.f32 %v2040, %v2068
    %v2073 = vmul.f32 %v2041, %v2069
    %v2074 = vmul.f32 %v2042, %v2070
    %v2075 = vmul.f32 %v2043, %v2071
    %v2076 = vpack.c.bf16 %v2074, %v2072
    %v2077 = vpack.c.bf16 %v2075, %v2073
    %v2079 = vperm.slane %v1338, 0
    %v2113 = vunpack.c.l.b16 %v1305
    %v2114 = vunpack.c.l.b16 %v1306
    %v2115 = vunpack.c.l.b16 %v1307
    %v2116 = vunpack.c.l.b16 %v1308
    %v2117 = vunpack.c.l.b16 %v1309
    %v2118 = vunpack.c.l.b16 %v1310
    %v2119 = vunpack.c.l.b16 %v1311
    %v2120 = vunpack.c.l.b16 %v1312
    %v2121 = vunpack.c.l.b16 %v1313
    %v2122 = vunpack.c.l.b16 %v1314
    %v2123 = vunpack.c.l.b16 %v1315
    %v2124 = vunpack.c.l.b16 %v1316
    %v2125 = vunpack.c.l.b16 %v1317
    %v2126 = vunpack.c.l.b16 %v1318
    %v2127 = vunpack.c.l.b16 %v1319
    %v2128 = vunpack.c.l.b16 %v1320
    %v2129 = vunpack.c.l.b16 %v1321
    %v2130 = vunpack.c.l.b16 %v1322
    %v2131 = vunpack.c.l.b16 %v1323
    %v2132 = vunpack.c.l.b16 %v1324
    %v2133 = vunpack.c.l.b16 %v1325
    %v2134 = vunpack.c.l.b16 %v1326
    %v2135 = vunpack.c.l.b16 %v1327
    %v2136 = vunpack.c.l.b16 %v1328
    %v2137 = vunpack.c.l.b16 %v1329
    %v2138 = vunpack.c.l.b16 %v1330
    %v2139 = vunpack.c.l.b16 %v1331
    %v2140 = vunpack.c.l.b16 %v1332
    %v2141 = vunpack.c.l.b16 %v1333
    %v2142 = vunpack.c.l.b16 %v1334
    %v2143 = vunpack.c.l.b16 %v1335
    %v2144 = vunpack.c.l.b16 %v1336
    %v2145 = vpack.c.b16 %v2114, %v2113
    %v2146 = vpack.c.b16 %v2116, %v2115
    %v2147 = vpack.c.b16 %v2118, %v2117
    %v2148 = vpack.c.b16 %v2120, %v2119
    %v2149 = vpack.c.b16 %v2122, %v2121
    %v2150 = vpack.c.b16 %v2124, %v2123
    %v2151 = vpack.c.b16 %v2126, %v2125
    %v2152 = vpack.c.b16 %v2128, %v2127
    %v2153 = vpack.c.b16 %v2130, %v2129
    %v2154 = vpack.c.b16 %v2132, %v2131
    %v2155 = vpack.c.b16 %v2134, %v2133
    %v2156 = vpack.c.b16 %v2136, %v2135
    %v2157 = vpack.c.b16 %v2138, %v2137
    %v2158 = vpack.c.b16 %v2140, %v2139
    %v2159 = vpack.c.b16 %v2142, %v2141
    %v2160 = vpack.c.b16 %v2144, %v2143
    %2177 = vmatpush.bf16.msra.mxu0 %v2152
    %2178 = vmatpush.bf16.msra.mxu0 %v2151
    %2179 = vmatpush.bf16.msra.mxu0 %v2150
    %2180 = vmatpush.bf16.msra.mxu0 %v2149
    %2181 = vmatpush.bf16.msra.mxu0 %v2148
    %2182 = vmatpush.bf16.msra.mxu0 %v2147
    %2183 = vmatpush.bf16.msra.mxu0 %v2146
    %2184 = vmatpush.bf16.msra.mxu0 %v2145
    %2185 = vmatmul.bf16.gmra.mxu0 %v2076
    %v2186 = vpop.f32.mrf.mxu0
    %v2187 = vadd.f32 %v2079, %v2186
    %v2188 = vpop.f32.mrf.mxu0
    %v2189 = vadd.f32 %v2079, %v2188
    %2190 = vdwg.mxu0
    %2191 = vmatpush.bf16.msra.mxu0 %v2160
    %2192 = vmatpush.bf16.msra.mxu0 %v2159
    %2193 = vmatpush.bf16.msra.mxu0 %v2158
    %2194 = vmatpush.bf16.msra.mxu0 %v2157
    %2195 = vmatpush.bf16.msra.mxu0 %v2156
    %2196 = vmatpush.bf16.msra.mxu0 %v2155
    %2197 = vmatpush.bf16.msra.mxu0 %v2154
    %2198 = vmatpush.bf16.msra.mxu0 %v2153
    %2199 = vmatmul.bf16.gmra.mxu0 %v2077
    %v2200 = vpop.f32.mrf.mxu0
    %v2201 = vadd.f32 %v2187, %v2200
    %v2202 = vpop.f32.mrf.mxu0
    %v2203 = vadd.f32 %v2189, %v2202
    %2204 = vdwg.mxu0
    %v2205 = vadd.f32 %v1924, %v2201
    %v2206 = vadd.f32 %v1925, %v2203
    %s2207 = scalar_lea.vmem %s14, 1
    %v2208 = vld [vmem:[%s2207] sm:$0x1]
    %s2209 = scalar_lea.vmem %s15, 1
    %v2210 = vld [vmem:[%s2209] sm:$0x1]
    %2211 = vadd.xlane.f32.xlu0 %v2205
    %v2212 = vpop.xlane.xlu0 %2211
    %2213 = vadd.xlane.f32.xlu0 %v2206
    %v2214 = vpop.xlane.xlu0 %2213
    %v2215 = vmul.f32 %v2212, %v159
    %v2216 = vmul.f32 %v2214, %v159
    %v2217 = vsub.f32 %v2205, %v2215
    %v2218 = vsub.f32 %v2206, %v2216
    %v2219 = vmul.f32 %v2217, %v2217
    %v2220 = vmul.f32 %v2218, %v2218
    %2221 = vadd.xlane.f32.xlu0 %v2219
    %v2222 = vpop.xlane.xlu0 %2221
    %2223 = vadd.xlane.f32.xlu0 %v2220
    %v2224 = vpop.xlane.xlu0 %2223
    %v2225 = vmul.f32 %v2222, %v159
    %v2226 = vmul.f32 %v2224, %v159
    %v2227 = vadd.f32 %v2225, 1e-12
    %v2228 = vadd.f32 %v2226, 1e-12
    %v2229 = vrsqrt.pop %v2227
    %v2230 = vmul.f32 %v2229, %v2227
    %v2231 = vmul.f32 %v2230, %v2229
    %v2232 = vmul.f32 0.5, %v2231
    %v2233 = vsub.f32 1.5, %v2232
    %v2234 = vmul.f32 %v2229, %v2233
    %vm2235 = vweird.f32 %v2227
    %vm2236 = vweird.f32 %v2229
    %vm2237 = vmor %vm2235, %vm2236
    %v2238 = vsel %vm2237, %v2229, %v2234
    %v2239 = vrsqrt.pop %v2228
    %v2240 = vmul.f32 %v2239, %v2228
    %v2241 = vmul.f32 %v2240, %v2239
    %v2242 = vmul.f32 0.5, %v2241
    %v2243 = vsub.f32 1.5, %v2242
    %v2244 = vmul.f32 %v2239, %v2243
    %vm2245 = vweird.f32 %v2228
    %vm2246 = vweird.f32 %v2239
    %vm2247 = vmor %vm2245, %vm2246
    %v2248 = vsel %vm2247, %v2239, %v2244
    %v2249 = vmul.f32 %v2217, %v2238
    %v2250 = vmul.f32 %v2218, %v2248
    %v2252 = vperm.slane %v2208, 0
    %v2254 = vmul.f32 %v2249, %v2252
    %v2255 = vmul.f32 %v2250, %v2252
    %v2257 = vperm.slane %v2210, 0
    %v2259 = vadd.f32 %v2254, %v2257
    %v2260 = vadd.f32 %v2255, %v2257
    %v2262 = vrot.slane %v2260, 7
    %vm2264 = vcmask 1040384
    %v2265 = vsel %vm2264, %v2259, %v2262
    %v2266 = vld [vmem:[#allocation8] sm:$0xf]
    %v2267 = vld [vmem:[#allocation8 + $0x4] sm:$0xf]
    %v2268 = vld [vmem:[#allocation8 + $0x8] sm:$0xf]
    %v2269 = vld [vmem:[#allocation8 + $0xc] sm:$0xf]
    %v2270 = vld [vmem:[#allocation8 + $0x10] sm:$0xf]
    %v2271 = vld [vmem:[#allocation8 + $0x14] sm:$0xf]
    %v2272 = vld [vmem:[#allocation8 + $0x18] sm:$0xf]
    %v2273 = vld [vmem:[#allocation8 + $0x1c] sm:$0xf]
    %v2274 = vld [vmem:[#allocation8 + $0x20] sm:$0xf]
    %v2275 = vld [vmem:[#allocation8 + $0x24] sm:$0xf]
    %v2276 = vld [vmem:[#allocation8 + $0x28] sm:$0xf]
    %v2277 = vld [vmem:[#allocation8 + $0x2c] sm:$0xf]
    %v2278 = vld [vmem:[#allocation8 + $0x30] sm:$0xf]
    %v2279 = vld [vmem:[#allocation8 + $0x34] sm:$0xf]
    %v2280 = vld [vmem:[#allocation8 + $0x38] sm:$0xf]
    %v2281 = vld [vmem:[#allocation8 + $0x3c] sm:$0xf]
    %v2282 = vld [vmem:[%s17] sm:$0x1]
    %v2283 = vpack.c.bf16 %v2265, %v2265
    %v2285 = vperm.slane %v2282, 0
    %v2303 = vunpack.c.l.b16 %v2266
    %v2304 = vunpack.c.l.b16 %v2267
    %v2305 = vunpack.c.l.b16 %v2268
    %v2306 = vunpack.c.l.b16 %v2269
    %v2307 = vunpack.c.l.b16 %v2270
    %v2308 = vunpack.c.l.b16 %v2271
    %v2309 = vunpack.c.l.b16 %v2272
    %v2310 = vunpack.c.l.b16 %v2273
    %v2311 = vunpack.c.l.b16 %v2274
    %v2312 = vunpack.c.l.b16 %v2275
    %v2313 = vunpack.c.l.b16 %v2276
    %v2314 = vunpack.c.l.b16 %v2277
    %v2315 = vunpack.c.l.b16 %v2278
    %v2316 = vunpack.c.l.b16 %v2279
    %v2317 = vunpack.c.l.b16 %v2280
    %v2318 = vunpack.c.l.b16 %v2281
    %v2319 = vpack.c.b16 %v2304, %v2303
    %v2320 = vpack.c.b16 %v2306, %v2305
    %v2321 = vpack.c.b16 %v2308, %v2307
    %v2322 = vpack.c.b16 %v2310, %v2309
    %v2323 = vpack.c.b16 %v2312, %v2311
    %v2324 = vpack.c.b16 %v2314, %v2313
    %v2325 = vpack.c.b16 %v2316, %v2315
    %v2326 = vpack.c.b16 %v2318, %v2317
    %2335 = vmatpush.bf16.msra.mxu0 %v2326
    %2336 = vmatpush.bf16.msra.mxu0 %v2325
    %2337 = vmatpush.bf16.msra.mxu0 %v2324
    %2338 = vmatpush.bf16.msra.mxu0 %v2323
    %2339 = vmatpush.bf16.msra.mxu0 %v2322
    %2340 = vmatpush.bf16.msra.mxu0 %v2321
    %2341 = vmatpush.bf16.msra.mxu0 %v2320
    %2342 = vmatpush.bf16.msra.mxu0 %v2319
    %2343 = vmatmul.bf16.gmra.mxu0 %v2283
    %v2344 = vpop.f32.mrf.mxu0
    %v2345 = vadd.f32 %v2285, %v2344
    %v2346 = vpop.f32.mrf.mxu0
    %2347 = vdwg.mxu0
    %v2348 = vtanh.pop %v2345
    %v2349 = vld [vmem:[#allocation10] sm:$0xf]
    %v2350 = vld [vmem:[#allocation10 + $0x4] sm:$0xf]
    %v2351 = vld [vmem:[#allocation10 + $0x8] sm:$0xf]
    %v2352 = vld [vmem:[#allocation10 + $0xc] sm:$0xf]
    %v2353 = vld [vmem:[#allocation10 + $0x10] sm:$0xf]
    %v2354 = vld [vmem:[#allocation10 + $0x14] sm:$0xf]
    %v2355 = vld [vmem:[#allocation10 + $0x18] sm:$0xf]
    %v2356 = vld [vmem:[#allocation10 + $0x1c] sm:$0xf]
    %v2357 = vld [vmem:[#allocation10 + $0x20] sm:$0xf]
    %v2358 = vld [vmem:[#allocation10 + $0x24] sm:$0xf]
    %v2359 = vld [vmem:[#allocation10 + $0x28] sm:$0xf]
    %v2360 = vld [vmem:[#allocation10 + $0x2c] sm:$0xf]
    %v2361 = vld [vmem:[#allocation10 + $0x30] sm:$0xf]
    %v2362 = vld [vmem:[#allocation10 + $0x34] sm:$0xf]
    %v2363 = vld [vmem:[#allocation10 + $0x38] sm:$0xf]
    %v2364 = vld [vmem:[#allocation10 + $0x3c] sm:$0xf]
    %v2365 = vld [vmem:[%s19] sm:$0x1]
    %v2366 = vpack.c.bf16 %v2348, %v2348
    %v2368 = vperm.slane %v2365, 0
    %v2386 = vunpack.c.l.b16 %v2349
    %v2387 = vunpack.c.l.b16 %v2350
    %v2388 = vunpack.c.l.b16 %v2351
    %v2389 = vunpack.c.l.b16 %v2352
    %v2390 = vunpack.c.l.b16 %v2353
    %v2391 = vunpack.c.l.b16 %v2354
    %v2392 = vunpack.c.l.b16 %v2355
    %v2393 = vunpack.c.l.b16 %v2356
    %v2394 = vunpack.c.l.b16 %v2357
    %v2395 = vunpack.c.l.b16 %v2358
    %v2396 = vunpack.c.l.b16 %v2359
    %v2397 = vunpack.c.l.b16 %v2360
    %v2398 = vunpack.c.l.b16 %v2361
    %v2399 = vunpack.c.l.b16 %v2362
    %v2400 = vunpack.c.l.b16 %v2363
    %v2401 = vunpack.c.l.b16 %v2364
    %v2402 = vpack.c.b16 %v2387, %v2386
    %v2403 = vpack.c.b16 %v2389, %v2388
    %v2404 = vpack.c.b16 %v2391, %v2390
    %v2405 = vpack.c.b16 %v2393, %v2392
    %v2406 = vpack.c.b16 %v2395, %v2394
    %v2407 = vpack.c.b16 %v2397, %v2396
    %v2408 = vpack.c.b16 %v2399, %v2398
    %v2409 = vpack.c.b16 %v2401, %v2400
    %2418 = vmatpush.bf16.msra.mxu0 %v2409
    %2419 = vmatpush.bf16.msra.mxu0 %v2408
    %2420 = vmatpush.bf16.msra.mxu0 %v2407
    %2421 = vmatpush.bf16.msra.mxu0 %v2406
    %2422 = vmatpush.bf16.msra.mxu0 %v2405
    %2423 = vmatpush.bf16.msra.mxu0 %v2404
    %2424 = vmatpush.bf16.msra.mxu0 %v2403
    %2425 = vmatpush.bf16.msra.mxu0 %v2402
    %2426 = vmatmul.bf16.gmra.mxu0 %v2366
    %v2427 = vpop.f32.mrf.mxu0
    %v2428 = vadd.f32 %v2368, %v2427
    %v2429 = vpop.f32.mrf.mxu0
    %2430 = vdwg.mxu0
    %2431 = vst [vmem:[#allocation11] sm:$0x3] %v2428
    // Predicated region
    $region102: #{my_model_forward.1} parent=1 // pred_check
      _
    $region103: #{my_model_forward.1} parent=1 // pred_check_branch
      %2433 = sbr.rel (0) target = $region105
    $region104: #{my_model_forward.1} parent=1 // pred_region
      %2435 = vsyncadd [#allocation4], 0
      %s2437 = sshll.u32 [#allocation11], 4
      %s2438 = int_to_ptr.vmem [resolvable:$true] %s2437
      %s2439 = sshll.u32 %s20, 4
      %s2440 = int_to_ptr.hbm [resolvable:$true] %s2439
      %2442 = dma.vmem_to_hbm [thread:$0]  %s2438, 32, %s2440, [#allocation4]
    $region105: #{my_model_forward.1} parent=1 // pred_fallthru
      _
    // Predicated region
    $region106: #{my_model_forward.1} parent=1 // pred_check
      _
    $region107: #{my_model_forward.1} parent=1 // pred_check_branch
      %2444 = sbr.rel (0) target = $region109
    $region108: #{my_model_forward.1} parent=1 // pred_region
      %2446 = dma.done [#allocation4], 32
    $region109: #{my_model_forward.1} parent=1 // pred_fallthru
      _
    %2447 = vsyncpa [#allocation3], 1
    %2448 = vsyncpa [#allocation6], 1
    %2449 = vsyncpa [#allocation9], 1
    %2450 = vsyncpa [#allocation4], 1

</llo_original>
